<compile_context>
chip_gen: v5e
topology: v5e:2x2
jax: 0.10.0
libtpu: 0.0.40
codegen_flags: <defaults>
</compile_context>

<pallas_src>
import functools

import jax
import jax.numpy as jnp
from jax import lax
from jax.experimental import pallas as pl
from jax.experimental.pallas import tpu as pltpu

EPS = 1e-5
LANE = 128


def _round_up(c, m=LANE):
    return ((c + m - 1) // m) * m


@functools.lru_cache(maxsize=None)
def _vmem_limit_bytes():
    """Per-generation scoped-VMEM budget (~half of physical capacity)."""
    try:
        cap = int(pltpu.get_tpu_info().vmem_capacity_bytes)
    except Exception:  # defensive: fall back to a safe budget
        cap = 64 * 1024 * 1024
    return int(min(cap // 2, 96 * 1024 * 1024))


# ----------------------------- kernels -----------------------------

def _make_conv_stats_kernel(H, W, Cin, Cout, KH, KW, stride, pad,
                            has_proj, fuse_affine_relu):
    """conv(KHxKW, stride, zero-pad) as KH*KW accumulating bf16 matmuls with
    f32 accumulation, emitting the bf16 conv output plus per-image
    per-channel f32 (sum, sum_sq) BN statistics.  Optionally fuses a
    per-channel affine+ReLU on the input (previous BN+ReLU) and a 1x1
    stride-`stride` projection conv reusing the center tap (shortcut)."""
    Ho = (H + 2 * pad - KH) // stride + 1
    Wo = (W + 2 * pad - KW) // stride + 1
    M = Ho * Wo
    Hp, Wp = H + 2 * pad, W + 2 * pad

    def kernel(*refs):
        idx = 0
        x_ref = refs[idx]; idx += 1
        if fuse_affine_relu:
            scale_ref, bias_ref = refs[idx], refs[idx + 1]; idx += 2
        w_ref = refs[idx]; idx += 1
        if has_proj:
            ws_ref = refs[idx]; idx += 1
        y_ref, s_ref = refs[idx], refs[idx + 1]; idx += 2
        if has_proj:
            ysc_ref, ssc_ref = refs[idx], refs[idx + 1]; idx += 2
        xpad_ref = refs[idx]

        xin = x_ref[0].astype(jnp.float32)                    # (H, W, Cin)
        if fuse_affine_relu:
            # previous BN folded to per-channel scale/bias, + ReLU, fused here.
            xin = jnp.maximum(xin * scale_ref[...] + bias_ref[...], 0.0)

        # Zero only the 4 border strips (interior is fully overwritten).
        # Re-done every step so the kernel stays correct when the "parallel"
        # batch axis is split across TensorCores.
        if pad > 0:
            zrow = jnp.zeros((pad, Wp, Cin), jnp.float32)
            zcol = jnp.zeros((Hp, pad, Cin), jnp.float32)
            xpad_ref[pl.ds(0, pad), :, :] = zrow
            xpad_ref[pl.ds(H + pad, pad), :, :] = zrow
            xpad_ref[:, pl.ds(0, pad), :] = zcol
            xpad_ref[:, pl.ds(W + pad, pad), :] = zcol
        xpad_ref[pl.ds(pad, H), pl.ds(pad, W), :] = xin
        # TODO(synk): keep this scratch in bf16 (halves footprint / tap load
        # bytes); f32 retained because unaligned/strided sublane access on
        # packed 16-bit tiles is a Mosaic lowering risk.

        # conv as KH*KW accumulating matmuls: no materialized im2col buffer.
        acc = None
        center_tap = None
        for kh in range(KH):
            for kw in range(KW):
                if stride == 1:
                    t = xpad_ref[pl.ds(kh, Ho), pl.ds(kw, Wo), :]
                else:
                    # TODO(synk): stride>1 uses in-register strided slices; a
                    # wrapper-side space-to-depth phase split would make these
                    # contiguous stride-1 loads (XLU relief on v6e/v7x).
                    t = xpad_ref[pl.ds(kh, Ho, stride),
                                 pl.ds(kw, Wo, stride), :]
                t = t.reshape(M, Cin).astype(jnp.bfloat16)
                if has_proj and kh == pad and kw == pad:
                    center_tap = t
                tap = kh * KW + kw
                wt = w_ref[pl.ds(tap * Cin, Cin), :]           # (Cin, Cout)
                p = jnp.dot(t, wt, preferred_element_type=jnp.float32)
                acc = p if acc is None else acc + p

        y_ref[0] = acc.reshape(Ho, Wo, Cout).astype(jnp.bfloat16)
        # One-pass BN statistics (f32 sum and sum of squares, per channel).
        # TODO(synk): E[x^2]-E[x]^2 can cancel badly at production N*Ho*Wo;
        # switch to centered / compensated accumulation there.
        s_ref[0, pl.ds(0, 1), :] = jnp.sum(acc, axis=0, keepdims=True)
        s_ref[0, pl.ds(1, 1), :] = jnp.sum(acc * acc, axis=0, keepdims=True)

        if has_proj:
            # 1x1 stride-`stride` projection shortcut reuses the center tap.
            # TODO(synk): on v6e/v7x, concatenating ws onto the center-tap
            # weight (output width 2*Cout) would fill the 256-wide MXU.
            accs = jnp.dot(center_tap, ws_ref[...],
                           preferred_element_type=jnp.float32)
            ysc_ref[0] = accs.reshape(Ho, Wo, Cout).astype(jnp.bfloat16)
            ssc_ref[0, pl.ds(0, 1), :] = jnp.sum(accs, axis=0, keepdims=True)
            ssc_ref[0, pl.ds(1, 1), :] = jnp.sum(accs * accs, axis=0,
                                                 keepdims=True)

    return kernel, Ho, Wo


def conv_bn_stats(x, w_mat, ws_mat=None, scale=None, bias=None, *,
                  KH, KW, stride, pad):
    """Batch-gridded conv + BN-statistics pass.

    x:      (N, H, W, Cin) bf16 NHWC, channels padded to 128 lanes.
    w_mat:  (KH*KW*Cin, Cout) bf16 weight matrix (tap-major).
    ws_mat: optional (Cin, Cout) bf16 1x1 projection weights (fused shortcut).
    scale/bias: optional (1, Cin) f32 per-channel affine (+ReLU) applied to
        the input before the conv (fuses the previous BN+ReLU).
    Returns (y_bf16, stats_f32[, y_sc_bf16, stats_sc_f32]).
    """
    N, H, W, Cin = x.shape
    Cout = w_mat.shape[1]
    has_proj = ws_mat is not None
    fuse = scale is not None
    if has_proj:
        assert pad < KH and pad < KW   # center-tap reuse for the 1x1 shortcut

    kernel, Ho, Wo = _make_conv_stats_kernel(
        H, W, Cin, Cout, KH, KW, stride, pad, has_proj, fuse)

    in_specs = [pl.BlockSpec((1, H, W, Cin), lambda n: (n, 0, 0, 0))]
    inputs = [x]
    if fuse:
        in_specs += [pl.BlockSpec((1, Cin), lambda n: (0, 0)),
                     pl.BlockSpec((1, Cin), lambda n: (0, 0))]
        inputs += [scale, bias]
    # TODO(synk): grid-invariant operands (weights, scale/bias) could be
    # single-buffered (pipeline_mode=pl.Buffered(1)) to reclaim VMEM on v7x.
    in_specs.append(pl.BlockSpec((KH * KW * Cin, Cout), lambda n: (0, 0)))
    inputs.append(w_mat)
    if has_proj:
        in_specs.append(pl.BlockSpec((Cin, Cout), lambda n: (0, 0)))
        inputs.append(ws_mat)

    out_shape = [jax.ShapeDtypeStruct((N, Ho, Wo, Cout), jnp.bfloat16),
                 jax.ShapeDtypeStruct((N, 2, Cout), jnp.float32)]
    out_specs = [pl.BlockSpec((1, Ho, Wo, Cout), lambda n: (n, 0, 0, 0)),
                 pl.BlockSpec((1, 2, Cout), lambda n: (n, 0, 0))]
    if has_proj:
        out_shape += [jax.ShapeDtypeStruct((N, Ho, Wo, Cout), jnp.bfloat16),
                      jax.ShapeDtypeStruct((N, 2, Cout), jnp.float32)]
        out_specs += [pl.BlockSpec((1, Ho, Wo, Cout), lambda n: (n, 0, 0, 0)),
                      pl.BlockSpec((1, 2, Cout), lambda n: (n, 0, 0))]

    # TODO(synk): for large H*W stages (e.g. 56x56) tile the spatial axis
    # (grid=(N, cdiv(Ho, TH)) with a 1-row halo) so per-step VMEM stays small
    # on v7x and small-N batches still produce enough grid steps.
    return pl.pallas_call(
        kernel,
        out_shape=tuple(out_shape),
        grid=(N,),
        in_specs=in_specs,
        out_specs=tuple(out_specs),
        scratch_shapes=[pltpu.VMEM((H + 2 * pad, W + 2 * pad, Cin),
                                   jnp.float32)],
        compiler_params=pltpu.CompilerParams(
            dimension_semantics=("parallel",),
            vmem_limit_bytes=_vmem_limit_bytes()),
    )(*inputs)


def _make_finalize_kernel(has_proj):
    """out = relu(y2*scale2 + bias2 + shortcut); shortcut is the BN-folded
    projection conv output or the identity input (both stored bf16)."""
    def kernel(*refs):
        if has_proj:
            y_ref, sc_ref, s2_ref, b2_ref, ssc_ref, bsc_ref, o_ref = refs
            res = sc_ref[0].astype(jnp.float32) * ssc_ref[...] + bsc_ref[...]
        else:
            y_ref, sc_ref, s2_ref, b2_ref, o_ref = refs
            res = sc_ref[0].astype(jnp.float32)
        o_ref[0] = jnp.maximum(
            y_ref[0].astype(jnp.float32) * s2_ref[...] + b2_ref[...] + res,
            0.0)
    return kernel


def bn_add_relu(y2, scale2, bias2, shortcut, scale_sc=None, bias_sc=None):
    # TODO(synk): in a full network, fold this pass into the next block's
    # conv1 input load (same trick as bn1+ReLU -> conv2) to save one full
    # activation read+write per block.
    N, Ho, Wo, C = y2.shape
    has_proj = scale_sc is not None
    spec4 = pl.BlockSpec((1, Ho, Wo, C), lambda n: (n, 0, 0, 0))
    spec_c = pl.BlockSpec((1, C), lambda n: (0, 0))
    in_specs = [spec4, spec4, spec_c, spec_c]
    inputs = [y2, shortcut, scale2, bias2]
    if has_proj:
        in_specs += [spec_c, spec_c]
        inputs += [scale_sc, bias_sc]
    return pl.pallas_call(
        _make_finalize_kernel(has_proj),
        out_shape=jax.ShapeDtypeStruct((N, Ho, Wo, C), jnp.float32),
        grid=(N,),
        in_specs=in_specs,
        out_specs=spec4,
        compiler_params=pltpu.CompilerParams(
            dimension_semantics=("parallel",),
            vmem_limit_bytes=_vmem_limit_bytes()),
    )(*inputs)


# ----------------------- host-side glue / forward -----------------------

def _bn_fold(stats, gamma, beta, count):
    """Fold batch-stats BN to per-channel (scale, bias): y*scale + bias."""
    s = jnp.sum(stats[:, 0, :], axis=0)
    ss = jnp.sum(stats[:, 1, :], axis=0)
    mean = s / count
    var = jnp.maximum(ss / count - mean * mean, 0.0)   # biased variance
    scale = gamma * lax.rsqrt(var + EPS)
    bias = beta - mean * scale
    return scale.reshape(1, -1), bias.reshape(1, -1)


def basic_block_forward(params, x_nchw, stride):
    """Pallas BasicBlock.forward.  Input/output in PyTorch NCHW f32 layout."""
    N, Cin, H, W = x_nchw.shape
    Cout = params["g1"].shape[0]
    Cpi, Cpo = _round_up(Cin), _round_up(Cout)

    # NCHW -> NHWC, zero-pad channels to 128 lanes, store in bf16 (the MXU
    # operands are bf16 anyway; halves HBM traffic on the mem-bound passes).
    # TODO(synk): a full network would keep NHWC bf16 end-to-end and skip the
    # entry/exit transposes entirely.
    x = jnp.transpose(x_nchw, (0, 2, 3, 1)).astype(jnp.float32)
    x = jnp.pad(x, ((0, 0), (0, 0), (0, 0),
                    (0, Cpi - Cin))).astype(jnp.bfloat16)

    def pack_w(w, ci_p, co_p):
        # TODO(synk): for layers with Cin < 64, pack (kw, Cin) together before
        # padding to 128 lanes to avoid ~9x padded MXU work per tap.
        kh, kw, ci, co = w.shape
        wp = jnp.pad(w.astype(jnp.float32),
                     ((0, 0), (0, 0), (0, ci_p - ci), (0, co_p - co)))
        return wp.reshape(kh * kw * ci_p, co_p).astype(jnp.bfloat16)

    def pad_c(v, cp):
        return jnp.pad(v.astype(jnp.float32), (0, cp - v.shape[0]))

    w1 = pack_w(params["w1"], Cpi, Cpo)
    w2 = pack_w(params["w2"], Cpo, Cpo)
    g1, b1 = pad_c(params["g1"], Cpo), pad_c(params["b1"], Cpo)
    g2, b2 = pad_c(params["g2"], Cpo), pad_c(params["b2"], Cpo)
    has_proj = "ws" in params

    # conv1 (+ fused 1x1 projection shortcut) + per-image BN statistics.
    if has_proj:
        ws = pack_w(params["ws"], Cpi, Cpo)
        y1, st1, ysc, stsc = conv_bn_stats(x, w1, ws, KH=3, KW=3,
                                           stride=stride, pad=1)
    else:
        y1, st1 = conv_bn_stats(x, w1, KH=3, KW=3, stride=stride, pad=1)

    _, Ho, Wo, _ = y1.shape
    count = N * Ho * Wo
    scale1, bias1 = _bn_fold(st1, g1, b1, count)

    # conv2 with bn1+ReLU fused onto its input load, + BN2 statistics.
    y2, st2 = conv_bn_stats(y1, w2, scale=scale1, bias=bias1,
                            KH=3, KW=3, stride=1, pad=1)
    scale2, bias2 = _bn_fold(st2, g2, b2, count)

    # bn2 + shortcut add + ReLU as a single elementwise pass.
    if has_proj:
        gs, bs = pad_c(params["gs"], Cpo), pad_c(params["bs"], Cpo)
        scale_sc, bias_sc = _bn_fold(stsc, gs, bs, count)
        out = bn_add_relu(y2, scale2, bias2, ysc, scale_sc, bias_sc)
    else:
        out = bn_add_relu(y2, scale2, bias2, x)

    out = out[:, :, :, :Cout]                        # drop channel padding
    return jnp.transpose(out, (0, 3, 1, 2))          # NHWC -> NCHW


def init_basic_block_params(key, in_planes, planes, stride):
    ks = jax.random.split(key, 9)
    p = {
        "w1": 0.1 * jax.random.normal(ks[0], (3, 3, in_planes, planes), jnp.float32),
        "g1": 1.0 + 0.1 * jax.random.normal(ks[1], (planes,), jnp.float32),
        "b1": 0.1 * jax.random.normal(ks[2], (planes,), jnp.float32),
        "w2": 0.1 * jax.random.normal(ks[3], (3, 3, planes, planes), jnp.float32),
        "g2": 1.0 + 0.1 * jax.random.normal(ks[4], (planes,), jnp.float32),
        "b2": 0.1 * jax.random.normal(ks[5], (planes,), jnp.float32),
    }
    if stride != 1 or in_planes != planes:
        p["ws"] = 0.1 * jax.random.normal(ks[6], (1, 1, in_planes, planes), jnp.float32)
        p["gs"] = 1.0 + 0.1 * jax.random.normal(ks[7], (planes,), jnp.float32)
        p["bs"] = 0.1 * jax.random.normal(ks[8], (planes,), jnp.float32)
    return p


# ---------------- pure-JAX reference (for self-check) ----------------

def _ref_forward(params, x_nchw, stride):
    x = jnp.transpose(x_nchw, (0, 2, 3, 1)).astype(jnp.float32)

    def conv(v, w, s, p):
        return lax.conv_general_dilated(
            v.astype(jnp.bfloat16), w.astype(jnp.bfloat16),
            (s, s), [(p, p), (p, p)],
            dimension_numbers=("NHWC", "HWIO", "NHWC"),
            preferred_element_type=jnp.float32)

    def bn(y, g, b):
        mean = jnp.mean(y, axis=(0, 1, 2), keepdims=True)
        var = jnp.mean((y - mean) ** 2, axis=(0, 1, 2), keepdims=True)
        return (y - mean) * lax.rsqrt(var + EPS) * g.reshape(1, 1, 1, -1) \
            + b.reshape(1, 1, 1, -1)

    out = jax.nn.relu(bn(conv(x, params["w1"], stride, 1),
                         params["g1"], params["b1"]))
    sc = x
    if "ws" in params:
        sc = bn(conv(x, params["ws"], stride, 0), params["gs"], params["bs"])
    out = bn(conv(out, params["w2"], 1, 1), params["g2"], params["b2"]) + sc
    return jnp.transpose(jax.nn.relu(out), (0, 3, 1, 2))


def _check(out, ref):
    # Inter-kernel activations are stored in bf16 (per perf review), so the
    # comparison against the f32 reference uses bf16-level tolerances.
    assert out.shape == ref.shape, (out.shape, ref.shape)
    max_err = float(jnp.max(jnp.abs(out - ref)))
    mean_err = float(jnp.mean(jnp.abs(out - ref)))
    assert max_err < 8e-2, ("max_err", max_err)
    assert mean_err < 1.5e-2, ("mean_err", mean_err)


if __name__ == "__main__":
    # Case 1: stride-2 block with 1x1 projection shortcut.
    in_planes, planes, stride = 4, 8, 2
    N, H, W = 2, 16, 16
    key = jax.random.PRNGKey(0)
    k_x, k_p = jax.random.split(key)
    x = jax.random.normal(k_x, (N, in_planes, H, W), jnp.float32)   # NCHW
    params = init_basic_block_params(k_p, in_planes, planes, stride)

    fwd = jax.jit(functools.partial(basic_block_forward, stride=stride))
    out = jax.block_until_ready(fwd(params, x))
    ref = jax.block_until_ready(_ref_forward(params, x, stride))
    assert out.shape == (N, planes, H // stride, W // stride), out.shape
    _check(out, ref)

    # Case 2: identity-shortcut block (stride=1, in_planes == planes).
    k_x2, k_p2 = jax.random.split(jax.random.PRNGKey(1))
    x2 = jax.random.normal(k_x2, (N, 8, H, W), jnp.float32)
    params2 = init_basic_block_params(k_p2, 8, 8, 1)
    fwd2 = jax.jit(functools.partial(basic_block_forward, stride=1))
    out2 = jax.block_until_ready(fwd2(params2, x2))
    ref2 = jax.block_until_ready(_ref_forward(params2, x2, 1))
    _check(out2, ref2)

    print("KERNEL_OK")
</pallas_src>

<mosaic_0001>
module attributes {stable_mosaic.version = 11 : i64} {
  func.func @kernel(%arg0: i32, %arg1: memref<1x16x16x128xbf16, #tpu.memory_space<vmem>>, %arg2: memref<1152x128xbf16, #tpu.memory_space<vmem>>, %arg3: memref<128x128xbf16, #tpu.memory_space<vmem>>, %arg4: memref<1x8x8x128xbf16, #tpu.memory_space<vmem>>, %arg5: memref<1x2x128xf32, #tpu.memory_space<vmem>>, %arg6: memref<1x8x8x128xbf16, #tpu.memory_space<vmem>>, %arg7: memref<1x2x128xf32, #tpu.memory_space<vmem>>, %arg8: memref<18x18x128xf32, #tpu.memory_space<vmem>>) attributes {dimension_semantics = [#tpu.dimension_semantics<parallel>], iteration_bounds = array<i64: 2>, scalar_prefetch = 0 : i64, scratch_operands = 1 : i64, tpu.core_type = #tpu.core_type<tc>, window_params = [{transform_indices = @transform_0, window_bounds = array<i64: 1, 16, 16, 128>}, {pipeline_mode = #tpu.pipeline_mode<synchronous>, transform_indices = @transform_1, window_bounds = array<i64: 1152, 128>}, {pipeline_mode = #tpu.pipeline_mode<synchronous>, transform_indices = @transform_2, window_bounds = array<i64: 128, 128>}, {transform_indices = @transform_3, window_bounds = array<i64: 1, 8, 8, 128>}, {transform_indices = @transform_4, window_bounds = array<i64: 1, 2, 128>}, {transform_indices = @transform_5, window_bounds = array<i64: 1, 8, 8, 128>}, {transform_indices = @transform_6, window_bounds = array<i64: 1, 2, 128>}]} {
    %c0 = arith.constant 0 : index
    %c0_0 = arith.constant 0 : index
    %c0_1 = arith.constant 0 : index
    %c0_2 = arith.constant 0 : index
    %0 = vector.load %arg1[%c0, %c0_0, %c0_1, %c0_2] : memref<1x16x16x128xbf16, #tpu.memory_space<vmem>>, vector<1x16x16x128xbf16>
    %1 = vector.shape_cast %0 : vector<1x16x16x128xbf16> to vector<16x16x128xbf16>
    %2 = arith.extf %1 : vector<16x16x128xbf16> to vector<16x16x128xf32>
    %cst = arith.constant 0.000000e+00 : f32
    %3 = vector.broadcast %cst : f32 to vector<1x18x128xf32>
    %cst_3 = arith.constant 0.000000e+00 : f32
    %4 = vector.broadcast %cst_3 : f32 to vector<18x1x128xf32>
    %c0_4 = arith.constant 0 : index
    %c0_5 = arith.constant 0 : index
    %c0_6 = arith.constant 0 : index
    %5 = vector.load %arg8[%c0_4, %c0_5, %c0_6] : memref<18x18x128xf32, #tpu.memory_space<vmem>>, vector<1x18x128xf32>
    tpu.vector_store %arg8[%c0_4, %c0_5, %c0_6], %3 {strides = array<i32>} : memref<18x18x128xf32, #tpu.memory_space<vmem>>, vector<1x18x128xf32>,
    %c17 = arith.constant 17 : index
    %c0_7 = arith.constant 0 : index
    %c0_8 = arith.constant 0 : index
    %6 = vector.load %arg8[%c17, %c0_7, %c0_8] : memref<18x18x128xf32, #tpu.memory_space<vmem>>, vector<1x18x128xf32>
    tpu.vector_store %arg8[%c17, %c0_7, %c0_8], %3 {strides = array<i32>} : memref<18x18x128xf32, #tpu.memory_space<vmem>>, vector<1x18x128xf32>,
    %c0_9 = arith.constant 0 : index
    %c0_10 = arith.constant 0 : index
    %c0_11 = arith.constant 0 : index
    %7 = vector.load %arg8[%c0_9, %c0_10, %c0_11] : memref<18x18x128xf32, #tpu.memory_space<vmem>>, vector<18x1x128xf32>
    tpu.vector_store %arg8[%c0_9, %c0_10, %c0_11], %4 {strides = array<i32>} : memref<18x18x128xf32, #tpu.memory_space<vmem>>, vector<18x1x128xf32>,
    %c0_12 = arith.constant 0 : index
    %c17_13 = arith.constant 17 : index
    %c0_14 = arith.constant 0 : index
    %8 = vector.load %arg8[%c0_12, %c17_13, %c0_14] : memref<18x18x128xf32, #tpu.memory_space<vmem>>, vector<18x1x128xf32>
    tpu.vector_store %arg8[%c0_12, %c17_13, %c0_14], %4 {strides = array<i32>} : memref<18x18x128xf32, #tpu.memory_space<vmem>>, vector<18x1x128xf32>,
    %c1 = arith.constant 1 : index
    %c1_15 = arith.constant 1 : index
    %c0_16 = arith.constant 0 : index
    %9 = vector.load %arg8[%c1, %c1_15, %c0_16] : memref<18x18x128xf32, #tpu.memory_space<vmem>>, vector<16x16x128xf32>
    tpu.vector_store %arg8[%c1, %c1_15, %c0_16], %2 {strides = array<i32>} : memref<18x18x128xf32, #tpu.memory_space<vmem>>, vector<16x16x128xf32>,
    %c0_17 = arith.constant 0 : index
    %c0_18 = arith.constant 0 : index
    %c0_19 = arith.constant 0 : index
    %10 = tpu.strided_load %arg8[%c0_17, %c0_18, %c0_19] {strides = array<i32: 2, 2, 1>} : memref<18x18x128xf32, #tpu.memory_space<vmem>>, vector<8x8x128xf32>
    %11 = vector.shape_cast %10 : vector<8x8x128xf32> to vector<64x128xf32>
    %12 = arith.truncf %11 : vector<64x128xf32> to vector<64x128xbf16>
    %c0_20 = arith.constant 0 : index
    %c0_21 = arith.constant 0 : index
    %13 = vector.load %arg2[%c0_20, %c0_21] : memref<1152x128xbf16, #tpu.memory_space<vmem>>, vector<128x128xbf16>
    %cst_22 = arith.constant dense<0.000000e+00> : vector<64x128xf32>
    %14 = tpu.matmul %12, %13, %cst_22 {dimension_numbers = #tpu.dot_dimension_numbers<[1], [0], [0], [1], [0, 0, 1, 1], [], []>} : vector<64x128xbf16>, vector<128x128xbf16>, vector<64x128xf32> -> vector<64x128xf32>
    %c0_23 = arith.constant 0 : index
    %c1_24 = arith.constant 1 : index
    %c0_25 = arith.constant 0 : index
    %15 = tpu.strided_load %arg8[%c0_23, %c1_24, %c0_25] {strides = array<i32: 2, 2, 1>} : memref<18x18x128xf32, #tpu.memory_space<vmem>>, vector<8x8x128xf32>
    %16 = vector.shape_cast %15 : vector<8x8x128xf32> to vector<64x128xf32>
    %17 = arith.truncf %16 : vector<64x128xf32> to vector<64x128xbf16>
    %c128 = arith.constant 128 : index
    %c0_26 = arith.constant 0 : index
    %18 = vector.load %arg2[%c128, %c0_26] : memref<1152x128xbf16, #tpu.memory_space<vmem>>, vector<128x128xbf16>
    %cst_27 = arith.constant dense<0.000000e+00> : vector<64x128xf32>
    %19 = tpu.matmul %17, %18, %cst_27 {dimension_numbers = #tpu.dot_dimension_numbers<[1], [0], [0], [1], [0, 0, 1, 1], [], []>} : vector<64x128xbf16>, vector<128x128xbf16>, vector<64x128xf32> -> vector<64x128xf32>
    %20 = arith.addf %14, %19 : vector<64x128xf32>
    %c0_28 = arith.constant 0 : index
    %c2 = arith.constant 2 : index
    %c0_29 = arith.constant 0 : index
    %21 = tpu.strided_load %arg8[%c0_28, %c2, %c0_29] {strides = array<i32: 2, 2, 1>} : memref<18x18x128xf32, #tpu.memory_space<vmem>>, vector<8x8x128xf32>
    %22 = vector.shape_cast %21 : vector<8x8x128xf32> to vector<64x128xf32>
    %23 = arith.truncf %22 : vector<64x128xf32> to vector<64x128xbf16>
    %c256 = arith.constant 256 : index
    %c0_30 = arith.constant 0 : index
    %24 = vector.load %arg2[%c256, %c0_30] : memref<1152x128xbf16, #tpu.memory_space<vmem>>, vector<128x128xbf16>
    %cst_31 = arith.constant dense<0.000000e+00> : vector<64x128xf32>
    %25 = tpu.matmul %23, %24, %cst_31 {dimension_numbers = #tpu.dot_dimension_numbers<[1], [0], [0], [1], [0, 0, 1, 1], [], []>} : vector<64x128xbf16>, vector<128x128xbf16>, vector<64x128xf32> -> vector<64x128xf32>
    %26 = arith.addf %20, %25 : vector<64x128xf32>
    %c1_32 = arith.constant 1 : index
    %c0_33 = arith.constant 0 : index
    %c0_34 = arith.constant 0 : index
    %27 = tpu.strided_load %arg8[%c1_32, %c0_33, %c0_34] {strides = array<i32: 2, 2, 1>} : memref<18x18x128xf32, #tpu.memory_space<vmem>>, vector<8x8x128xf32>
    %28 = vector.shape_cast %27 : vector<8x8x128xf32> to vector<64x128xf32>
    %29 = arith.truncf %28 : vector<64x128xf32> to vector<64x128xbf16>
    %c384 = arith.constant 384 : index
    %c0_35 = arith.constant 0 : index
    %30 = vector.load %arg2[%c384, %c0_35] : memref<1152x128xbf16, #tpu.memory_space<vmem>>, vector<128x128xbf16>
    %cst_36 = arith.constant dense<0.000000e+00> : vector<64x128xf32>
    %31 = tpu.matmul %29, %30, %cst_36 {dimension_numbers = #tpu.dot_dimension_numbers<[1], [0], [0], [1], [0, 0, 1, 1], [], []>} : vector<64x128xbf16>, vector<128x128xbf16>, vector<64x128xf32> -> vector<64x128xf32>
    %32 = arith.addf %26, %31 : vector<64x128xf32>
    %c1_37 = arith.constant 1 : index
    %c1_38 = arith.constant 1 : index
    %c0_39 = arith.constant 0 : index
    %33 = tpu.strided_load %arg8[%c1_37, %c1_38, %c0_39] {strides = array<i32: 2, 2, 1>} : memref<18x18x128xf32, #tpu.memory_space<vmem>>, vector<8x8x128xf32>
    %34 = vector.shape_cast %33 : vector<8x8x128xf32> to vector<64x128xf32>
    %35 = arith.truncf %34 : vector<64x128xf32> to vector<64x128xbf16>
    %c512 = arith.constant 512 : index
    %c0_40 = arith.constant 0 : index
    %36 = vector.load %arg2[%c512, %c0_40] : memref<1152x128xbf16, #tpu.memory_space<vmem>>, vector<128x128xbf16>
    %cst_41 = arith.constant dense<0.000000e+00> : vector<64x128xf32>
    %37 = tpu.matmul %35, %36, %cst_41 {dimension_numbers = #tpu.dot_dimension_numbers<[1], [0], [0], [1], [0, 0, 1, 1], [], []>} : vector<64x128xbf16>, vector<128x128xbf16>, vector<64x128xf32> -> vector<64x128xf32>
    %38 = arith.addf %32, %37 : vector<64x128xf32>
    %c1_42 = arith.constant 1 : index
    %c2_43 = arith.constant 2 : index
    %c0_44 = arith.constant 0 : index
    %39 = tpu.strided_load %arg8[%c1_42, %c2_43, %c0_44] {strides = array<i32: 2, 2, 1>} : memref<18x18x128xf32, #tpu.memory_space<vmem>>, vector<8x8x128xf32>
    %40 = vector.shape_cast %39 : vector<8x8x128xf32> to vector<64x128xf32>
    %41 = arith.truncf %40 : vector<64x128xf32> to vector<64x128xbf16>
    %c640 = arith.constant 640 : index
    %c0_45 = arith.constant 0 : index
    %42 = vector.load %arg2[%c640, %c0_45] : memref<1152x128xbf16, #tpu.memory_space<vmem>>, vector<128x128xbf16>
    %cst_46 = arith.constant dense<0.000000e+00> : vector<64x128xf32>
    %43 = tpu.matmul %41, %42, %cst_46 {dimension_numbers = #tpu.dot_dimension_numbers<[1], [0], [0], [1], [0, 0, 1, 1], [], []>} : vector<64x128xbf16>, vector<128x128xbf16>, vector<64x128xf32> -> vector<64x128xf32>
    %44 = arith.addf %38, %43 : vector<64x128xf32>
    %c2_47 = arith.constant 2 : index
    %c0_48 = arith.constant 0 : index
    %c0_49 = arith.constant 0 : index
    %45 = tpu.strided_load %arg8[%c2_47, %c0_48, %c0_49] {strides = array<i32: 2, 2, 1>} : memref<18x18x128xf32, #tpu.memory_space<vmem>>, vector<8x8x128xf32>
    %46 = vector.shape_cast %45 : vector<8x8x128xf32> to vector<64x128xf32>
    %47 = arith.truncf %46 : vector<64x128xf32> to vector<64x128xbf16>
    %c768 = arith.constant 768 : index
    %c0_50 = arith.constant 0 : index
    %48 = vector.load %arg2[%c768, %c0_50] : memref<1152x128xbf16, #tpu.memory_space<vmem>>, vector<128x128xbf16>
    %cst_51 = arith.constant dense<0.000000e+00> : vector<64x128xf32>
    %49 = tpu.matmul %47, %48, %cst_51 {dimension_numbers = #tpu.dot_dimension_numbers<[1], [0], [0], [1], [0, 0, 1, 1], [], []>} : vector<64x128xbf16>, vector<128x128xbf16>, vector<64x128xf32> -> vector<64x128xf32>
    %50 = arith.addf %44, %49 : vector<64x128xf32>
    %c2_52 = arith.constant 2 : index
    %c1_53 = arith.constant 1 : index
    %c0_54 = arith.constant 0 : index
    %51 = tpu.strided_load %arg8[%c2_52, %c1_53, %c0_54] {strides = array<i32: 2, 2, 1>} : memref<18x18x128xf32, #tpu.memory_space<vmem>>, vector<8x8x128xf32>
    %52 = vector.shape_cast %51 : vector<8x8x128xf32> to vector<64x128xf32>
    %53 = arith.truncf %52 : vector<64x128xf32> to vector<64x128xbf16>
    %c896 = arith.constant 896 : index
    %c0_55 = arith.constant 0 : index
    %54 = vector.load %arg2[%c896, %c0_55] : memref<1152x128xbf16, #tpu.memory_space<vmem>>, vector<128x128xbf16>
    %cst_56 = arith.constant dense<0.000000e+00> : vector<64x128xf32>
    %55 = tpu.matmul %53, %54, %cst_56 {dimension_numbers = #tpu.dot_dimension_numbers<[1], [0], [0], [1], [0, 0, 1, 1], [], []>} : vector<64x128xbf16>, vector<128x128xbf16>, vector<64x128xf32> -> vector<64x128xf32>
    %56 = arith.addf %50, %55 : vector<64x128xf32>
    %c2_57 = arith.constant 2 : index
    %c2_58 = arith.constant 2 : index
    %c0_59 = arith.constant 0 : index
    %57 = tpu.strided_load %arg8[%c2_57, %c2_58, %c0_59] {strides = array<i32: 2, 2, 1>} : memref<18x18x128xf32, #tpu.memory_space<vmem>>, vector<8x8x128xf32>
    %58 = vector.shape_cast %57 : vector<8x8x128xf32> to vector<64x128xf32>
    %59 = arith.truncf %58 : vector<64x128xf32> to vector<64x128xbf16>
    %c1024 = arith.constant 1024 : index
    %c0_60 = arith.constant 0 : index
    %60 = vector.load %arg2[%c1024, %c0_60] : memref<1152x128xbf16, #tpu.memory_space<vmem>>, vector<128x128xbf16>
    %cst_61 = arith.constant dense<0.000000e+00> : vector<64x128xf32>
    %61 = tpu.matmul %59, %60, %cst_61 {dimension_numbers = #tpu.dot_dimension_numbers<[1], [0], [0], [1], [0, 0, 1, 1], [], []>} : vector<64x128xbf16>, vector<128x128xbf16>, vector<64x128xf32> -> vector<64x128xf32>
    %62 = arith.addf %56, %61 : vector<64x128xf32>
    %63 = vector.shape_cast %62 : vector<64x128xf32> to vector<8x8x128xf32>
    %64 = arith.truncf %63 : vector<8x8x128xf32> to vector<8x8x128xbf16>
    %c0_62 = arith.constant 0 : index
    %c0_63 = arith.constant 0 : index
    %c0_64 = arith.constant 0 : index
    %c0_65 = arith.constant 0 : index
    %65 = vector.load %arg4[%c0_62, %c0_63, %c0_64, %c0_65] : memref<1x8x8x128xbf16, #tpu.memory_space<vmem>>, vector<1x8x8x128xbf16>
    %66 = vector.shape_cast %65 : vector<1x8x8x128xbf16> to vector<8x8x128xbf16>
    %67 = vector.shape_cast %64 : vector<8x8x128xbf16> to vector<1x8x8x128xbf16>
    tpu.vector_store %arg4[%c0_62, %c0_63, %c0_64, %c0_65], %67 {strides = array<i32>} : memref<1x8x8x128xbf16, #tpu.memory_space<vmem>>, vector<1x8x8x128xbf16>,
    %cst_66 = arith.constant dense<0.000000e+00> : vector<128xf32>
    %68 = vector.multi_reduction <add>, %62, %cst_66 [0] : vector<64x128xf32> to vector<128xf32>
    %69 = vector.shape_cast %68 : vector<128xf32> to vector<1x128xf32>
    %c0_67 = arith.constant 0 : index
    %c0_68 = arith.constant 0 : index
    %c0_69 = arith.constant 0 : index
    %70 = vector.load %arg5[%c0_67, %c0_68, %c0_69] : memref<1x2x128xf32, #tpu.memory_space<vmem>>, vector<1x1x128xf32>
    %71 = vector.shape_cast %70 : vector<1x1x128xf32> to vector<1x128xf32>
    %72 = vector.shape_cast %69 : vector<1x128xf32> to vector<1x1x128xf32>
    tpu.vector_store %arg5[%c0_67, %c0_68, %c0_69], %72 {strides = array<i32>} : memref<1x2x128xf32, #tpu.memory_space<vmem>>, vector<1x1x128xf32>,
    %73 = arith.mulf %62, %62 : vector<64x128xf32>
    %cst_70 = arith.constant dense<0.000000e+00> : vector<128xf32>
    %74 = vector.multi_reduction <add>, %73, %cst_70 [0] : vector<64x128xf32> to vector<128xf32>
    %75 = vector.shape_cast %74 : vector<128xf32> to vector<1x128xf32>
    %c0_71 = arith.constant 0 : index
    %c1_72 = arith.constant 1 : index
    %c0_73 = arith.constant 0 : index
    %76 = vector.load %arg5[%c0_71, %c1_72, %c0_73] : memref<1x2x128xf32, #tpu.memory_space<vmem>>, vector<1x1x128xf32>
    %77 = vector.shape_cast %76 : vector<1x1x128xf32> to vector<1x128xf32>
    %78 = vector.shape_cast %75 : vector<1x128xf32> to vector<1x1x128xf32>
    tpu.vector_store %arg5[%c0_71, %c1_72, %c0_73], %78 {strides = array<i32>} : memref<1x2x128xf32, #tpu.memory_space<vmem>>, vector<1x1x128xf32>,
    %c0_74 = arith.constant 0 : index
    %c0_75 = arith.constant 0 : index
    %79 = vector.load %arg3[%c0_74, %c0_75] : memref<128x128xbf16, #tpu.memory_space<vmem>>, vector<128x128xbf16>
    %cst_76 = arith.constant dense<0.000000e+00> : vector<64x128xf32>
    %80 = tpu.matmul %35, %79, %cst_76 {dimension_numbers = #tpu.dot_dimension_numbers<[1], [0], [0], [1], [0, 0, 1, 1], [], []>} : vector<64x128xbf16>, vector<128x128xbf16>, vector<64x128xf32> -> vector<64x128xf32>
    %81 = vector.shape_cast %80 : vector<64x128xf32> to vector<8x8x128xf32>
    %82 = arith.truncf %81 : vector<8x8x128xf32> to vector<8x8x128xbf16>
    %c0_77 = arith.constant 0 : index
    %c0_78 = arith.constant 0 : index
    %c0_79 = arith.constant 0 : index
    %c0_80 = arith.constant 0 : index
    %83 = vector.load %arg6[%c0_77, %c0_78, %c0_79, %c0_80] : memref<1x8x8x128xbf16, #tpu.memory_space<vmem>>, vector<1x8x8x128xbf16>
    %84 = vector.shape_cast %83 : vector<1x8x8x128xbf16> to vector<8x8x128xbf16>
    %85 = vector.shape_cast %82 : vector<8x8x128xbf16> to vector<1x8x8x128xbf16>
    tpu.vector_store %arg6[%c0_77, %c0_78, %c0_79, %c0_80], %85 {strides = array<i32>} : memref<1x8x8x128xbf16, #tpu.memory_space<vmem>>, vector<1x8x8x128xbf16>,
    %cst_81 = arith.constant dense<0.000000e+00> : vector<128xf32>
    %86 = vector.multi_reduction <add>, %80, %cst_81 [0] : vector<64x128xf32> to vector<128xf32>
    %87 = vector.shape_cast %86 : vector<128xf32> to vector<1x128xf32>
    %c0_82 = arith.constant 0 : index
    %c0_83 = arith.constant 0 : index
    %c0_84 = arith.constant 0 : index
    %88 = vector.load %arg7[%c0_82, %c0_83, %c0_84] : memref<1x2x128xf32, #tpu.memory_space<vmem>>, vector<1x1x128xf32>
    %89 = vector.shape_cast %88 : vector<1x1x128xf32> to vector<1x128xf32>
    %90 = vector.shape_cast %87 : vector<1x128xf32> to vector<1x1x128xf32>
    tpu.vector_store %arg7[%c0_82, %c0_83, %c0_84], %90 {strides = array<i32>} : memref<1x2x128xf32, #tpu.memory_space<vmem>>, vector<1x1x128xf32>,
    %91 = arith.mulf %80, %80 : vector<64x128xf32>
    %cst_85 = arith.constant dense<0.000000e+00> : vector<128xf32>
    %92 = vector.multi_reduction <add>, %91, %cst_85 [0] : vector<64x128xf32> to vector<128xf32>
    %93 = vector.shape_cast %92 : vector<128xf32> to vector<1x128xf32>
    %c0_86 = arith.constant 0 : index
    %c1_87 = arith.constant 1 : index
    %c0_88 = arith.constant 0 : index
    %94 = vector.load %arg7[%c0_86, %c1_87, %c0_88] : memref<1x2x128xf32, #tpu.memory_space<vmem>>, vector<1x1x128xf32>
    %95 = vector.shape_cast %94 : vector<1x1x128xf32> to vector<1x128xf32>
    %96 = vector.shape_cast %93 : vector<1x128xf32> to vector<1x1x128xf32>
    tpu.vector_store %arg7[%c0_86, %c1_87, %c0_88], %96 {strides = array<i32>} : memref<1x2x128xf32, #tpu.memory_space<vmem>>, vector<1x1x128xf32>,
    return
  }
  func.func @transform_0(%arg0: i32) -> (i32, i32, i32, i32) {
    %c0_i32 = arith.constant 0 : i32
    %c0_i32_0 = arith.constant 0 : i32
    %c0_i32_1 = arith.constant 0 : i32
    %c0_i32_2 = arith.constant 0 : i32
    return %arg0, %c0_i32, %c0_i32_0, %c0_i32_1 : i32, i32, i32, i32
  }
  func.func @transform_1(%arg0: i32) -> (i32, i32) {
    %c0_i32 = arith.constant 0 : i32
    %c0_i32_0 = arith.constant 0 : i32
    %c0_i32_1 = arith.constant 0 : i32
    return %c0_i32, %c0_i32_0 : i32, i32
  }
  func.func @transform_2(%arg0: i32) -> (i32, i32) {
    %c0_i32 = arith.constant 0 : i32
    %c0_i32_0 = arith.constant 0 : i32
    %c0_i32_1 = arith.constant 0 : i32
    return %c0_i32, %c0_i32_0 : i32, i32
  }
  func.func @transform_3(%arg0: i32) -> (i32, i32, i32, i32) {
    %c0_i32 = arith.constant 0 : i32
    %c0_i32_0 = arith.constant 0 : i32
    %c0_i32_1 = arith.constant 0 : i32
    %c0_i32_2 = arith.constant 0 : i32
    return %arg0, %c0_i32, %c0_i32_0, %c0_i32_1 : i32, i32, i32, i32
  }
  func.func @transform_4(%arg0: i32) -> (i32, i32, i32) {
    %c0_i32 = arith.constant 0 : i32
    %c0_i32_0 = arith.constant 0 : i32
    %c0_i32_1 = arith.constant 0 : i32
    return %arg0, %c0_i32, %c0_i32_0 : i32, i32, i32
  }
  func.func @transform_5(%arg0: i32) -> (i32, i32, i32, i32) {
    %c0_i32 = arith.constant 0 : i32
    %c0_i32_0 = arith.constant 0 : i32
    %c0_i32_1 = arith.constant 0 : i32
    %c0_i32_2 = arith.constant 0 : i32
    return %arg0, %c0_i32, %c0_i32_0, %c0_i32_1 : i32, i32, i32, i32
  }
  func.func @transform_6(%arg0: i32) -> (i32, i32, i32) {
    %c0_i32 = arith.constant 0 : i32
    %c0_i32_0 = arith.constant 0 : i32
    %c0_i32_1 = arith.constant 0 : i32
    return %arg0, %c0_i32, %c0_i32_0 : i32, i32, i32
  }
}

module attributes {stable_mosaic.version = 11 : i64} {
  func.func @kernel(%arg0: i32, %arg1: memref<1x8x8x128xbf16, #tpu.memory_space<vmem>>, %arg2: memref<1x8x8x128xbf16, #tpu.memory_space<vmem>>, %arg3: memref<1x128xf32, #tpu.memory_space<vmem>>, %arg4: memref<1x128xf32, #tpu.memory_space<vmem>>, %arg5: memref<1x128xf32, #tpu.memory_space<vmem>>, %arg6: memref<1x128xf32, #tpu.memory_space<vmem>>, %arg7: memref<1x8x8x128xf32, #tpu.memory_space<vmem>>) attributes {dimension_semantics = [#tpu.dimension_semantics<parallel>], iteration_bounds = array<i64: 2>, scalar_prefetch = 0 : i64, scratch_operands = 0 : i64, tpu.core_type = #tpu.core_type<tc>, window_params = [{transform_indices = @transform_0, window_bounds = array<i64: 1, 8, 8, 128>}, {transform_indices = @transform_1, window_bounds = array<i64: 1, 8, 8, 128>}, {pipeline_mode = #tpu.pipeline_mode<synchronous>, transform_indices = @transform_2, window_bounds = array<i64: 1, 128>}, {pipeline_mode = #tpu.pipeline_mode<synchronous>, transform_indices = @transform_3, window_bounds = array<i64: 1, 128>}, {pipeline_mode = #tpu.pipeline_mode<synchronous>, transform_indices = @transform_4, window_bounds = array<i64: 1, 128>}, {pipeline_mode = #tpu.pipeline_mode<synchronous>, transform_indices = @transform_5, window_bounds = array<i64: 1, 128>}, {transform_indices = @transform_6, window_bounds = array<i64: 1, 8, 8, 128>}]} {
    %c0 = arith.constant 0 : index
    %c0_0 = arith.constant 0 : index
    %c0_1 = arith.constant 0 : index
    %c0_2 = arith.constant 0 : index
    %0 = vector.load %arg2[%c0, %c0_0, %c0_1, %c0_2] : memref<1x8x8x128xbf16, #tpu.memory_space<vmem>>, vector<1x8x8x128xbf16>
    %1 = vector.shape_cast %0 : vector<1x8x8x128xbf16> to vector<8x8x128xbf16>
    %2 = arith.extf %1 : vector<8x8x128xbf16> to vector<8x8x128xf32>
    %c0_3 = arith.constant 0 : index
    %c0_4 = arith.constant 0 : index
    %3 = vector.load %arg5[%c0_3, %c0_4] : memref<1x128xf32, #tpu.memory_space<vmem>>, vector<1x128xf32>
    %4 = vector.shape_cast %3 : vector<1x128xf32> to vector<1x1x128xf32>
    %5 = vector.broadcast %4 : vector<1x1x128xf32> to vector<8x8x128xf32>
    %6 = arith.mulf %2, %5 : vector<8x8x128xf32>
    %c0_5 = arith.constant 0 : index
    %c0_6 = arith.constant 0 : index
    %7 = vector.load %arg6[%c0_5, %c0_6] : memref<1x128xf32, #tpu.memory_space<vmem>>, vector<1x128xf32>
    %8 = vector.shape_cast %7 : vector<1x128xf32> to vector<1x1x128xf32>
    %9 = vector.broadcast %8 : vector<1x1x128xf32> to vector<8x8x128xf32>
    %10 = arith.addf %6, %9 : vector<8x8x128xf32>
    %c0_7 = arith.constant 0 : index
    %c0_8 = arith.constant 0 : index
    %c0_9 = arith.constant 0 : index
    %c0_10 = arith.constant 0 : index
    %11 = vector.load %arg1[%c0_7, %c0_8, %c0_9, %c0_10] : memref<1x8x8x128xbf16, #tpu.memory_space<vmem>>, vector<1x8x8x128xbf16>
    %12 = vector.shape_cast %11 : vector<1x8x8x128xbf16> to vector<8x8x128xbf16>
    %13 = arith.extf %12 : vector<8x8x128xbf16> to vector<8x8x128xf32>
    %c0_11 = arith.constant 0 : index
    %c0_12 = arith.constant 0 : index
    %14 = vector.load %arg3[%c0_11, %c0_12] : memref<1x128xf32, #tpu.memory_space<vmem>>, vector<1x128xf32>
    %15 = vector.shape_cast %14 : vector<1x128xf32> to vector<1x1x128xf32>
    %16 = vector.broadcast %15 : vector<1x1x128xf32> to vector<8x8x128xf32>
    %17 = arith.mulf %13, %16 : vector<8x8x128xf32>
    %c0_13 = arith.constant 0 : index
    %c0_14 = arith.constant 0 : index
    %18 = vector.load %arg4[%c0_13, %c0_14] : memref<1x128xf32, #tpu.memory_space<vmem>>, vector<1x128xf32>
    %19 = vector.shape_cast %18 : vector<1x128xf32> to vector<1x1x128xf32>
    %20 = vector.broadcast %19 : vector<1x1x128xf32> to vector<8x8x128xf32>
    %21 = arith.addf %17, %20 : vector<8x8x128xf32>
    %22 = arith.addf %21, %10 : vector<8x8x128xf32>
    %cst = arith.constant 0.000000e+00 : f32
    %23 = vector.broadcast %cst : f32 to vector<8x8x128xf32>
    %24 = arith.maximumf %22, %23 : vector<8x8x128xf32>
    %c0_15 = arith.constant 0 : index
    %c0_16 = arith.constant 0 : index
    %c0_17 = arith.constant 0 : index
    %c0_18 = arith.constant 0 : index
    %25 = vector.load %arg7[%c0_15, %c0_16, %c0_17, %c0_18] : memref<1x8x8x128xf32, #tpu.memory_space<vmem>>, vector<1x8x8x128xf32>
    %26 = vector.shape_cast %25 : vector<1x8x8x128xf32> to vector<8x8x128xf32>
    %27 = vector.shape_cast %24 : vector<8x8x128xf32> to vector<1x8x8x128xf32>
    tpu.vector_store %arg7[%c0_15, %c0_16, %c0_17, %c0_18], %27 {strides = array<i32>} : memref<1x8x8x128xf32, #tpu.memory_space<vmem>>, vector<1x8x8x128xf32>,
    return
  }
  func.func @transform_0(%arg0: i32) -> (i32, i32, i32, i32) {
    %c0_i32 = arith.constant 0 : i32
    %c0_i32_0 = arith.constant 0 : i32
    %c0_i32_1 = arith.constant 0 : i32
    %c0_i32_2 = arith.constant 0 : i32
    return %arg0, %c0_i32, %c0_i32_0, %c0_i32_1 : i32, i32, i32, i32
  }
  func.func @transform_1(%arg0: i32) -> (i32, i32, i32, i32) {
    %c0_i32 = arith.constant 0 : i32
    %c0_i32_0 = arith.constant 0 : i32
    %c0_i32_1 = arith.constant 0 : i32
    %c0_i32_2 = arith.constant 0 : i32
    return %arg0, %c0_i32, %c0_i32_0, %c0_i32_1 : i32, i32, i32, i32
  }
  func.func @transform_2(%arg0: i32) -> (i32, i32) {
    %c0_i32 = arith.constant 0 : i32
    %c0_i32_0 = arith.constant 0 : i32
    %c0_i32_1 = arith.constant 0 : i32
    return %c0_i32, %c0_i32_0 : i32, i32
  }
  func.func @transform_3(%arg0: i32) -> (i32, i32) {
    %c0_i32 = arith.constant 0 : i32
    %c0_i32_0 = arith.constant 0 : i32
    %c0_i32_1 = arith.constant 0 : i32
    return %c0_i32, %c0_i32_0 : i32, i32
  }
  func.func @transform_4(%arg0: i32) -> (i32, i32) {
    %c0_i32 = arith.constant 0 : i32
    %c0_i32_0 = arith.constant 0 : i32
    %c0_i32_1 = arith.constant 0 : i32
    return %c0_i32, %c0_i32_0 : i32, i32
  }
  func.func @transform_5(%arg0: i32) -> (i32, i32) {
    %c0_i32 = arith.constant 0 : i32
    %c0_i32_0 = arith.constant 0 : i32
    %c0_i32_1 = arith.constant 0 : i32
    return %c0_i32, %c0_i32_0 : i32, i32
  }
  func.func @transform_6(%arg0: i32) -> (i32, i32, i32, i32) {
    %c0_i32 = arith.constant 0 : i32
    %c0_i32_0 = arith.constant 0 : i32
    %c0_i32_1 = arith.constant 0 : i32
    %c0_i32_2 = arith.constant 0 : i32
    return %arg0, %c0_i32, %c0_i32_0, %c0_i32_1 : i32, i32, i32, i32
  }
}

module attributes {stable_mosaic.version = 11 : i64} {
  func.func @kernel(%arg0: i32, %arg1: memref<1x8x8x128xbf16, #tpu.memory_space<vmem>>, %arg2: memref<1x128xf32, #tpu.memory_space<vmem>>, %arg3: memref<1x128xf32, #tpu.memory_space<vmem>>, %arg4: memref<1152x128xbf16, #tpu.memory_space<vmem>>, %arg5: memref<1x8x8x128xbf16, #tpu.memory_space<vmem>>, %arg6: memref<1x2x128xf32, #tpu.memory_space<vmem>>, %arg7: memref<10x10x128xf32, #tpu.memory_space<vmem>>) attributes {dimension_semantics = [#tpu.dimension_semantics<parallel>], iteration_bounds = array<i64: 2>, scalar_prefetch = 0 : i64, scratch_operands = 1 : i64, tpu.core_type = #tpu.core_type<tc>, window_params = [{transform_indices = @transform_0, window_bounds = array<i64: 1, 8, 8, 128>}, {pipeline_mode = #tpu.pipeline_mode<synchronous>, transform_indices = @transform_1, window_bounds = array<i64: 1, 128>}, {pipeline_mode = #tpu.pipeline_mode<synchronous>, transform_indices = @transform_2, window_bounds = array<i64: 1, 128>}, {pipeline_mode = #tpu.pipeline_mode<synchronous>, transform_indices = @transform_3, window_bounds = array<i64: 1152, 128>}, {transform_indices = @transform_4, window_bounds = array<i64: 1, 8, 8, 128>}, {transform_indices = @transform_5, window_bounds = array<i64: 1, 2, 128>}]} {
    %c0 = arith.constant 0 : index
    %c0_0 = arith.constant 0 : index
    %c0_1 = arith.constant 0 : index
    %c0_2 = arith.constant 0 : index
    %0 = vector.load %arg1[%c0, %c0_0, %c0_1, %c0_2] : memref<1x8x8x128xbf16, #tpu.memory_space<vmem>>, vector<1x8x8x128xbf16>
    %1 = vector.shape_cast %0 : vector<1x8x8x128xbf16> to vector<8x8x128xbf16>
    %2 = arith.extf %1 : vector<8x8x128xbf16> to vector<8x8x128xf32>
    %c0_3 = arith.constant 0 : index
    %c0_4 = arith.constant 0 : index
    %3 = vector.load %arg2[%c0_3, %c0_4] : memref<1x128xf32, #tpu.memory_space<vmem>>, vector<1x128xf32>
    %4 = vector.shape_cast %3 : vector<1x128xf32> to vector<1x1x128xf32>
    %5 = vector.broadcast %4 : vector<1x1x128xf32> to vector<8x8x128xf32>
    %6 = arith.mulf %2, %5 : vector<8x8x128xf32>
    %c0_5 = arith.constant 0 : index
    %c0_6 = arith.constant 0 : index
    %7 = vector.load %arg3[%c0_5, %c0_6] : memref<1x128xf32, #tpu.memory_space<vmem>>, vector<1x128xf32>
    %8 = vector.shape_cast %7 : vector<1x128xf32> to vector<1x1x128xf32>
    %9 = vector.broadcast %8 : vector<1x1x128xf32> to vector<8x8x128xf32>
    %10 = arith.addf %6, %9 : vector<8x8x128xf32>
    %cst = arith.constant 0.000000e+00 : f32
    %11 = vector.broadcast %cst : f32 to vector<8x8x128xf32>
    %12 = arith.maximumf %10, %11 : vector<8x8x128xf32>
    %cst_7 = arith.constant 0.000000e+00 : f32
    %13 = vector.broadcast %cst_7 : f32 to vector<1x10x128xf32>
    %cst_8 = arith.constant 0.000000e+00 : f32
    %14 = vector.broadcast %cst_8 : f32 to vector<10x1x128xf32>
    %c0_9 = arith.constant 0 : index
    %c0_10 = arith.constant 0 : index
    %c0_11 = arith.constant 0 : index
    %15 = vector.load %arg7[%c0_9, %c0_10, %c0_11] : memref<10x10x128xf32, #tpu.memory_space<vmem>>, vector<1x10x128xf32>
    tpu.vector_store %arg7[%c0_9, %c0_10, %c0_11], %13 {strides = array<i32>} : memref<10x10x128xf32, #tpu.memory_space<vmem>>, vector<1x10x128xf32>,
    %c9 = arith.constant 9 : index
    %c0_12 = arith.constant 0 : index
    %c0_13 = arith.constant 0 : index
    %16 = vector.load %arg7[%c9, %c0_12, %c0_13] : memref<10x10x128xf32, #tpu.memory_space<vmem>>, vector<1x10x128xf32>
    tpu.vector_store %arg7[%c9, %c0_12, %c0_13], %13 {strides = array<i32>} : memref<10x10x128xf32, #tpu.memory_space<vmem>>, vector<1x10x128xf32>,
    %c0_14 = arith.constant 0 : index
    %c0_15 = arith.constant 0 : index
    %c0_16 = arith.constant 0 : index
    %17 = vector.load %arg7[%c0_14, %c0_15, %c0_16] : memref<10x10x128xf32, #tpu.memory_space<vmem>>, vector<10x1x128xf32>
    tpu.vector_store %arg7[%c0_14, %c0_15, %c0_16], %14 {strides = array<i32>} : memref<10x10x128xf32, #tpu.memory_space<vmem>>, vector<10x1x128xf32>,
    %c0_17 = arith.constant 0 : index
    %c9_18 = arith.constant 9 : index
    %c0_19 = arith.constant 0 : index
    %18 = vector.load %arg7[%c0_17, %c9_18, %c0_19] : memref<10x10x128xf32, #tpu.memory_space<vmem>>, vector<10x1x128xf32>
    tpu.vector_store %arg7[%c0_17, %c9_18, %c0_19], %14 {strides = array<i32>} : memref<10x10x128xf32, #tpu.memory_space<vmem>>, vector<10x1x128xf32>,
    %c1 = arith.constant 1 : index
    %c1_20 = arith.constant 1 : index
    %c0_21 = arith.constant 0 : index
    %19 = vector.load %arg7[%c1, %c1_20, %c0_21] : memref<10x10x128xf32, #tpu.memory_space<vmem>>, vector<8x8x128xf32>
    tpu.vector_store %arg7[%c1, %c1_20, %c0_21], %12 {strides = array<i32>} : memref<10x10x128xf32, #tpu.memory_space<vmem>>, vector<8x8x128xf32>,
    %c0_22 = arith.constant 0 : index
    %c0_23 = arith.constant 0 : index
    %c0_24 = arith.constant 0 : index
    %20 = vector.load %arg7[%c0_22, %c0_23, %c0_24] : memref<10x10x128xf32, #tpu.memory_space<vmem>>, vector<8x8x128xf32>
    %21 = vector.shape_cast %20 : vector<8x8x128xf32> to vector<64x128xf32>
    %22 = arith.truncf %21 : vector<64x128xf32> to vector<64x128xbf16>
    %c0_25 = arith.constant 0 : index
    %c0_26 = arith.constant 0 : index
    %23 = vector.load %arg4[%c0_25, %c0_26] : memref<1152x128xbf16, #tpu.memory_space<vmem>>, vector<128x128xbf16>
    %cst_27 = arith.constant dense<0.000000e+00> : vector<64x128xf32>
    %24 = tpu.matmul %22, %23, %cst_27 {dimension_numbers = #tpu.dot_dimension_numbers<[1], [0], [0], [1], [0, 0, 1, 1], [], []>} : vector<64x128xbf16>, vector<128x128xbf16>, vector<64x128xf32> -> vector<64x128xf32>
    %c0_28 = arith.constant 0 : index
    %c1_29 = arith.constant 1 : index
    %c0_30 = arith.constant 0 : index
    %25 = vector.load %arg7[%c0_28, %c1_29, %c0_30] : memref<10x10x128xf32, #tpu.memory_space<vmem>>, vector<8x8x128xf32>
    %26 = vector.shape_cast %25 : vector<8x8x128xf32> to vector<64x128xf32>
    %27 = arith.truncf %26 : vector<64x128xf32> to vector<64x128xbf16>
    %c128 = arith.constant 128 : index
    %c0_31 = arith.constant 0 : index
    %28 = vector.load %arg4[%c128, %c0_31] : memref<1152x128xbf16, #tpu.memory_space<vmem>>, vector<128x128xbf16>
    %cst_32 = arith.constant dense<0.000000e+00> : vector<64x128xf32>
    %29 = tpu.matmul %27, %28, %cst_32 {dimension_numbers = #tpu.dot_dimension_numbers<[1], [0], [0], [1], [0, 0, 1, 1], [], []>} : vector<64x128xbf16>, vector<128x128xbf16>, vector<64x128xf32> -> vector<64x128xf32>
    %30 = arith.addf %24, %29 : vector<64x128xf32>
    %c0_33 = arith.constant 0 : index
    %c2 = arith.constant 2 : index
    %c0_34 = arith.constant 0 : index
    %31 = vector.load %arg7[%c0_33, %c2, %c0_34] : memref<10x10x128xf32, #tpu.memory_space<vmem>>, vector<8x8x128xf32>
    %32 = vector.shape_cast %31 : vector<8x8x128xf32> to vector<64x128xf32>
    %33 = arith.truncf %32 : vector<64x128xf32> to vector<64x128xbf16>
    %c256 = arith.constant 256 : index
    %c0_35 = arith.constant 0 : index
    %34 = vector.load %arg4[%c256, %c0_35] : memref<1152x128xbf16, #tpu.memory_space<vmem>>, vector<128x128xbf16>
    %cst_36 = arith.constant dense<0.000000e+00> : vector<64x128xf32>
    %35 = tpu.matmul %33, %34, %cst_36 {dimension_numbers = #tpu.dot_dimension_numbers<[1], [0], [0], [1], [0, 0, 1, 1], [], []>} : vector<64x128xbf16>, vector<128x128xbf16>, vector<64x128xf32> -> vector<64x128xf32>
    %36 = arith.addf %30, %35 : vector<64x128xf32>
    %c1_37 = arith.constant 1 : index
    %c0_38 = arith.constant 0 : index
    %c0_39 = arith.constant 0 : index
    %37 = vector.load %arg7[%c1_37, %c0_38, %c0_39] : memref<10x10x128xf32, #tpu.memory_space<vmem>>, vector<8x8x128xf32>
    %38 = vector.shape_cast %37 : vector<8x8x128xf32> to vector<64x128xf32>
    %39 = arith.truncf %38 : vector<64x128xf32> to vector<64x128xbf16>
    %c384 = arith.constant 384 : index
    %c0_40 = arith.constant 0 : index
    %40 = vector.load %arg4[%c384, %c0_40] : memref<1152x128xbf16, #tpu.memory_space<vmem>>, vector<128x128xbf16>
    %cst_41 = arith.constant dense<0.000000e+00> : vector<64x128xf32>
    %41 = tpu.matmul %39, %40, %cst_41 {dimension_numbers = #tpu.dot_dimension_numbers<[1], [0], [0], [1], [0, 0, 1, 1], [], []>} : vector<64x128xbf16>, vector<128x128xbf16>, vector<64x128xf32> -> vector<64x128xf32>
    %42 = arith.addf %36, %41 : vector<64x128xf32>
    %c1_42 = arith.constant 1 : index
    %c1_43 = arith.constant 1 : index
    %c0_44 = arith.constant 0 : index
    %43 = vector.load %arg7[%c1_42, %c1_43, %c0_44] : memref<10x10x128xf32, #tpu.memory_space<vmem>>, vector<8x8x128xf32>
    %44 = vector.shape_cast %43 : vector<8x8x128xf32> to vector<64x128xf32>
    %45 = arith.truncf %44 : vector<64x128xf32> to vector<64x128xbf16>
    %c512 = arith.constant 512 : index
    %c0_45 = arith.constant 0 : index
    %46 = vector.load %arg4[%c512, %c0_45] : memref<1152x128xbf16, #tpu.memory_space<vmem>>, vector<128x128xbf16>
    %cst_46 = arith.constant dense<0.000000e+00> : vector<64x128xf32>
    %47 = tpu.matmul %45, %46, %cst_46 {dimension_numbers = #tpu.dot_dimension_numbers<[1], [0], [0], [1], [0, 0, 1, 1], [], []>} : vector<64x128xbf16>, vector<128x128xbf16>, vector<64x128xf32> -> vector<64x128xf32>
    %48 = arith.addf %42, %47 : vector<64x128xf32>
    %c1_47 = arith.constant 1 : index
    %c2_48 = arith.constant 2 : index
    %c0_49 = arith.constant 0 : index
    %49 = vector.load %arg7[%c1_47, %c2_48, %c0_49] : memref<10x10x128xf32, #tpu.memory_space<vmem>>, vector<8x8x128xf32>
    %50 = vector.shape_cast %49 : vector<8x8x128xf32> to vector<64x128xf32>
    %51 = arith.truncf %50 : vector<64x128xf32> to vector<64x128xbf16>
    %c640 = arith.constant 640 : index
    %c0_50 = arith.constant 0 : index
    %52 = vector.load %arg4[%c640, %c0_50] : memref<1152x128xbf16, #tpu.memory_space<vmem>>, vector<128x128xbf16>
    %cst_51 = arith.constant dense<0.000000e+00> : vector<64x128xf32>
    %53 = tpu.matmul %51, %52, %cst_51 {dimension_numbers = #tpu.dot_dimension_numbers<[1], [0], [0], [1], [0, 0, 1, 1], [], []>} : vector<64x128xbf16>, vector<128x128xbf16>, vector<64x128xf32> -> vector<64x128xf32>
    %54 = arith.addf %48, %53 : vector<64x128xf32>
    %c2_52 = arith.constant 2 : index
    %c0_53 = arith.constant 0 : index
    %c0_54 = arith.constant 0 : index
    %55 = vector.load %arg7[%c2_52, %c0_53, %c0_54] : memref<10x10x128xf32, #tpu.memory_space<vmem>>, vector<8x8x128xf32>
    %56 = vector.shape_cast %55 : vector<8x8x128xf32> to vector<64x128xf32>
    %57 = arith.truncf %56 : vector<64x128xf32> to vector<64x128xbf16>
    %c768 = arith.constant 768 : index
    %c0_55 = arith.constant 0 : index
    %58 = vector.load %arg4[%c768, %c0_55] : memref<1152x128xbf16, #tpu.memory_space<vmem>>, vector<128x128xbf16>
    %cst_56 = arith.constant dense<0.000000e+00> : vector<64x128xf32>
    %59 = tpu.matmul %57, %58, %cst_56 {dimension_numbers = #tpu.dot_dimension_numbers<[1], [0], [0], [1], [0, 0, 1, 1], [], []>} : vector<64x128xbf16>, vector<128x128xbf16>, vector<64x128xf32> -> vector<64x128xf32>
    %60 = arith.addf %54, %59 : vector<64x128xf32>
    %c2_57 = arith.constant 2 : index
    %c1_58 = arith.constant 1 : index
    %c0_59 = arith.constant 0 : index
    %61 = vector.load %arg7[%c2_57, %c1_58, %c0_59] : memref<10x10x128xf32, #tpu.memory_space<vmem>>, vector<8x8x128xf32>
    %62 = vector.shape_cast %61 : vector<8x8x128xf32> to vector<64x128xf32>
    %63 = arith.truncf %62 : vector<64x128xf32> to vector<64x128xbf16>
    %c896 = arith.constant 896 : index
    %c0_60 = arith.constant 0 : index
    %64 = vector.load %arg4[%c896, %c0_60] : memref<1152x128xbf16, #tpu.memory_space<vmem>>, vector<128x128xbf16>
    %cst_61 = arith.constant dense<0.000000e+00> : vector<64x128xf32>
    %65 = tpu.matmul %63, %64, %cst_61 {dimension_numbers = #tpu.dot_dimension_numbers<[1], [0], [0], [1], [0, 0, 1, 1], [], []>} : vector<64x128xbf16>, vector<128x128xbf16>, vector<64x128xf32> -> vector<64x128xf32>
    %66 = arith.addf %60, %65 : vector<64x128xf32>
    %c2_62 = arith.constant 2 : index
    %c2_63 = arith.constant 2 : index
    %c0_64 = arith.constant 0 : index
    %67 = vector.load %arg7[%c2_62, %c2_63, %c0_64] : memref<10x10x128xf32, #tpu.memory_space<vmem>>, vector<8x8x128xf32>
    %68 = vector.shape_cast %67 : vector<8x8x128xf32> to vector<64x128xf32>
    %69 = arith.truncf %68 : vector<64x128xf32> to vector<64x128xbf16>
    %c1024 = arith.constant 1024 : index
    %c0_65 = arith.constant 0 : index
    %70 = vector.load %arg4[%c1024, %c0_65] : memref<1152x128xbf16, #tpu.memory_space<vmem>>, vector<128x128xbf16>
    %cst_66 = arith.constant dense<0.000000e+00> : vector<64x128xf32>
    %71 = tpu.matmul %69, %70, %cst_66 {dimension_numbers = #tpu.dot_dimension_numbers<[1], [0], [0], [1], [0, 0, 1, 1], [], []>} : vector<64x128xbf16>, vector<128x128xbf16>, vector<64x128xf32> -> vector<64x128xf32>
    %72 = arith.addf %66, %71 : vector<64x128xf32>
    %73 = vector.shape_cast %72 : vector<64x128xf32> to vector<8x8x128xf32>
    %74 = arith.truncf %73 : vector<8x8x128xf32> to vector<8x8x128xbf16>
    %c0_67 = arith.constant 0 : index
    %c0_68 = arith.constant 0 : index
    %c0_69 = arith.constant 0 : index
    %c0_70 = arith.constant 0 : index
    %75 = vector.load %arg5[%c0_67, %c0_68, %c0_69, %c0_70] : memref<1x8x8x128xbf16, #tpu.memory_space<vmem>>, vector<1x8x8x128xbf16>
    %76 = vector.shape_cast %75 : vector<1x8x8x128xbf16> to vector<8x8x128xbf16>
    %77 = vector.shape_cast %74 : vector<8x8x128xbf16> to vector<1x8x8x128xbf16>
    tpu.vector_store %arg5[%c0_67, %c0_68, %c0_69, %c0_70], %77 {strides = array<i32>} : memref<1x8x8x128xbf16, #tpu.memory_space<vmem>>, vector<1x8x8x128xbf16>,
    %cst_71 = arith.constant dense<0.000000e+00> : vector<128xf32>
    %78 = vector.multi_reduction <add>, %72, %cst_71 [0] : vector<64x128xf32> to vector<128xf32>
    %79 = vector.shape_cast %78 : vector<128xf32> to vector<1x128xf32>
    %c0_72 = arith.constant 0 : index
    %c0_73 = arith.constant 0 : index
    %c0_74 = arith.constant 0 : index
    %80 = vector.load %arg6[%c0_72, %c0_73, %c0_74] : memref<1x2x128xf32, #tpu.memory_space<vmem>>, vector<1x1x128xf32>
    %81 = vector.shape_cast %80 : vector<1x1x128xf32> to vector<1x128xf32>
    %82 = vector.shape_cast %79 : vector<1x128xf32> to vector<1x1x128xf32>
    tpu.vector_store %arg6[%c0_72, %c0_73, %c0_74], %82 {strides = array<i32>} : memref<1x2x128xf32, #tpu.memory_space<vmem>>, vector<1x1x128xf32>,
    %83 = arith.mulf %72, %72 : vector<64x128xf32>
    %cst_75 = arith.constant dense<0.000000e+00> : vector<128xf32>
    %84 = vector.multi_reduction <add>, %83, %cst_75 [0] : vector<64x128xf32> to vector<128xf32>
    %85 = vector.shape_cast %84 : vector<128xf32> to vector<1x128xf32>
    %c0_76 = arith.constant 0 : index
    %c1_77 = arith.constant 1 : index
    %c0_78 = arith.constant 0 : index
    %86 = vector.load %arg6[%c0_76, %c1_77, %c0_78] : memref<1x2x128xf32, #tpu.memory_space<vmem>>, vector<1x1x128xf32>
    %87 = vector.shape_cast %86 : vector<1x1x128xf32> to vector<1x128xf32>
    %88 = vector.shape_cast %85 : vector<1x128xf32> to vector<1x1x128xf32>
    tpu.vector_store %arg6[%c0_76, %c1_77, %c0_78], %88 {strides = array<i32>} : memref<1x2x128xf32, #tpu.memory_space<vmem>>, vector<1x1x128xf32>,
    return
  }
  func.func @transform_0(%arg0: i32) -> (i32, i32, i32, i32) {
    %c0_i32 = arith.constant 0 : i32
    %c0_i32_0 = arith.constant 0 : i32
    %c0_i32_1 = arith.constant 0 : i32
    %c0_i32_2 = arith.constant 0 : i32
    return %arg0, %c0_i32, %c0_i32_0, %c0_i32_1 : i32, i32, i32, i32
  }
  func.func @transform_1(%arg0: i32) -> (i32, i32) {
    %c0_i32 = arith.constant 0 : i32
    %c0_i32_0 = arith.constant 0 : i32
    %c0_i32_1 = arith.constant 0 : i32
    return %c0_i32, %c0_i32_0 : i32, i32
  }
  func.func @transform_2(%arg0: i32) -> (i32, i32) {
    %c0_i32 = arith.constant 0 : i32
    %c0_i32_0 = arith.constant 0 : i32
    %c0_i32_1 = arith.constant 0 : i32
    return %c0_i32, %c0_i32_0 : i32, i32
  }
  func.func @transform_3(%arg0: i32) -> (i32, i32) {
    %c0_i32 = arith.constant 0 : i32
    %c0_i32_0 = arith.constant 0 : i32
    %c0_i32_1 = arith.constant 0 : i32
    return %c0_i32, %c0_i32_0 : i32, i32
  }
  func.func @transform_4(%arg0: i32) -> (i32, i32, i32, i32) {
    %c0_i32 = arith.constant 0 : i32
    %c0_i32_0 = arith.constant 0 : i32
    %c0_i32_1 = arith.constant 0 : i32
    %c0_i32_2 = arith.constant 0 : i32
    return %arg0, %c0_i32, %c0_i32_0, %c0_i32_1 : i32, i32, i32, i32
  }
  func.func @transform_5(%arg0: i32) -> (i32, i32, i32) {
    %c0_i32 = arith.constant 0 : i32
    %c0_i32_0 = arith.constant 0 : i32
    %c0_i32_1 = arith.constant 0 : i32
    return %arg0, %c0_i32, %c0_i32_0 : i32, i32, i32
  }
}

</mosaic_0001>

<llo_original>
// kernel: basic_block_forward.5
$region0: #{basic_block_forward.5}
  #allocation0 [shape = 'u32[]', space=smem, size = 0x4, offset = 0x4, fixed_abs, tag = 'smem constant byte address 0x4 - core index']
  #allocation1 [shape = 'u32[72,128]{1,0:T(1,128)}', space=vmem, size = 0x9000, scoped, tag = 'internal scratch']
  %s0 = inlined_call_operand.vmem [shape: bf16[2,8,8,128], index: 0, kind: input, shape index: {}]
  %s1 = inlined_call_operand.vmem [shape: bf16[2,8,8,128], index: 1, kind: input, shape index: {}]
  %s2 = inlined_call_operand.vmem [shape: f32[1,128], index: 2, kind: input, shape index: {}]
  %s3 = inlined_call_operand.vmem [shape: f32[1,128], index: 3, kind: input, shape index: {}]
  %s4 = inlined_call_operand.vmem [shape: f32[1,128], index: 4, kind: input, shape index: {}]
  %s5 = inlined_call_operand.vmem [shape: f32[1,128], index: 5, kind: input, shape index: {}]
  %s6 = inlined_call_operand.vmem [shape: f32[2,8,8,128], index: 6, kind: output, shape index: {}]
  %s7 = sld [smem:[#allocation0]]
  $region57: #{basic_block_forward.5} parent=0
    _
  %s9 = ssub.s32 1, %s7
  %s10 = scalar_select 0, %s9, %s7
  loop: start=0, step=1, limit=4
  $region2: #{basic_block_forward.5} parent=0 // loop_pre_header
    _
  $region3: #{basic_block_forward.5} parent=0 // loop_header
    %s12 = sphi 0, %s16
    %p13 = scmp.ge.s32.totalorder %s12, 4
    %s22 = sphi 0, %s24
    %s25 = sphi 0, %s22
    %s26 = sphi 0, %s25
    %s42 = sphi 0, %s26
    %s48 = sphi 0, %s50
    %s51 = sphi 0, %s48
    %s52 = sphi 0, %s51
    %s68 = sphi 0, %s52
    %s72 = sphi 0, %s72
    %s74 = sphi 0, %s72
    %s75 = sphi 0, %s74
    %s89 = sphi 0, %s75
    %s93 = sphi 0, %s93
    %s95 = sphi 0, %s93
    %s96 = sphi 0, %s95
    %s110 = sphi 0, %s96
    %s114 = sphi 0, %s114
    %s116 = sphi 0, %s114
    %s117 = sphi 0, %s116
    %s131 = sphi 0, %s117
    %s135 = sphi 0, %s135
    %s137 = sphi 0, %s135
    %s138 = sphi 0, %s137
    %s152 = sphi 0, %s138
    %s158 = sphi 0, %s160
    %s161 = sphi 0, %s158
    %s162 = sphi 0, %s161
    %s178 = sphi 0, %s162
  $region4: #{basic_block_forward.5} parent=0 // loop_header_branch
    %15 = sbr.rel (%p13) target = $region8
  $region5: #{basic_block_forward.5} parent=0 // loop_body
    %s17 = ssub.s32 %s12, 1
    %s18 = ssub.s32 %s12, 2
    %s19 = sadd.s32 %s12, 1
    %s20 = ssub.s32 %s12, %s19
    %p21 = scmp.eq.s32.totalorder %s20, 0
    %s23 = sadd.s32 %s22, 1
    %s24 = scalar_select %p21, %s22, %s23
    %p27 = pneg %p21
    %p28 = scmp.eq.s32.totalorder %s12, 1
    %p29 = por %p27, %p28
    %p30 = scmp.ne.s32.totalorder %s22, %s25
    %p31 = scmp.eq.s32.totalorder %s12, 0
    %p32 = por %p30, %p31
    %p33 = scmp.ne.s32.totalorder %s22, %s25
    %p34 = scmp.eq.s32.totalorder %s17, 1
    %p35 = por %p33, %p34
    %p36 = scmp.ne.s32.totalorder %s25, %s26
    %p37 = scmp.eq.s32.totalorder %s17, 0
    %p38 = por %p36, %p37
    %p39 = scmp.ne.s32.totalorder %s25, %s26
    %p40 = scmp.eq.s32.totalorder %s18, 1
    %p41 = por %p39, %p40
    %p43 = scmp.ne.s32.totalorder %s26, %s42
    %p44 = scmp.eq.s32.totalorder %s18, 0
    %p45 = por %p43, %p44
    %s46 = ssub.s32 %s12, %s19
    %p47 = scmp.eq.s32.totalorder %s46, 0
    %s49 = sadd.s32 %s48, 1
    %s50 = scalar_select %p47, %s48, %s49
    %p53 = pneg %p47
    %p54 = scmp.eq.s32.totalorder %s12, 1
    %p55 = por %p53, %p54
    %p56 = scmp.ne.s32.totalorder %s48, %s51
    %p57 = scmp.eq.s32.totalorder %s12, 0
    %p58 = por %p56, %p57
    %p59 = scmp.ne.s32.totalorder %s48, %s51
    %p60 = scmp.eq.s32.totalorder %s17, 1
    %p61 = por %p59, %p60
    %p62 = scmp.ne.s32.totalorder %s51, %s52
    %p63 = scmp.eq.s32.totalorder %s17, 0
    %p64 = por %p62, %p63
    %p65 = scmp.ne.s32.totalorder %s51, %s52
    %p66 = scmp.eq.s32.totalorder %s18, 1
    %p67 = por %p65, %p66
    %p69 = scmp.ne.s32.totalorder %s52, %s68
    %p70 = scmp.eq.s32.totalorder %s18, 0
    %p71 = por %p69, %p70
    %s73 = sadd.s32 %s72, 1
    %p76 = scmp.eq.s32.totalorder %s12, 1
    %p77 = scmp.ne.s32.totalorder %s72, %s74
    %p78 = scmp.eq.s32.totalorder %s12, 0
    %p79 = por %p77, %p78
    %p80 = scmp.ne.s32.totalorder %s72, %s74
    %p81 = scmp.eq.s32.totalorder %s17, 1
    %p82 = por %p80, %p81
    %p83 = scmp.ne.s32.totalorder %s74, %s75
    %p84 = scmp.eq.s32.totalorder %s17, 0
    %p85 = por %p83, %p84
    %p86 = scmp.ne.s32.totalorder %s74, %s75
    %p87 = scmp.eq.s32.totalorder %s18, 1
    %p88 = por %p86, %p87
    %p90 = scmp.ne.s32.totalorder %s75, %s89
    %p91 = scmp.eq.s32.totalorder %s18, 0
    %p92 = por %p90, %p91
    %s94 = sadd.s32 %s93, 1
    %p97 = scmp.eq.s32.totalorder %s12, 1
    %p98 = scmp.ne.s32.totalorder %s93, %s95
    %p99 = scmp.eq.s32.totalorder %s12, 0
    %p100 = por %p98, %p99
    %p101 = scmp.ne.s32.totalorder %s93, %s95
    %p102 = scmp.eq.s32.totalorder %s17, 1
    %p103 = por %p101, %p102
    %p104 = scmp.ne.s32.totalorder %s95, %s96
    %p105 = scmp.eq.s32.totalorder %s17, 0
    %p106 = por %p104, %p105
    %p107 = scmp.ne.s32.totalorder %s95, %s96
    %p108 = scmp.eq.s32.totalorder %s18, 1
    %p109 = por %p107, %p108
    %p111 = scmp.ne.s32.totalorder %s96, %s110
    %p112 = scmp.eq.s32.totalorder %s18, 0
    %p113 = por %p111, %p112
    %s115 = sadd.s32 %s114, 1
    %p118 = scmp.eq.s32.totalorder %s12, 1
    %p119 = scmp.ne.s32.totalorder %s114, %s116
    %p120 = scmp.eq.s32.totalorder %s12, 0
    %p121 = por %p119, %p120
    %p122 = scmp.ne.s32.totalorder %s114, %s116
    %p123 = scmp.eq.s32.totalorder %s17, 1
    %p124 = por %p122, %p123
    %p125 = scmp.ne.s32.totalorder %s116, %s117
    %p126 = scmp.eq.s32.totalorder %s17, 0
    %p127 = por %p125, %p126
    %p128 = scmp.ne.s32.totalorder %s116, %s117
    %p129 = scmp.eq.s32.totalorder %s18, 1
    %p130 = por %p128, %p129
    %p132 = scmp.ne.s32.totalorder %s117, %s131
    %p133 = scmp.eq.s32.totalorder %s18, 0
    %p134 = por %p132, %p133
    %s136 = sadd.s32 %s135, 1
    %p139 = scmp.eq.s32.totalorder %s12, 1
    %p140 = scmp.ne.s32.totalorder %s135, %s137
    %p141 = scmp.eq.s32.totalorder %s12, 0
    %p142 = por %p140, %p141
    %p143 = scmp.ne.s32.totalorder %s135, %s137
    %p144 = scmp.eq.s32.totalorder %s17, 1
    %p145 = por %p143, %p144
    %p146 = scmp.ne.s32.totalorder %s137, %s138
    %p147 = scmp.eq.s32.totalorder %s17, 0
    %p148 = por %p146, %p147
    %p149 = scmp.ne.s32.totalorder %s137, %s138
    %p150 = scmp.eq.s32.totalorder %s18, 1
    %p151 = por %p149, %p150
    %p153 = scmp.ne.s32.totalorder %s138, %s152
    %p154 = scmp.eq.s32.totalorder %s18, 0
    %p155 = por %p153, %p154
    %s156 = ssub.s32 %s12, %s19
    %p157 = scmp.eq.s32.totalorder %s156, 0
    %s159 = sadd.s32 %s158, 1
    %s160 = scalar_select %p157, %s158, %s159
    %p163 = pneg %p157
    %p164 = scmp.eq.s32.totalorder %s12, 1
    %p165 = por %p163, %p164
    %p166 = scmp.ne.s32.totalorder %s158, %s161
    %p167 = scmp.eq.s32.totalorder %s12, 0
    %p168 = por %p166, %p167
    %p169 = scmp.ne.s32.totalorder %s158, %s161
    %p170 = scmp.eq.s32.totalorder %s17, 1
    %p171 = por %p169, %p170
    %p172 = scmp.ne.s32.totalorder %s161, %s162
    %p173 = scmp.eq.s32.totalorder %s17, 0
    %p174 = por %p172, %p173
    %p175 = scmp.ne.s32.totalorder %s161, %s162
    %p176 = scmp.eq.s32.totalorder %s18, 1
    %p177 = por %p175, %p176
    %p179 = scmp.ne.s32.totalorder %s162, %s178
    %p180 = scmp.eq.s32.totalorder %s18, 0
    %p181 = por %p179, %p180
    %p182 = scmp.le.s32.totalorder 1, %s12
    %p183 = scmp.lt.s32.totalorder %s12, 3
    %p184 = pnand %p182, %p183
    %p185 = pneg %p184
    // Predicated region
    $region9: #{basic_block_forward.5} parent=5 // pred_check
      _
    $region10: #{basic_block_forward.5} parent=5 // pred_check_branch
      %187 = sbr.rel (%p184) target = $region12
    $region11: #{basic_block_forward.5} parent=5 // pred_region
      %s188 = ssub.s32 %s12, 1
      // Predicated region
      $region13: #{basic_block_forward.5} parent=11 // pred_check
        %p189 = pneg %p85
      $region14: #{basic_block_forward.5} parent=11 // pred_check_branch
        %191 = sbr.rel (%p189) target = $region16
      $region15: #{basic_block_forward.5} parent=11 // pred_region
        _
      $region16: #{basic_block_forward.5} parent=11 // pred_fallthru
        _
      // Predicated region
      $region17: #{basic_block_forward.5} parent=11 // pred_check
        %p192 = pneg %p106
      $region18: #{basic_block_forward.5} parent=11 // pred_check_branch
        %194 = sbr.rel (%p192) target = $region20
      $region19: #{basic_block_forward.5} parent=11 // pred_region
        _
      $region20: #{basic_block_forward.5} parent=11 // pred_fallthru
        _
      // Predicated region
      $region21: #{basic_block_forward.5} parent=11 // pred_check
        %p195 = pneg %p127
      $region22: #{basic_block_forward.5} parent=11 // pred_check_branch
        %197 = sbr.rel (%p195) target = $region24
      $region23: #{basic_block_forward.5} parent=11 // pred_region
        _
      $region24: #{basic_block_forward.5} parent=11 // pred_fallthru
        _
      // Predicated region
      $region25: #{basic_block_forward.5} parent=11 // pred_check
        %p198 = pneg %p148
      $region26: #{basic_block_forward.5} parent=11 // pred_check_branch
        %200 = sbr.rel (%p198) target = $region28
      $region27: #{basic_block_forward.5} parent=11 // pred_region
        _
      $region28: #{basic_block_forward.5} parent=11 // pred_fallthru
        _
    $region12: #{basic_block_forward.5} parent=5 // pred_fallthru
      _
    %p201 = scmp.lt.s32.totalorder %s12, 2
    // Predicated region
    $region29: #{basic_block_forward.5} parent=5 // pred_check
      %p202 = pneg %p201
    $region30: #{basic_block_forward.5} parent=5 // pred_check_branch
      %204 = sbr.rel (%p202) target = $region32
    $region31: #{basic_block_forward.5} parent=5 // pred_region
      // Predicated region
      $region33: #{basic_block_forward.5} parent=31 // pred_check
        %p205 = pneg %p32
      $region34: #{basic_block_forward.5} parent=31 // pred_check_branch
        %207 = sbr.rel (%p205) target = $region36
      $region35: #{basic_block_forward.5} parent=31 // pred_region
        %p208 = scmp.lt.s32.totalorder %s12, 1
        %s209 = scalar_select %p208, %s12, 1
        %s210 = smul.addr %s209, 8
        %s211 = smul.addr %s210, 4
        %s212 = scalar_lea.vmem %s0, %s211
      $region36: #{basic_block_forward.5} parent=31 // pred_fallthru
        _
      // Predicated region
      $region37: #{basic_block_forward.5} parent=31 // pred_check
        %p213 = pneg %p58
      $region38: #{basic_block_forward.5} parent=31 // pred_check_branch
        %215 = sbr.rel (%p213) target = $region40
      $region39: #{basic_block_forward.5} parent=31 // pred_region
        %p216 = scmp.lt.s32.totalorder %s12, 1
        %s217 = scalar_select %p216, %s12, 1
        %s218 = smul.addr %s217, 8
        %s219 = smul.addr %s218, 4
        %s220 = scalar_lea.vmem %s1, %s219
      $region40: #{basic_block_forward.5} parent=31 // pred_fallthru
        _
    $region32: #{basic_block_forward.5} parent=5 // pred_fallthru
      _
    %p221 = scmp.le.s32.totalorder 1, %s12
    %p222 = scmp.lt.s32.totalorder %s12, 3
    %p223 = pnand %p221, %p222
    %p224 = pneg %p223
    // Predicated region
    $region41: #{basic_block_forward.5} parent=5 // pred_check
      _
    $region42: #{basic_block_forward.5} parent=5 // pred_check_branch
      %226 = sbr.rel (%p223) target = $region44
    $region43: #{basic_block_forward.5} parent=5 // pred_region
      %s227 = ssub.s32 %s12, 1
      %p228 = scmp.lt.s32.totalorder %s17, 1
      %s229 = scalar_select %p228, %s17, 1
      %s230 = smul.addr %s229, 8
      %s231 = smul.addr %s230, 4
      %s232 = scalar_lea.vmem %s0, %s231
      %p233 = pneg %p38
      %p234 = pneg %p35
      %p235 = scmp.lt.s32.totalorder %s17, 1
      %s236 = scalar_select %p235, %s17, 1
      %s237 = smul.addr %s236, 8
      %s238 = smul.addr %s237, 4
      %s239 = scalar_lea.vmem %s1, %s238
      %p240 = pneg %p64
      %p241 = pneg %p61
      %p242 = pneg %p85
      %p243 = pneg %p82
      %p244 = pneg %p106
      %p245 = pneg %p103
      %p246 = pneg %p127
      %p247 = pneg %p124
      %p248 = pneg %p148
      %p249 = pneg %p145
      %p250 = pneg %p174
      %p251 = pneg %p171
      %p252 = scmp.lt.s32.totalorder %s17, 1
      %s253 = scalar_select %p252, %s17, 1
      %s254 = smul.addr %s253, 8
      %s255 = smul.addr %s254, 8
      %s256 = scalar_lea.vmem %s6, %s255
      %p257 = scmp.lt.s32.totalorder %s17, 1
      %s258 = scalar_select %p257, %s17, 1
      %s259 = smul.addr %s258, 8
      %s260 = smul.addr %s259, 4
      %s261 = scalar_lea.vmem %s0, %s260
      %p262 = scmp.lt.s32.totalorder %s17, 1
      %s263 = scalar_select %p262, %s17, 1
      %s264 = smul.addr %s263, 8
      %s265 = smul.addr %s264, 4
      %s266 = scalar_lea.vmem %s1, %s265
      %p267 = scmp.lt.s32.totalorder %s17, 1
      %s268 = scalar_select %p267, %s17, 1
      %s269 = smul.addr %s268, 8
      %s270 = smul.addr %s269, 8
      %s271 = scalar_lea.vmem %s6, %s270
      %v272 = vld [vmem:[%s266] sm:$0xf]
      %v273 = vld [vmem:[%s266 + $0x4] sm:$0xf]
      %v274 = vld [vmem:[%s266 + $0x8] sm:$0xf]
      %v275 = vld [vmem:[%s266 + $0xc] sm:$0xf]
      %v276 = vld [vmem:[%s266 + $0x10] sm:$0xf]
      %v277 = vld [vmem:[%s266 + $0x14] sm:$0xf]
      %v278 = vld [vmem:[%s266 + $0x18] sm:$0xf]
      %v279 = vld [vmem:[%s266 + $0x1c] sm:$0xf]
      %v280 = vunpack.c.l.bf16 %v272
      %v281 = vunpack.c.l.bf16 %v273
      %v282 = vunpack.c.l.bf16 %v274
      %v283 = vunpack.c.l.bf16 %v275
      %v284 = vunpack.c.l.bf16 %v276
      %v285 = vunpack.c.l.bf16 %v277
      %v286 = vunpack.c.l.bf16 %v278
      %v287 = vunpack.c.l.bf16 %v279
      %v288 = vld [vmem:[%s4] sm:$0x1]
      %v290 = vperm.slane %v288, 0
      %v292 = vmul.f32 %v280, %v290
      %v293 = vmul.f32 %v281, %v290
      %v294 = vmul.f32 %v282, %v290
      %v295 = vmul.f32 %v283, %v290
      %v296 = vmul.f32 %v284, %v290
      %v297 = vmul.f32 %v285, %v290
      %v298 = vmul.f32 %v286, %v290
      %v299 = vmul.f32 %v287, %v290
      %v300 = vld [vmem:[%s5] sm:$0x1]
      %v302 = vperm.slane %v300, 0
      %v304 = vadd.f32 %v292, %v302
      %v305 = vadd.f32 %v293, %v302
      %v306 = vadd.f32 %v294, %v302
      %v307 = vadd.f32 %v295, %v302
      %v308 = vadd.f32 %v296, %v302
      %v309 = vadd.f32 %v297, %v302
      %v310 = vadd.f32 %v298, %v302
      %v311 = vadd.f32 %v299, %v302
      %v312 = vld [vmem:[%s261] sm:$0xf]
      %v313 = vld [vmem:[%s261 + $0x4] sm:$0xf]
      %v314 = vld [vmem:[%s261 + $0x8] sm:$0xf]
      %v315 = vld [vmem:[%s261 + $0xc] sm:$0xf]
      %v316 = vld [vmem:[%s261 + $0x10] sm:$0xf]
      %v317 = vld [vmem:[%s261 + $0x14] sm:$0xf]
      %v318 = vld [vmem:[%s261 + $0x18] sm:$0xf]
      %v319 = vld [vmem:[%s261 + $0x1c] sm:$0xf]
      %v320 = vunpack.c.l.bf16 %v312
      %v321 = vunpack.c.l.bf16 %v313
      %v322 = vunpack.c.l.bf16 %v314
      %v323 = vunpack.c.l.bf16 %v315
      %v324 = vunpack.c.l.bf16 %v316
      %v325 = vunpack.c.l.bf16 %v317
      %v326 = vunpack.c.l.bf16 %v318
      %v327 = vunpack.c.l.bf16 %v319
      %v328 = vld [vmem:[%s2] sm:$0x1]
      %v330 = vperm.slane %v328, 0
      %v332 = vmul.f32 %v320, %v330
      %v333 = vmul.f32 %v321, %v330
      %v334 = vmul.f32 %v322, %v330
      %v335 = vmul.f32 %v323, %v330
      %v336 = vmul.f32 %v324, %v330
      %v337 = vmul.f32 %v325, %v330
      %v338 = vmul.f32 %v326, %v330
      %v339 = vmul.f32 %v327, %v330
      %v340 = vld [vmem:[%s3] sm:$0x1]
      %v342 = vperm.slane %v340, 0
      %v344 = vadd.f32 %v332, %v342
      %v345 = vadd.f32 %v333, %v342
      %v346 = vadd.f32 %v334, %v342
      %v347 = vadd.f32 %v335, %v342
      %v348 = vadd.f32 %v336, %v342
      %v349 = vadd.f32 %v337, %v342
      %v350 = vadd.f32 %v338, %v342
      %v351 = vadd.f32 %v339, %v342
      %v352 = vadd.f32 %v344, %v304
      %v353 = vadd.f32 %v345, %v305
      %v354 = vadd.f32 %v346, %v306
      %v355 = vadd.f32 %v347, %v307
      %v356 = vadd.f32 %v348, %v308
      %v357 = vadd.f32 %v349, %v309
      %v358 = vadd.f32 %v350, %v310
      %v359 = vadd.f32 %v351, %v311
      %v360 = vmax.f32 %v352, 0.0
      %v361 = vmax.f32 %v353, 0.0
      %v362 = vmax.f32 %v354, 0.0
      %v363 = vmax.f32 %v355, 0.0
      %v364 = vmax.f32 %v356, 0.0
      %v365 = vmax.f32 %v357, 0.0
      %v366 = vmax.f32 %v358, 0.0
      %v367 = vmax.f32 %v359, 0.0
      %368 = vst [vmem:[%s271] sm:$0xff] %v360
      %369 = vst [vmem:[%s271 + $0x8] sm:$0xff] %v361
      %370 = vst [vmem:[%s271 + $0x10] sm:$0xff] %v362
      %371 = vst [vmem:[%s271 + $0x18] sm:$0xff] %v363
      %372 = vst [vmem:[%s271 + $0x20] sm:$0xff] %v364
      %373 = vst [vmem:[%s271 + $0x28] sm:$0xff] %v365
      %374 = vst [vmem:[%s271 + $0x30] sm:$0xff] %v366
      %375 = vst [vmem:[%s271 + $0x38] sm:$0xff] %v367
      %p376 = scmp.lt.s32.totalorder %s17, 1
      %s377 = scalar_select %p376, %s17, 1
      %s378 = smul.addr %s377, 8
      %s379 = smul.addr %s378, 8
      %s380 = scalar_lea.vmem %s6, %s379
      // Predicated region
      $region45: #{basic_block_forward.5} parent=43 // pred_check
        %p381 = pneg %p171
      $region46: #{basic_block_forward.5} parent=43 // pred_check_branch
        %383 = sbr.rel (%p381) target = $region48
      $region47: #{basic_block_forward.5} parent=43 // pred_region
        _
      $region48: #{basic_block_forward.5} parent=43 // pred_fallthru
        _
    $region44: #{basic_block_forward.5} parent=5 // pred_fallthru
      _
    %p384 = scmp.le.s32.totalorder 2, %s12
    // Predicated region
    $region49: #{basic_block_forward.5} parent=5 // pred_check
      %p385 = pneg %p384
    $region50: #{basic_block_forward.5} parent=5 // pred_check_branch
      %387 = sbr.rel (%p385) target = $region52
    $region51: #{basic_block_forward.5} parent=5 // pred_region
      %s388 = ssub.s32 %s12, 2
      // Predicated region
      $region53: #{basic_block_forward.5} parent=51 // pred_check
        %p389 = pneg %p177
      $region54: #{basic_block_forward.5} parent=51 // pred_check_branch
        %391 = sbr.rel (%p389) target = $region56
      $region55: #{basic_block_forward.5} parent=51 // pred_region
        %p392 = scmp.lt.s32.totalorder %s18, 1
        %s393 = scalar_select %p392, %s18, 1
        %s394 = smul.addr %s393, 8
        %s395 = smul.addr %s394, 8
        %s396 = scalar_lea.vmem %s6, %s395
      $region56: #{basic_block_forward.5} parent=51 // pred_fallthru
        _
    $region52: #{basic_block_forward.5} parent=5 // pred_fallthru
      _
  $region6: #{basic_block_forward.5} parent=0 // loop_footer
    %s16 = sadd.s32 1, %s12
  $region7: #{basic_block_forward.5} parent=0 // loop_footer_branch
    %11 = sbr.rel target = $region3
  $region8: #{basic_block_forward.5} parent=0 // loop_exit
    _

// kernel: basic_block_forward.4
$region0: #{basic_block_forward.4}
  #allocation0 [shape = 'u32[]', space=smem, size = 0x4, offset = 0x4, fixed_abs, tag = 'smem constant byte address 0x4 - core index']
  #allocation1 [shape = 'u32[72,128]{1,0:T(1,128)}', space=vmem, size = 0x9000, scoped, tag = 'internal scratch']
  #allocation2 [shape = 'f32[10,10,128]{2,1,0:T(8,128)}', space=vmem, size = 0x14000, scoped, tag = 'scratch operand']
  %s0 = inlined_call_operand.vmem [shape: bf16[2,8,8,128], index: 0, kind: input, shape index: {}]
  %s1 = inlined_call_operand.vmem [shape: f32[1,128], index: 1, kind: input, shape index: {}]
  %s2 = inlined_call_operand.vmem [shape: f32[1,128], index: 2, kind: input, shape index: {}]
  %s3 = inlined_call_operand.vmem [shape: bf16[1152,128], index: 3, kind: input, shape index: {}]
  %s4 = inlined_call_operand.vmem [shape: bf16[2,8,8,128], index: 4, kind: output, shape index: {0}]
  %s5 = inlined_call_operand.vmem [shape: f32[2,2,128], index: 5, kind: output, shape index: {1}]
  %6 = xla_tuple %s4, %s5
  %s7 = sld [smem:[#allocation0]]
  $region57: #{basic_block_forward.4} parent=0
    _
  %s9 = ssub.s32 1, %s7
  %s10 = scalar_select 0, %s9, %s7
  loop: start=0, step=1, limit=4
  $region2: #{basic_block_forward.4} parent=0 // loop_pre_header
    _
  $region3: #{basic_block_forward.4} parent=0 // loop_header
    %s12 = sphi 0, %s16
    %p13 = scmp.ge.s32.totalorder %s12, 4
    %s22 = sphi 0, %s24
    %s25 = sphi 0, %s22
    %s26 = sphi 0, %s25
    %s42 = sphi 0, %s26
    %s46 = sphi 0, %s46
    %s48 = sphi 0, %s46
    %s49 = sphi 0, %s48
    %s63 = sphi 0, %s49
    %s67 = sphi 0, %s67
    %s69 = sphi 0, %s67
    %s70 = sphi 0, %s69
    %s84 = sphi 0, %s70
    %s88 = sphi 0, %s88
    %s90 = sphi 0, %s88
    %s91 = sphi 0, %s90
    %s105 = sphi 0, %s91
    %s111 = sphi 0, %s113
    %s114 = sphi 0, %s111
    %s115 = sphi 0, %s114
    %s131 = sphi 0, %s115
    %s137 = sphi 0, %s139
    %s140 = sphi 0, %s137
    %s141 = sphi 0, %s140
    %s157 = sphi 0, %s141
  $region4: #{basic_block_forward.4} parent=0 // loop_header_branch
    %15 = sbr.rel (%p13) target = $region8
  $region5: #{basic_block_forward.4} parent=0 // loop_body
    %s17 = ssub.s32 %s12, 1
    %s18 = ssub.s32 %s12, 2
    %s19 = sadd.s32 %s12, 1
    %s20 = ssub.s32 %s12, %s19
    %p21 = scmp.eq.s32.totalorder %s20, 0
    %s23 = sadd.s32 %s22, 1
    %s24 = scalar_select %p21, %s22, %s23
    %p27 = pneg %p21
    %p28 = scmp.eq.s32.totalorder %s12, 1
    %p29 = por %p27, %p28
    %p30 = scmp.ne.s32.totalorder %s22, %s25
    %p31 = scmp.eq.s32.totalorder %s12, 0
    %p32 = por %p30, %p31
    %p33 = scmp.ne.s32.totalorder %s22, %s25
    %p34 = scmp.eq.s32.totalorder %s17, 1
    %p35 = por %p33, %p34
    %p36 = scmp.ne.s32.totalorder %s25, %s26
    %p37 = scmp.eq.s32.totalorder %s17, 0
    %p38 = por %p36, %p37
    %p39 = scmp.ne.s32.totalorder %s25, %s26
    %p40 = scmp.eq.s32.totalorder %s18, 1
    %p41 = por %p39, %p40
    %p43 = scmp.ne.s32.totalorder %s26, %s42
    %p44 = scmp.eq.s32.totalorder %s18, 0
    %p45 = por %p43, %p44
    %s47 = sadd.s32 %s46, 1
    %p50 = scmp.eq.s32.totalorder %s12, 1
    %p51 = scmp.ne.s32.totalorder %s46, %s48
    %p52 = scmp.eq.s32.totalorder %s12, 0
    %p53 = por %p51, %p52
    %p54 = scmp.ne.s32.totalorder %s46, %s48
    %p55 = scmp.eq.s32.totalorder %s17, 1
    %p56 = por %p54, %p55
    %p57 = scmp.ne.s32.totalorder %s48, %s49
    %p58 = scmp.eq.s32.totalorder %s17, 0
    %p59 = por %p57, %p58
    %p60 = scmp.ne.s32.totalorder %s48, %s49
    %p61 = scmp.eq.s32.totalorder %s18, 1
    %p62 = por %p60, %p61
    %p64 = scmp.ne.s32.totalorder %s49, %s63
    %p65 = scmp.eq.s32.totalorder %s18, 0
    %p66 = por %p64, %p65
    %s68 = sadd.s32 %s67, 1
    %p71 = scmp.eq.s32.totalorder %s12, 1
    %p72 = scmp.ne.s32.totalorder %s67, %s69
    %p73 = scmp.eq.s32.totalorder %s12, 0
    %p74 = por %p72, %p73
    %p75 = scmp.ne.s32.totalorder %s67, %s69
    %p76 = scmp.eq.s32.totalorder %s17, 1
    %p77 = por %p75, %p76
    %p78 = scmp.ne.s32.totalorder %s69, %s70
    %p79 = scmp.eq.s32.totalorder %s17, 0
    %p80 = por %p78, %p79
    %p81 = scmp.ne.s32.totalorder %s69, %s70
    %p82 = scmp.eq.s32.totalorder %s18, 1
    %p83 = por %p81, %p82
    %p85 = scmp.ne.s32.totalorder %s70, %s84
    %p86 = scmp.eq.s32.totalorder %s18, 0
    %p87 = por %p85, %p86
    %s89 = sadd.s32 %s88, 1
    %p92 = scmp.eq.s32.totalorder %s12, 1
    %p93 = scmp.ne.s32.totalorder %s88, %s90
    %p94 = scmp.eq.s32.totalorder %s12, 0
    %p95 = por %p93, %p94
    %p96 = scmp.ne.s32.totalorder %s88, %s90
    %p97 = scmp.eq.s32.totalorder %s17, 1
    %p98 = por %p96, %p97
    %p99 = scmp.ne.s32.totalorder %s90, %s91
    %p100 = scmp.eq.s32.totalorder %s17, 0
    %p101 = por %p99, %p100
    %p102 = scmp.ne.s32.totalorder %s90, %s91
    %p103 = scmp.eq.s32.totalorder %s18, 1
    %p104 = por %p102, %p103
    %p106 = scmp.ne.s32.totalorder %s91, %s105
    %p107 = scmp.eq.s32.totalorder %s18, 0
    %p108 = por %p106, %p107
    %s109 = ssub.s32 %s12, %s19
    %p110 = scmp.eq.s32.totalorder %s109, 0
    %s112 = sadd.s32 %s111, 1
    %s113 = scalar_select %p110, %s111, %s112
    %p116 = pneg %p110
    %p117 = scmp.eq.s32.totalorder %s12, 1
    %p118 = por %p116, %p117
    %p119 = scmp.ne.s32.totalorder %s111, %s114
    %p120 = scmp.eq.s32.totalorder %s12, 0
    %p121 = por %p119, %p120
    %p122 = scmp.ne.s32.totalorder %s111, %s114
    %p123 = scmp.eq.s32.totalorder %s17, 1
    %p124 = por %p122, %p123
    %p125 = scmp.ne.s32.totalorder %s114, %s115
    %p126 = scmp.eq.s32.totalorder %s17, 0
    %p127 = por %p125, %p126
    %p128 = scmp.ne.s32.totalorder %s114, %s115
    %p129 = scmp.eq.s32.totalorder %s18, 1
    %p130 = por %p128, %p129
    %p132 = scmp.ne.s32.totalorder %s115, %s131
    %p133 = scmp.eq.s32.totalorder %s18, 0
    %p134 = por %p132, %p133
    %s135 = ssub.s32 %s12, %s19
    %p136 = scmp.eq.s32.totalorder %s135, 0
    %s138 = sadd.s32 %s137, 1
    %s139 = scalar_select %p136, %s137, %s138
    %p142 = pneg %p136
    %p143 = scmp.eq.s32.totalorder %s12, 1
    %p144 = por %p142, %p143
    %p145 = scmp.ne.s32.totalorder %s137, %s140
    %p146 = scmp.eq.s32.totalorder %s12, 0
    %p147 = por %p145, %p146
    %p148 = scmp.ne.s32.totalorder %s137, %s140
    %p149 = scmp.eq.s32.totalorder %s17, 1
    %p150 = por %p148, %p149
    %p151 = scmp.ne.s32.totalorder %s140, %s141
    %p152 = scmp.eq.s32.totalorder %s17, 0
    %p153 = por %p151, %p152
    %p154 = scmp.ne.s32.totalorder %s140, %s141
    %p155 = scmp.eq.s32.totalorder %s18, 1
    %p156 = por %p154, %p155
    %p158 = scmp.ne.s32.totalorder %s141, %s157
    %p159 = scmp.eq.s32.totalorder %s18, 0
    %p160 = por %p158, %p159
    %p161 = scmp.le.s32.totalorder 1, %s12
    %p162 = scmp.lt.s32.totalorder %s12, 3
    %p163 = pnand %p161, %p162
    %p164 = pneg %p163
    // Predicated region
    $region9: #{basic_block_forward.4} parent=5 // pred_check
      _
    $region10: #{basic_block_forward.4} parent=5 // pred_check_branch
      %166 = sbr.rel (%p163) target = $region12
    $region11: #{basic_block_forward.4} parent=5 // pred_region
      %s167 = ssub.s32 %s12, 1
      // Predicated region
      $region13: #{basic_block_forward.4} parent=11 // pred_check
        %p168 = pneg %p59
      $region14: #{basic_block_forward.4} parent=11 // pred_check_branch
        %170 = sbr.rel (%p168) target = $region16
      $region15: #{basic_block_forward.4} parent=11 // pred_region
        _
      $region16: #{basic_block_forward.4} parent=11 // pred_fallthru
        _
      // Predicated region
      $region17: #{basic_block_forward.4} parent=11 // pred_check
        %p171 = pneg %p80
      $region18: #{basic_block_forward.4} parent=11 // pred_check_branch
        %173 = sbr.rel (%p171) target = $region20
      $region19: #{basic_block_forward.4} parent=11 // pred_region
        _
      $region20: #{basic_block_forward.4} parent=11 // pred_fallthru
        _
      // Predicated region
      $region21: #{basic_block_forward.4} parent=11 // pred_check
        %p174 = pneg %p101
      $region22: #{basic_block_forward.4} parent=11 // pred_check_branch
        %176 = sbr.rel (%p174) target = $region24
      $region23: #{basic_block_forward.4} parent=11 // pred_region
        _
      $region24: #{basic_block_forward.4} parent=11 // pred_fallthru
        _
    $region12: #{basic_block_forward.4} parent=5 // pred_fallthru
      _
    %p177 = scmp.lt.s32.totalorder %s12, 2
    // Predicated region
    $region25: #{basic_block_forward.4} parent=5 // pred_check
      %p178 = pneg %p177
    $region26: #{basic_block_forward.4} parent=5 // pred_check_branch
      %180 = sbr.rel (%p178) target = $region28
    $region27: #{basic_block_forward.4} parent=5 // pred_region
      // Predicated region
      $region29: #{basic_block_forward.4} parent=27 // pred_check
        %p181 = pneg %p32
      $region30: #{basic_block_forward.4} parent=27 // pred_check_branch
        %183 = sbr.rel (%p181) target = $region32
      $region31: #{basic_block_forward.4} parent=27 // pred_region
        %p184 = scmp.lt.s32.totalorder %s12, 1
        %s185 = scalar_select %p184, %s12, 1
        %s186 = smul.addr %s185, 8
        %s187 = smul.addr %s186, 4
        %s188 = scalar_lea.vmem %s0, %s187
      $region32: #{basic_block_forward.4} parent=27 // pred_fallthru
        _
    $region28: #{basic_block_forward.4} parent=5 // pred_fallthru
      _
    %p189 = scmp.le.s32.totalorder 1, %s12
    %p190 = scmp.lt.s32.totalorder %s12, 3
    %p191 = pnand %p189, %p190
    %p192 = pneg %p191
    // Predicated region
    $region33: #{basic_block_forward.4} parent=5 // pred_check
      _
    $region34: #{basic_block_forward.4} parent=5 // pred_check_branch
      %194 = sbr.rel (%p191) target = $region36
    $region35: #{basic_block_forward.4} parent=5 // pred_region
      %s195 = ssub.s32 %s12, 1
      %p196 = scmp.lt.s32.totalorder %s17, 1
      %s197 = scalar_select %p196, %s17, 1
      %s198 = smul.addr %s197, 8
      %s199 = smul.addr %s198, 4
      %s200 = scalar_lea.vmem %s0, %s199
      %p201 = pneg %p38
      %p202 = pneg %p35
      %p203 = pneg %p59
      %p204 = pneg %p56
      %p205 = pneg %p80
      %p206 = pneg %p77
      %p207 = pneg %p101
      %p208 = pneg %p98
      %p209 = pneg %p127
      %p210 = pneg %p124
      %p211 = scmp.lt.s32.totalorder %s17, 1
      %s212 = scalar_select %p211, %s17, 1
      %s213 = smul.addr %s212, 8
      %s214 = smul.addr %s213, 4
      %s215 = scalar_lea.vmem %s4, %s214
      %p216 = pneg %p153
      %p217 = pneg %p150
      %p218 = scmp.lt.s32.totalorder %s17, 1
      %s219 = scalar_select %p218, %s17, 1
      %s220 = smul.addr %s219, 2
      %s221 = scalar_lea.vmem %s5, %s220
      %p222 = scmp.lt.s32.totalorder %s17, 1
      %s223 = scalar_select %p222, %s17, 1
      %s224 = smul.addr %s223, 8
      %s225 = smul.addr %s224, 4
      %s226 = scalar_lea.vmem %s0, %s225
      %p227 = scmp.lt.s32.totalorder %s17, 1
      %s228 = scalar_select %p227, %s17, 1
      %s229 = smul.addr %s228, 8
      %s230 = smul.addr %s229, 4
      %s231 = scalar_lea.vmem %s4, %s230
      %p232 = scmp.lt.s32.totalorder %s17, 1
      %s233 = scalar_select %p232, %s17, 1
      %s234 = smul.addr %s233, 2
      %s235 = scalar_lea.vmem %s5, %s234
      %v236 = vld [vmem:[%s226] sm:$0xf]
      %v237 = vld [vmem:[%s226 + $0x4] sm:$0xf]
      %v238 = vld [vmem:[%s226 + $0x8] sm:$0xf]
      %v239 = vld [vmem:[%s226 + $0xc] sm:$0xf]
      %v240 = vld [vmem:[%s226 + $0x10] sm:$0xf]
      %v241 = vld [vmem:[%s226 + $0x14] sm:$0xf]
      %v242 = vld [vmem:[%s226 + $0x18] sm:$0xf]
      %v243 = vld [vmem:[%s226 + $0x1c] sm:$0xf]
      %v244 = vunpack.c.l.bf16 %v236
      %v245 = vunpack.c.l.bf16 %v237
      %v246 = vunpack.c.l.bf16 %v238
      %v247 = vunpack.c.l.bf16 %v239
      %v248 = vunpack.c.l.bf16 %v240
      %v249 = vunpack.c.l.bf16 %v241
      %v250 = vunpack.c.l.bf16 %v242
      %v251 = vunpack.c.l.bf16 %v243
      %v252 = vld [vmem:[%s1] sm:$0x1]
      %v254 = vperm.slane %v252, 0
      %v256 = vmul.f32 %v244, %v254
      %v257 = vmul.f32 %v245, %v254
      %v258 = vmul.f32 %v246, %v254
      %v259 = vmul.f32 %v247, %v254
      %v260 = vmul.f32 %v248, %v254
      %v261 = vmul.f32 %v249, %v254
      %v262 = vmul.f32 %v250, %v254
      %v263 = vmul.f32 %v251, %v254
      %v264 = vld [vmem:[%s2] sm:$0x1]
      %v266 = vperm.slane %v264, 0
      %v268 = vadd.f32 %v256, %v266
      %v269 = vadd.f32 %v257, %v266
      %v270 = vadd.f32 %v258, %v266
      %v271 = vadd.f32 %v259, %v266
      %v272 = vadd.f32 %v260, %v266
      %v273 = vadd.f32 %v261, %v266
      %v274 = vadd.f32 %v262, %v266
      %v275 = vadd.f32 %v263, %v266
      %v276 = vmax.f32 %v268, 0.0
      %v277 = vmax.f32 %v269, 0.0
      %v278 = vmax.f32 %v270, 0.0
      %v279 = vmax.f32 %v271, 0.0
      %v280 = vmax.f32 %v272, 0.0
      %v281 = vmax.f32 %v273, 0.0
      %v282 = vmax.f32 %v274, 0.0
      %v283 = vmax.f32 %v275, 0.0
      %284 = vst [vmem:[#allocation2] sm:$0xff] 0.0
      %285 = vst [vmem:[#allocation2 + $0x8] sm:$0x3] 0.0
      %s286 = scalar_lea.vmem [#allocation2], 144
      %287 = vst [vmem:[%s286] sm:$0xff] 0.0
      %288 = vst [vmem:[%s286 + $0x8] sm:$0x3] 0.0
      %289 = vst [vmem:[#allocation2] sm:$0x1] 0.0
      %290 = vst [vmem:[#allocation2 + $0x10] sm:$0x1] 0.0
      %291 = vst [vmem:[#allocation2 + $0x20] sm:$0x1] 0.0
      %292 = vst [vmem:[#allocation2 + $0x30] sm:$0x1] 0.0
      %293 = vst [vmem:[#allocation2 + $0x40] sm:$0x1] 0.0
      %294 = vst [vmem:[#allocation2 + $0x50] sm:$0x1] 0.0
      %295 = vst [vmem:[#allocation2 + $0x60] sm:$0x1] 0.0
      %296 = vst [vmem:[#allocation2 + $0x70] sm:$0x1] 0.0
      %297 = vst [vmem:[#allocation2 + $0x80] sm:$0x1] 0.0
      %298 = vst [vmem:[#allocation2 + $0x90] sm:$0x1] 0.0
      %299 = vst [vmem:[#allocation2 + $0x9] sm:$0x1] 0.0
      %300 = vst [vmem:[#allocation2 + $0x19] sm:$0x1] 0.0
      %301 = vst [vmem:[#allocation2 + $0x29] sm:$0x1] 0.0
      %302 = vst [vmem:[#allocation2 + $0x39] sm:$0x1] 0.0
      %303 = vst [vmem:[#allocation2 + $0x49] sm:$0x1] 0.0
      %304 = vst [vmem:[#allocation2 + $0x59] sm:$0x1] 0.0
      %305 = vst [vmem:[#allocation2 + $0x69] sm:$0x1] 0.0
      %306 = vst [vmem:[#allocation2 + $0x79] sm:$0x1] 0.0
      %307 = vst [vmem:[#allocation2 + $0x89] sm:$0x1] 0.0
      %308 = vst [vmem:[#allocation2 + $0x99] sm:$0x1] 0.0
      %s309 = scalar_lea.vmem [#allocation2], 16
      %310 = vst [vmem:[%s309 + $0x1] sm:$0xff] %v276
      %311 = vst [vmem:[%s309 + $0x11] sm:$0xff] %v277
      %312 = vst [vmem:[%s309 + $0x21] sm:$0xff] %v278
      %313 = vst [vmem:[%s309 + $0x31] sm:$0xff] %v279
      %314 = vst [vmem:[%s309 + $0x41] sm:$0xff] %v280
      %315 = vst [vmem:[%s309 + $0x51] sm:$0xff] %v281
      %316 = vst [vmem:[%s309 + $0x61] sm:$0xff] %v282
      %317 = vst [vmem:[%s309 + $0x71] sm:$0xff] %v283
      %v318 = vld [vmem:[#allocation2] sm:$0xff]
      %v319 = vld [vmem:[#allocation2 + $0x10] sm:$0xff]
      %v320 = vld [vmem:[#allocation2 + $0x20] sm:$0xff]
      %v321 = vld [vmem:[#allocation2 + $0x30] sm:$0xff]
      %v322 = vld [vmem:[#allocation2 + $0x40] sm:$0xff]
      %v323 = vld [vmem:[#allocation2 + $0x50] sm:$0xff]
      %v324 = vld [vmem:[#allocation2 + $0x60] sm:$0xff]
      %v325 = vld [vmem:[#allocation2 + $0x70] sm:$0xff]
      %v326 = vpack.c.bf16 %v319, %v318
      %v327 = vpack.c.bf16 %v321, %v320
      %v328 = vpack.c.bf16 %v323, %v322
      %v329 = vpack.c.bf16 %v325, %v324
      %v330 = vld [vmem:[%s3] sm:$0xf]
      %v331 = vld [vmem:[%s3 + $0x4] sm:$0xf]
      %v332 = vld [vmem:[%s3 + $0x8] sm:$0xf]
      %v333 = vld [vmem:[%s3 + $0xc] sm:$0xf]
      %v334 = vld [vmem:[%s3 + $0x10] sm:$0xf]
      %v335 = vld [vmem:[%s3 + $0x14] sm:$0xf]
      %v336 = vld [vmem:[%s3 + $0x18] sm:$0xf]
      %v337 = vld [vmem:[%s3 + $0x1c] sm:$0xf]
      %v338 = vld [vmem:[%s3 + $0x20] sm:$0xf]
      %v339 = vld [vmem:[%s3 + $0x24] sm:$0xf]
      %v340 = vld [vmem:[%s3 + $0x28] sm:$0xf]
      %v341 = vld [vmem:[%s3 + $0x2c] sm:$0xf]
      %v342 = vld [vmem:[%s3 + $0x30] sm:$0xf]
      %v343 = vld [vmem:[%s3 + $0x34] sm:$0xf]
      %v344 = vld [vmem:[%s3 + $0x38] sm:$0xf]
      %v345 = vld [vmem:[%s3 + $0x3c] sm:$0xf]
      %v346 = vld [vmem:[#allocation2 + $0x1] sm:$0xff]
      %v347 = vld [vmem:[#allocation2 + $0x11] sm:$0xff]
      %v348 = vld [vmem:[#allocation2 + $0x21] sm:$0xff]
      %v349 = vld [vmem:[#allocation2 + $0x31] sm:$0xff]
      %v350 = vld [vmem:[#allocation2 + $0x41] sm:$0xff]
      %v351 = vld [vmem:[#allocation2 + $0x51] sm:$0xff]
      %v352 = vld [vmem:[#allocation2 + $0x61] sm:$0xff]
      %v353 = vld [vmem:[#allocation2 + $0x71] sm:$0xff]
      %v354 = vpack.c.bf16 %v347, %v346
      %v355 = vpack.c.bf16 %v349, %v348
      %v356 = vpack.c.bf16 %v351, %v350
      %v357 = vpack.c.bf16 %v353, %v352
      %v358 = vld [vmem:[%s3 + $0x40] sm:$0xf]
      %v359 = vld [vmem:[%s3 + $0x44] sm:$0xf]
      %v360 = vld [vmem:[%s3 + $0x48] sm:$0xf]
      %v361 = vld [vmem:[%s3 + $0x4c] sm:$0xf]
      %v362 = vld [vmem:[%s3 + $0x50] sm:$0xf]
      %v363 = vld [vmem:[%s3 + $0x54] sm:$0xf]
      %v364 = vld [vmem:[%s3 + $0x58] sm:$0xf]
      %v365 = vld [vmem:[%s3 + $0x5c] sm:$0xf]
      %v366 = vld [vmem:[%s3 + $0x60] sm:$0xf]
      %v367 = vld [vmem:[%s3 + $0x64] sm:$0xf]
      %v368 = vld [vmem:[%s3 + $0x68] sm:$0xf]
      %v369 = vld [vmem:[%s3 + $0x6c] sm:$0xf]
      %v370 = vld [vmem:[%s3 + $0x70] sm:$0xf]
      %v371 = vld [vmem:[%s3 + $0x74] sm:$0xf]
      %v372 = vld [vmem:[%s3 + $0x78] sm:$0xf]
      %v373 = vld [vmem:[%s3 + $0x7c] sm:$0xf]
      %v390 = vunpack.c.l.b16 %v358
      %v391 = vunpack.c.l.b16 %v359
      %v392 = vunpack.c.l.b16 %v360
      %v393 = vunpack.c.l.b16 %v361
      %v394 = vunpack.c.l.b16 %v362
      %v395 = vunpack.c.l.b16 %v363
      %v396 = vunpack.c.l.b16 %v364
      %v397 = vunpack.c.l.b16 %v365
      %v398 = vunpack.c.l.b16 %v366
      %v399 = vunpack.c.l.b16 %v367
      %v400 = vunpack.c.l.b16 %v368
      %v401 = vunpack.c.l.b16 %v369
      %v402 = vunpack.c.l.b16 %v370
      %v403 = vunpack.c.l.b16 %v371
      %v404 = vunpack.c.l.b16 %v372
      %v405 = vunpack.c.l.b16 %v373
      %v406 = vpack.c.b16 %v391, %v390
      %v407 = vpack.c.b16 %v393, %v392
      %v408 = vpack.c.b16 %v395, %v394
      %v409 = vpack.c.b16 %v397, %v396
      %v410 = vpack.c.b16 %v399, %v398
      %v411 = vpack.c.b16 %v401, %v400
      %v412 = vpack.c.b16 %v403, %v402
      %v413 = vpack.c.b16 %v405, %v404
      %422 = vmatpush.bf16.msra.mxu0 %v413
      %423 = vmatpush.bf16.msra.mxu0 %v412
      %424 = vmatpush.bf16.msra.mxu0 %v411
      %425 = vmatpush.bf16.msra.mxu0 %v410
      %426 = vmatpush.bf16.msra.mxu0 %v409
      %427 = vmatpush.bf16.msra.mxu0 %v408
      %428 = vmatpush.bf16.msra.mxu0 %v407
      %429 = vmatpush.bf16.msra.mxu0 %v406
      %430 = vmatmul.bf16.gmra.mxu0 %v354
      %v431 = vpop.f32.mrf.mxu0
      %v432 = vadd.f32 0.0, %v431
      %v433 = vpop.f32.mrf.mxu0
      %v434 = vadd.f32 0.0, %v433
      %435 = vmatmul.bf16.gmra.mxu0 %v355
      %v436 = vpop.f32.mrf.mxu0
      %v437 = vadd.f32 0.0, %v436
      %v438 = vpop.f32.mrf.mxu0
      %v439 = vadd.f32 0.0, %v438
      %440 = vmatmul.bf16.gmra.mxu0 %v356
      %v441 = vpop.f32.mrf.mxu0
      %v442 = vadd.f32 0.0, %v441
      %v443 = vpop.f32.mrf.mxu0
      %v444 = vadd.f32 0.0, %v443
      %445 = vmatmul.bf16.gmra.mxu0 %v357
      %v446 = vpop.f32.mrf.mxu0
      %v447 = vadd.f32 0.0, %v446
      %v448 = vpop.f32.mrf.mxu0
      %v449 = vadd.f32 0.0, %v448
      %450 = vdwg.mxu0
      %v467 = vunpack.c.l.b16 %v330
      %v468 = vunpack.c.l.b16 %v331
      %v469 = vunpack.c.l.b16 %v332
      %v470 = vunpack.c.l.b16 %v333
      %v471 = vunpack.c.l.b16 %v334
      %v472 = vunpack.c.l.b16 %v335
      %v473 = vunpack.c.l.b16 %v336
      %v474 = vunpack.c.l.b16 %v337
      %v475 = vunpack.c.l.b16 %v338
      %v476 = vunpack.c.l.b16 %v339
      %v477 = vunpack.c.l.b16 %v340
      %v478 = vunpack.c.l.b16 %v341
      %v479 = vunpack.c.l.b16 %v342
      %v480 = vunpack.c.l.b16 %v343
      %v481 = vunpack.c.l.b16 %v344
      %v482 = vunpack.c.l.b16 %v345
      %v483 = vpack.c.b16 %v468, %v467
      %v484 = vpack.c.b16 %v470, %v469
      %v485 = vpack.c.b16 %v472, %v471
      %v486 = vpack.c.b16 %v474, %v473
      %v487 = vpack.c.b16 %v476, %v475
      %v488 = vpack.c.b16 %v478, %v477
      %v489 = vpack.c.b16 %v480, %v479
      %v490 = vpack.c.b16 %v482, %v481
      %499 = vmatpush.bf16.msra.mxu0 %v490
      %500 = vmatpush.bf16.msra.mxu0 %v489
      %501 = vmatpush.bf16.msra.mxu0 %v488
      %502 = vmatpush.bf16.msra.mxu0 %v487
      %503 = vmatpush.bf16.msra.mxu0 %v486
      %504 = vmatpush.bf16.msra.mxu0 %v485
      %505 = vmatpush.bf16.msra.mxu0 %v484
      %506 = vmatpush.bf16.msra.mxu0 %v483
      %507 = vmatmul.bf16.gmra.mxu0 %v326
      %v508 = vpop.f32.mrf.mxu0
      %v509 = vadd.f32 %v432, %v508
      %v510 = vpop.f32.mrf.mxu0
      %v511 = vadd.f32 %v434, %v510
      %512 = vmatmul.bf16.gmra.mxu0 %v327
      %v513 = vpop.f32.mrf.mxu0
      %v514 = vadd.f32 %v437, %v513
      %v515 = vpop.f32.mrf.mxu0
      %v516 = vadd.f32 %v439, %v515
      %517 = vmatmul.bf16.gmra.mxu0 %v328
      %v518 = vpop.f32.mrf.mxu0
      %v519 = vadd.f32 %v442, %v518
      %v520 = vpop.f32.mrf.mxu0
      %v521 = vadd.f32 %v444, %v520
      %522 = vmatmul.bf16.gmra.mxu0 %v329
      %v523 = vpop.f32.mrf.mxu0
      %v524 = vadd.f32 %v447, %v523
      %v525 = vpop.f32.mrf.mxu0
      %v526 = vadd.f32 %v449, %v525
      %527 = vdwg.mxu0
      %v528 = vld [vmem:[#allocation2 + $0x2] sm:$0xff]
      %v529 = vld [vmem:[#allocation2 + $0x12] sm:$0xff]
      %v530 = vld [vmem:[#allocation2 + $0x22] sm:$0xff]
      %v531 = vld [vmem:[#allocation2 + $0x32] sm:$0xff]
      %v532 = vld [vmem:[#allocation2 + $0x42] sm:$0xff]
      %v533 = vld [vmem:[#allocation2 + $0x52] sm:$0xff]
      %v534 = vld [vmem:[#allocation2 + $0x62] sm:$0xff]
      %v535 = vld [vmem:[#allocation2 + $0x72] sm:$0xff]
      %v536 = vpack.c.bf16 %v529, %v528
      %v537 = vpack.c.bf16 %v531, %v530
      %v538 = vpack.c.bf16 %v533, %v532
      %v539 = vpack.c.bf16 %v535, %v534
      %v540 = vld [vmem:[%s3 + $0x80] sm:$0xf]
      %v541 = vld [vmem:[%s3 + $0x84] sm:$0xf]
      %v542 = vld [vmem:[%s3 + $0x88] sm:$0xf]
      %v543 = vld [vmem:[%s3 + $0x8c] sm:$0xf]
      %v544 = vld [vmem:[%s3 + $0x90] sm:$0xf]
      %v545 = vld [vmem:[%s3 + $0x94] sm:$0xf]
      %v546 = vld [vmem:[%s3 + $0x98] sm:$0xf]
      %v547 = vld [vmem:[%s3 + $0x9c] sm:$0xf]
      %v548 = vld [vmem:[%s3 + $0xa0] sm:$0xf]
      %v549 = vld [vmem:[%s3 + $0xa4] sm:$0xf]
      %v550 = vld [vmem:[%s3 + $0xa8] sm:$0xf]
      %v551 = vld [vmem:[%s3 + $0xac] sm:$0xf]
      %v552 = vld [vmem:[%s3 + $0xb0] sm:$0xf]
      %v553 = vld [vmem:[%s3 + $0xb4] sm:$0xf]
      %v554 = vld [vmem:[%s3 + $0xb8] sm:$0xf]
      %v555 = vld [vmem:[%s3 + $0xbc] sm:$0xf]
      %v572 = vunpack.c.l.b16 %v540
      %v573 = vunpack.c.l.b16 %v541
      %v574 = vunpack.c.l.b16 %v542
      %v575 = vunpack.c.l.b16 %v543
      %v576 = vunpack.c.l.b16 %v544
      %v577 = vunpack.c.l.b16 %v545
      %v578 = vunpack.c.l.b16 %v546
      %v579 = vunpack.c.l.b16 %v547
      %v580 = vunpack.c.l.b16 %v548
      %v581 = vunpack.c.l.b16 %v549
      %v582 = vunpack.c.l.b16 %v550
      %v583 = vunpack.c.l.b16 %v551
      %v584 = vunpack.c.l.b16 %v552
      %v585 = vunpack.c.l.b16 %v553
      %v586 = vunpack.c.l.b16 %v554
      %v587 = vunpack.c.l.b16 %v555
      %v588 = vpack.c.b16 %v573, %v572
      %v589 = vpack.c.b16 %v575, %v574
      %v590 = vpack.c.b16 %v577, %v576
      %v591 = vpack.c.b16 %v579, %v578
      %v592 = vpack.c.b16 %v581, %v580
      %v593 = vpack.c.b16 %v583, %v582
      %v594 = vpack.c.b16 %v585, %v584
      %v595 = vpack.c.b16 %v587, %v586
      %604 = vmatpush.bf16.msra.mxu0 %v595
      %605 = vmatpush.bf16.msra.mxu0 %v594
      %606 = vmatpush.bf16.msra.mxu0 %v593
      %607 = vmatpush.bf16.msra.mxu0 %v592
      %608 = vmatpush.bf16.msra.mxu0 %v591
      %609 = vmatpush.bf16.msra.mxu0 %v590
      %610 = vmatpush.bf16.msra.mxu0 %v589
      %611 = vmatpush.bf16.msra.mxu0 %v588
      %612 = vmatmul.bf16.gmra.mxu0 %v536
      %v613 = vpop.f32.mrf.mxu0
      %v614 = vadd.f32 0.0, %v613
      %v615 = vpop.f32.mrf.mxu0
      %v616 = vadd.f32 0.0, %v615
      %617 = vmatmul.bf16.gmra.mxu0 %v537
      %v618 = vpop.f32.mrf.mxu0
      %v619 = vadd.f32 0.0, %v618
      %v620 = vpop.f32.mrf.mxu0
      %v621 = vadd.f32 0.0, %v620
      %622 = vmatmul.bf16.gmra.mxu0 %v538
      %v623 = vpop.f32.mrf.mxu0
      %v624 = vadd.f32 0.0, %v623
      %v625 = vpop.f32.mrf.mxu0
      %v626 = vadd.f32 0.0, %v625
      %627 = vmatmul.bf16.gmra.mxu0 %v539
      %v628 = vpop.f32.mrf.mxu0
      %v629 = vadd.f32 0.0, %v628
      %v630 = vpop.f32.mrf.mxu0
      %v631 = vadd.f32 0.0, %v630
      %632 = vdwg.mxu0
      %v633 = vadd.f32 %v509, %v614
      %v634 = vadd.f32 %v511, %v616
      %v635 = vadd.f32 %v514, %v619
      %v636 = vadd.f32 %v516, %v621
      %v637 = vadd.f32 %v519, %v624
      %v638 = vadd.f32 %v521, %v626
      %v639 = vadd.f32 %v524, %v629
      %v640 = vadd.f32 %v526, %v631
      %v641 = vld [vmem:[%s309] sm:$0xff]
      %v642 = vld [vmem:[%s309 + $0x10] sm:$0xff]
      %v643 = vld [vmem:[%s309 + $0x20] sm:$0xff]
      %v644 = vld [vmem:[%s309 + $0x30] sm:$0xff]
      %v645 = vld [vmem:[%s309 + $0x40] sm:$0xff]
      %v646 = vld [vmem:[%s309 + $0x50] sm:$0xff]
      %v647 = vld [vmem:[%s309 + $0x60] sm:$0xff]
      %v648 = vld [vmem:[%s309 + $0x70] sm:$0xff]
      %v649 = vpack.c.bf16 %v642, %v641
      %v650 = vpack.c.bf16 %v644, %v643
      %v651 = vpack.c.bf16 %v646, %v645
      %v652 = vpack.c.bf16 %v648, %v647
      %v653 = vld [vmem:[%s3 + $0xc0] sm:$0xf]
      %v654 = vld [vmem:[%s3 + $0xc4] sm:$0xf]
      %v655 = vld [vmem:[%s3 + $0xc8] sm:$0xf]
      %v656 = vld [vmem:[%s3 + $0xcc] sm:$0xf]
      %v657 = vld [vmem:[%s3 + $0xd0] sm:$0xf]
      %v658 = vld [vmem:[%s3 + $0xd4] sm:$0xf]
      %v659 = vld [vmem:[%s3 + $0xd8] sm:$0xf]
      %v660 = vld [vmem:[%s3 + $0xdc] sm:$0xf]
      %v661 = vld [vmem:[%s3 + $0xe0] sm:$0xf]
      %v662 = vld [vmem:[%s3 + $0xe4] sm:$0xf]
      %v663 = vld [vmem:[%s3 + $0xe8] sm:$0xf]
      %v664 = vld [vmem:[%s3 + $0xec] sm:$0xf]
      %v665 = vld [vmem:[%s3 + $0xf0] sm:$0xf]
      %v666 = vld [vmem:[%s3 + $0xf4] sm:$0xf]
      %v667 = vld [vmem:[%s3 + $0xf8] sm:$0xf]
      %v668 = vld [vmem:[%s3 + $0xfc] sm:$0xf]
      %v685 = vunpack.c.l.b16 %v653
      %v686 = vunpack.c.l.b16 %v654
      %v687 = vunpack.c.l.b16 %v655
      %v688 = vunpack.c.l.b16 %v656
      %v689 = vunpack.c.l.b16 %v657
      %v690 = vunpack.c.l.b16 %v658
      %v691 = vunpack.c.l.b16 %v659
      %v692 = vunpack.c.l.b16 %v660
      %v693 = vunpack.c.l.b16 %v661
      %v694 = vunpack.c.l.b16 %v662
      %v695 = vunpack.c.l.b16 %v663
      %v696 = vunpack.c.l.b16 %v664
      %v697 = vunpack.c.l.b16 %v665
      %v698 = vunpack.c.l.b16 %v666
      %v699 = vunpack.c.l.b16 %v667
      %v700 = vunpack.c.l.b16 %v668
      %v701 = vpack.c.b16 %v686, %v685
      %v702 = vpack.c.b16 %v688, %v687
      %v703 = vpack.c.b16 %v690, %v689
      %v704 = vpack.c.b16 %v692, %v691
      %v705 = vpack.c.b16 %v694, %v693
      %v706 = vpack.c.b16 %v696, %v695
      %v707 = vpack.c.b16 %v698, %v697
      %v708 = vpack.c.b16 %v700, %v699
      %717 = vmatpush.bf16.msra.mxu0 %v708
      %718 = vmatpush.bf16.msra.mxu0 %v707
      %719 = vmatpush.bf16.msra.mxu0 %v706
      %720 = vmatpush.bf16.msra.mxu0 %v705
      %721 = vmatpush.bf16.msra.mxu0 %v704
      %722 = vmatpush.bf16.msra.mxu0 %v703
      %723 = vmatpush.bf16.msra.mxu0 %v702
      %724 = vmatpush.bf16.msra.mxu0 %v701
      %725 = vmatmul.bf16.gmra.mxu0 %v649
      %v726 = vpop.f32.mrf.mxu0
      %v727 = vadd.f32 0.0, %v726
      %v728 = vpop.f32.mrf.mxu0
      %v729 = vadd.f32 0.0, %v728
      %730 = vmatmul.bf16.gmra.mxu0 %v650
      %v731 = vpop.f32.mrf.mxu0
      %v732 = vadd.f32 0.0, %v731
      %v733 = vpop.f32.mrf.mxu0
      %v734 = vadd.f32 0.0, %v733
      %735 = vmatmul.bf16.gmra.mxu0 %v651
      %v736 = vpop.f32.mrf.mxu0
      %v737 = vadd.f32 0.0, %v736
      %v738 = vpop.f32.mrf.mxu0
      %v739 = vadd.f32 0.0, %v738
      %740 = vmatmul.bf16.gmra.mxu0 %v652
      %v741 = vpop.f32.mrf.mxu0
      %v742 = vadd.f32 0.0, %v741
      %v743 = vpop.f32.mrf.mxu0
      %v744 = vadd.f32 0.0, %v743
      %745 = vdwg.mxu0
      %v746 = vadd.f32 %v633, %v727
      %v747 = vadd.f32 %v634, %v729
      %v748 = vadd.f32 %v635, %v732
      %v749 = vadd.f32 %v636, %v734
      %v750 = vadd.f32 %v637, %v737
      %v751 = vadd.f32 %v638, %v739
      %v752 = vadd.f32 %v639, %v742
      %v753 = vadd.f32 %v640, %v744
      %v754 = vld [vmem:[%s309 + $0x1] sm:$0xff]
      %v755 = vld [vmem:[%s309 + $0x11] sm:$0xff]
      %v756 = vld [vmem:[%s309 + $0x21] sm:$0xff]
      %v757 = vld [vmem:[%s309 + $0x31] sm:$0xff]
      %v758 = vld [vmem:[%s309 + $0x41] sm:$0xff]
      %v759 = vld [vmem:[%s309 + $0x51] sm:$0xff]
      %v760 = vld [vmem:[%s309 + $0x61] sm:$0xff]
      %v761 = vld [vmem:[%s309 + $0x71] sm:$0xff]
      %v762 = vpack.c.bf16 %v755, %v754
      %v763 = vpack.c.bf16 %v757, %v756
      %v764 = vpack.c.bf16 %v759, %v758
      %v765 = vpack.c.bf16 %v761, %v760
      %v766 = vld [vmem:[%s3 + $0x100] sm:$0xf]
      %v767 = vld [vmem:[%s3 + $0x104] sm:$0xf]
      %v768 = vld [vmem:[%s3 + $0x108] sm:$0xf]
      %v769 = vld [vmem:[%s3 + $0x10c] sm:$0xf]
      %v770 = vld [vmem:[%s3 + $0x110] sm:$0xf]
      %v771 = vld [vmem:[%s3 + $0x114] sm:$0xf]
      %v772 = vld [vmem:[%s3 + $0x118] sm:$0xf]
      %v773 = vld [vmem:[%s3 + $0x11c] sm:$0xf]
      %v774 = vld [vmem:[%s3 + $0x120] sm:$0xf]
      %v775 = vld [vmem:[%s3 + $0x124] sm:$0xf]
      %v776 = vld [vmem:[%s3 + $0x128] sm:$0xf]
      %v777 = vld [vmem:[%s3 + $0x12c] sm:$0xf]
      %v778 = vld [vmem:[%s3 + $0x130] sm:$0xf]
      %v779 = vld [vmem:[%s3 + $0x134] sm:$0xf]
      %v780 = vld [vmem:[%s3 + $0x138] sm:$0xf]
      %v781 = vld [vmem:[%s3 + $0x13c] sm:$0xf]
      %v798 = vunpack.c.l.b16 %v766
      %v799 = vunpack.c.l.b16 %v767
      %v800 = vunpack.c.l.b16 %v768
      %v801 = vunpack.c.l.b16 %v769
      %v802 = vunpack.c.l.b16 %v770
      %v803 = vunpack.c.l.b16 %v771
      %v804 = vunpack.c.l.b16 %v772
      %v805 = vunpack.c.l.b16 %v773
      %v806 = vunpack.c.l.b16 %v774
      %v807 = vunpack.c.l.b16 %v775
      %v808 = vunpack.c.l.b16 %v776
      %v809 = vunpack.c.l.b16 %v777
      %v810 = vunpack.c.l.b16 %v778
      %v811 = vunpack.c.l.b16 %v779
      %v812 = vunpack.c.l.b16 %v780
      %v813 = vunpack.c.l.b16 %v781
      %v814 = vpack.c.b16 %v799, %v798
      %v815 = vpack.c.b16 %v801, %v800
      %v816 = vpack.c.b16 %v803, %v802
      %v817 = vpack.c.b16 %v805, %v804
      %v818 = vpack.c.b16 %v807, %v806
      %v819 = vpack.c.b16 %v809, %v808
      %v820 = vpack.c.b16 %v811, %v810
      %v821 = vpack.c.b16 %v813, %v812
      %830 = vmatpush.bf16.msra.mxu0 %v821
      %831 = vmatpush.bf16.msra.mxu0 %v820
      %832 = vmatpush.bf16.msra.mxu0 %v819
      %833 = vmatpush.bf16.msra.mxu0 %v818
      %834 = vmatpush.bf16.msra.mxu0 %v817
      %835 = vmatpush.bf16.msra.mxu0 %v816
      %836 = vmatpush.bf16.msra.mxu0 %v815
      %837 = vmatpush.bf16.msra.mxu0 %v814
      %838 = vmatmul.bf16.gmra.mxu0 %v762
      %v839 = vpop.f32.mrf.mxu0
      %v840 = vadd.f32 0.0, %v839
      %v841 = vpop.f32.mrf.mxu0
      %v842 = vadd.f32 0.0, %v841
      %843 = vmatmul.bf16.gmra.mxu0 %v763
      %v844 = vpop.f32.mrf.mxu0
      %v845 = vadd.f32 0.0, %v844
      %v846 = vpop.f32.mrf.mxu0
      %v847 = vadd.f32 0.0, %v846
      %848 = vmatmul.bf16.gmra.mxu0 %v764
      %v849 = vpop.f32.mrf.mxu0
      %v850 = vadd.f32 0.0, %v849
      %v851 = vpop.f32.mrf.mxu0
      %v852 = vadd.f32 0.0, %v851
      %853 = vmatmul.bf16.gmra.mxu0 %v765
      %v854 = vpop.f32.mrf.mxu0
      %v855 = vadd.f32 0.0, %v854
      %v856 = vpop.f32.mrf.mxu0
      %v857 = vadd.f32 0.0, %v856
      %858 = vdwg.mxu0
      %v859 = vadd.f32 %v746, %v840
      %v860 = vadd.f32 %v747, %v842
      %v861 = vadd.f32 %v748, %v845
      %v862 = vadd.f32 %v749, %v847
      %v863 = vadd.f32 %v750, %v850
      %v864 = vadd.f32 %v751, %v852
      %v865 = vadd.f32 %v752, %v855
      %v866 = vadd.f32 %v753, %v857
      %v867 = vld [vmem:[%s309 + $0x2] sm:$0xff]
      %v868 = vld [vmem:[%s309 + $0x12] sm:$0xff]
      %v869 = vld [vmem:[%s309 + $0x22] sm:$0xff]
      %v870 = vld [vmem:[%s309 + $0x32] sm:$0xff]
      %v871 = vld [vmem:[%s309 + $0x42] sm:$0xff]
      %v872 = vld [vmem:[%s309 + $0x52] sm:$0xff]
      %v873 = vld [vmem:[%s309 + $0x62] sm:$0xff]
      %v874 = vld [vmem:[%s309 + $0x72] sm:$0xff]
      %v875 = vpack.c.bf16 %v868, %v867
      %v876 = vpack.c.bf16 %v870, %v869
      %v877 = vpack.c.bf16 %v872, %v871
      %v878 = vpack.c.bf16 %v874, %v873
      %v879 = vld [vmem:[%s3 + $0x140] sm:$0xf]
      %v880 = vld [vmem:[%s3 + $0x144] sm:$0xf]
      %v881 = vld [vmem:[%s3 + $0x148] sm:$0xf]
      %v882 = vld [vmem:[%s3 + $0x14c] sm:$0xf]
      %v883 = vld [vmem:[%s3 + $0x150] sm:$0xf]
      %v884 = vld [vmem:[%s3 + $0x154] sm:$0xf]
      %v885 = vld [vmem:[%s3 + $0x158] sm:$0xf]
      %v886 = vld [vmem:[%s3 + $0x15c] sm:$0xf]
      %v887 = vld [vmem:[%s3 + $0x160] sm:$0xf]
      %v888 = vld [vmem:[%s3 + $0x164] sm:$0xf]
      %v889 = vld [vmem:[%s3 + $0x168] sm:$0xf]
      %v890 = vld [vmem:[%s3 + $0x16c] sm:$0xf]
      %v891 = vld [vmem:[%s3 + $0x170] sm:$0xf]
      %v892 = vld [vmem:[%s3 + $0x174] sm:$0xf]
      %v893 = vld [vmem:[%s3 + $0x178] sm:$0xf]
      %v894 = vld [vmem:[%s3 + $0x17c] sm:$0xf]
      %v911 = vunpack.c.l.b16 %v879
      %v912 = vunpack.c.l.b16 %v880
      %v913 = vunpack.c.l.b16 %v881
      %v914 = vunpack.c.l.b16 %v882
      %v915 = vunpack.c.l.b16 %v883
      %v916 = vunpack.c.l.b16 %v884
      %v917 = vunpack.c.l.b16 %v885
      %v918 = vunpack.c.l.b16 %v886
      %v919 = vunpack.c.l.b16 %v887
      %v920 = vunpack.c.l.b16 %v888
      %v921 = vunpack.c.l.b16 %v889
      %v922 = vunpack.c.l.b16 %v890
      %v923 = vunpack.c.l.b16 %v891
      %v924 = vunpack.c.l.b16 %v892
      %v925 = vunpack.c.l.b16 %v893
      %v926 = vunpack.c.l.b16 %v894
      %v927 = vpack.c.b16 %v912, %v911
      %v928 = vpack.c.b16 %v914, %v913
      %v929 = vpack.c.b16 %v916, %v915
      %v930 = vpack.c.b16 %v918, %v917
      %v931 = vpack.c.b16 %v920, %v919
      %v932 = vpack.c.b16 %v922, %v921
      %v933 = vpack.c.b16 %v924, %v923
      %v934 = vpack.c.b16 %v926, %v925
      %943 = vmatpush.bf16.msra.mxu0 %v934
      %944 = vmatpush.bf16.msra.mxu0 %v933
      %945 = vmatpush.bf16.msra.mxu0 %v932
      %946 = vmatpush.bf16.msra.mxu0 %v931
      %947 = vmatpush.bf16.msra.mxu0 %v930
      %948 = vmatpush.bf16.msra.mxu0 %v929
      %949 = vmatpush.bf16.msra.mxu0 %v928
      %950 = vmatpush.bf16.msra.mxu0 %v927
      %951 = vmatmul.bf16.gmra.mxu0 %v875
      %v952 = vpop.f32.mrf.mxu0
      %v953 = vadd.f32 0.0, %v952
      %v954 = vpop.f32.mrf.mxu0
      %v955 = vadd.f32 0.0, %v954
      %956 = vmatmul.bf16.gmra.mxu0 %v876
      %v957 = vpop.f32.mrf.mxu0
      %v958 = vadd.f32 0.0, %v957
      %v959 = vpop.f32.mrf.mxu0
      %v960 = vadd.f32 0.0, %v959
      %961 = vmatmul.bf16.gmra.mxu0 %v877
      %v962 = vpop.f32.mrf.mxu0
      %v963 = vadd.f32 0.0, %v962
      %v964 = vpop.f32.mrf.mxu0
      %v965 = vadd.f32 0.0, %v964
      %966 = vmatmul.bf16.gmra.mxu0 %v878
      %v967 = vpop.f32.mrf.mxu0
      %v968 = vadd.f32 0.0, %v967
      %v969 = vpop.f32.mrf.mxu0
      %v970 = vadd.f32 0.0, %v969
      %971 = vdwg.mxu0
      %v972 = vadd.f32 %v859, %v953
      %v973 = vadd.f32 %v860, %v955
      %v974 = vadd.f32 %v861, %v958
      %v975 = vadd.f32 %v862, %v960
      %v976 = vadd.f32 %v863, %v963
      %v977 = vadd.f32 %v864, %v965
      %v978 = vadd.f32 %v865, %v968
      %v979 = vadd.f32 %v866, %v970
      %s980 = scalar_lea.vmem [#allocation2], 32
      %v981 = vld [vmem:[%s980] sm:$0xff]
      %v982 = vld [vmem:[%s980 + $0x10] sm:$0xff]
      %v983 = vld [vmem:[%s980 + $0x20] sm:$0xff]
      %v984 = vld [vmem:[%s980 + $0x30] sm:$0xff]
      %v985 = vld [vmem:[%s980 + $0x40] sm:$0xff]
      %v986 = vld [vmem:[%s980 + $0x50] sm:$0xff]
      %v987 = vld [vmem:[%s980 + $0x60] sm:$0xff]
      %v988 = vld [vmem:[%s980 + $0x70] sm:$0xff]
      %v989 = vpack.c.bf16 %v982, %v981
      %v990 = vpack.c.bf16 %v984, %v983
      %v991 = vpack.c.bf16 %v986, %v985
      %v992 = vpack.c.bf16 %v988, %v987
      %v993 = vld [vmem:[%s3 + $0x180] sm:$0xf]
      %v994 = vld [vmem:[%s3 + $0x184] sm:$0xf]
      %v995 = vld [vmem:[%s3 + $0x188] sm:$0xf]
      %v996 = vld [vmem:[%s3 + $0x18c] sm:$0xf]
      %v997 = vld [vmem:[%s3 + $0x190] sm:$0xf]
      %v998 = vld [vmem:[%s3 + $0x194] sm:$0xf]
      %v999 = vld [vmem:[%s3 + $0x198] sm:$0xf]
      %v1000 = vld [vmem:[%s3 + $0x19c] sm:$0xf]
      %v1001 = vld [vmem:[%s3 + $0x1a0] sm:$0xf]
      %v1002 = vld [vmem:[%s3 + $0x1a4] sm:$0xf]
      %v1003 = vld [vmem:[%s3 + $0x1a8] sm:$0xf]
      %v1004 = vld [vmem:[%s3 + $0x1ac] sm:$0xf]
      %v1005 = vld [vmem:[%s3 + $0x1b0] sm:$0xf]
      %v1006 = vld [vmem:[%s3 + $0x1b4] sm:$0xf]
      %v1007 = vld [vmem:[%s3 + $0x1b8] sm:$0xf]
      %v1008 = vld [vmem:[%s3 + $0x1bc] sm:$0xf]
      %v1025 = vunpack.c.l.b16 %v993
      %v1026 = vunpack.c.l.b16 %v994
      %v1027 = vunpack.c.l.b16 %v995
      %v1028 = vunpack.c.l.b16 %v996
      %v1029 = vunpack.c.l.b16 %v997
      %v1030 = vunpack.c.l.b16 %v998
      %v1031 = vunpack.c.l.b16 %v999
      %v1032 = vunpack.c.l.b16 %v1000
      %v1033 = vunpack.c.l.b16 %v1001
      %v1034 = vunpack.c.l.b16 %v1002
      %v1035 = vunpack.c.l.b16 %v1003
      %v1036 = vunpack.c.l.b16 %v1004
      %v1037 = vunpack.c.l.b16 %v1005
      %v1038 = vunpack.c.l.b16 %v1006
      %v1039 = vunpack.c.l.b16 %v1007
      %v1040 = vunpack.c.l.b16 %v1008
      %v1041 = vpack.c.b16 %v1026, %v1025
      %v1042 = vpack.c.b16 %v1028, %v1027
      %v1043 = vpack.c.b16 %v1030, %v1029
      %v1044 = vpack.c.b16 %v1032, %v1031
      %v1045 = vpack.c.b16 %v1034, %v1033
      %v1046 = vpack.c.b16 %v1036, %v1035
      %v1047 = vpack.c.b16 %v1038, %v1037
      %v1048 = vpack.c.b16 %v1040, %v1039
      %1057 = vmatpush.bf16.msra.mxu0 %v1048
      %1058 = vmatpush.bf16.msra.mxu0 %v1047
      %1059 = vmatpush.bf16.msra.mxu0 %v1046
      %1060 = vmatpush.bf16.msra.mxu0 %v1045
      %1061 = vmatpush.bf16.msra.mxu0 %v1044
      %1062 = vmatpush.bf16.msra.mxu0 %v1043
      %1063 = vmatpush.bf16.msra.mxu0 %v1042
      %1064 = vmatpush.bf16.msra.mxu0 %v1041
      %1065 = vmatmul.bf16.gmra.mxu0 %v989
      %v1066 = vpop.f32.mrf.mxu0
      %v1067 = vadd.f32 0.0, %v1066
      %v1068 = vpop.f32.mrf.mxu0
      %v1069 = vadd.f32 0.0, %v1068
      %1070 = vmatmul.bf16.gmra.mxu0 %v990
      %v1071 = vpop.f32.mrf.mxu0
      %v1072 = vadd.f32 0.0, %v1071
      %v1073 = vpop.f32.mrf.mxu0
      %v1074 = vadd.f32 0.0, %v1073
      %1075 = vmatmul.bf16.gmra.mxu0 %v991
      %v1076 = vpop.f32.mrf.mxu0
      %v1077 = vadd.f32 0.0, %v1076
      %v1078 = vpop.f32.mrf.mxu0
      %v1079 = vadd.f32 0.0, %v1078
      %1080 = vmatmul.bf16.gmra.mxu0 %v992
      %v1081 = vpop.f32.mrf.mxu0
      %v1082 = vadd.f32 0.0, %v1081
      %v1083 = vpop.f32.mrf.mxu0
      %v1084 = vadd.f32 0.0, %v1083
      %1085 = vdwg.mxu0
      %v1086 = vadd.f32 %v972, %v1067
      %v1087 = vadd.f32 %v973, %v1069
      %v1088 = vadd.f32 %v974, %v1072
      %v1089 = vadd.f32 %v975, %v1074
      %v1090 = vadd.f32 %v976, %v1077
      %v1091 = vadd.f32 %v977, %v1079
      %v1092 = vadd.f32 %v978, %v1082
      %v1093 = vadd.f32 %v979, %v1084
      %v1094 = vld [vmem:[%s980 + $0x1] sm:$0xff]
      %v1095 = vld [vmem:[%s980 + $0x11] sm:$0xff]
      %v1096 = vld [vmem:[%s980 + $0x21] sm:$0xff]
      %v1097 = vld [vmem:[%s980 + $0x31] sm:$0xff]
      %v1098 = vld [vmem:[%s980 + $0x41] sm:$0xff]
      %v1099 = vld [vmem:[%s980 + $0x51] sm:$0xff]
      %v1100 = vld [vmem:[%s980 + $0x61] sm:$0xff]
      %v1101 = vld [vmem:[%s980 + $0x71] sm:$0xff]
      %v1102 = vpack.c.bf16 %v1095, %v1094
      %v1103 = vpack.c.bf16 %v1097, %v1096
      %v1104 = vpack.c.bf16 %v1099, %v1098
      %v1105 = vpack.c.bf16 %v1101, %v1100
      %v1106 = vld [vmem:[%s3 + $0x1c0] sm:$0xf]
      %v1107 = vld [vmem:[%s3 + $0x1c4] sm:$0xf]
      %v1108 = vld [vmem:[%s3 + $0x1c8] sm:$0xf]
      %v1109 = vld [vmem:[%s3 + $0x1cc] sm:$0xf]
      %v1110 = vld [vmem:[%s3 + $0x1d0] sm:$0xf]
      %v1111 = vld [vmem:[%s3 + $0x1d4] sm:$0xf]
      %v1112 = vld [vmem:[%s3 + $0x1d8] sm:$0xf]
      %v1113 = vld [vmem:[%s3 + $0x1dc] sm:$0xf]
      %v1114 = vld [vmem:[%s3 + $0x1e0] sm:$0xf]
      %v1115 = vld [vmem:[%s3 + $0x1e4] sm:$0xf]
      %v1116 = vld [vmem:[%s3 + $0x1e8] sm:$0xf]
      %v1117 = vld [vmem:[%s3 + $0x1ec] sm:$0xf]
      %v1118 = vld [vmem:[%s3 + $0x1f0] sm:$0xf]
      %v1119 = vld [vmem:[%s3 + $0x1f4] sm:$0xf]
      %v1120 = vld [vmem:[%s3 + $0x1f8] sm:$0xf]
      %v1121 = vld [vmem:[%s3 + $0x1fc] sm:$0xf]
      %v1138 = vunpack.c.l.b16 %v1106
      %v1139 = vunpack.c.l.b16 %v1107
      %v1140 = vunpack.c.l.b16 %v1108
      %v1141 = vunpack.c.l.b16 %v1109
      %v1142 = vunpack.c.l.b16 %v1110
      %v1143 = vunpack.c.l.b16 %v1111
      %v1144 = vunpack.c.l.b16 %v1112
      %v1145 = vunpack.c.l.b16 %v1113
      %v1146 = vunpack.c.l.b16 %v1114
      %v1147 = vunpack.c.l.b16 %v1115
      %v1148 = vunpack.c.l.b16 %v1116
      %v1149 = vunpack.c.l.b16 %v1117
      %v1150 = vunpack.c.l.b16 %v1118
      %v1151 = vunpack.c.l.b16 %v1119
      %v1152 = vunpack.c.l.b16 %v1120
      %v1153 = vunpack.c.l.b16 %v1121
      %v1154 = vpack.c.b16 %v1139, %v1138
      %v1155 = vpack.c.b16 %v1141, %v1140
      %v1156 = vpack.c.b16 %v1143, %v1142
      %v1157 = vpack.c.b16 %v1145, %v1144
      %v1158 = vpack.c.b16 %v1147, %v1146
      %v1159 = vpack.c.b16 %v1149, %v1148
      %v1160 = vpack.c.b16 %v1151, %v1150
      %v1161 = vpack.c.b16 %v1153, %v1152
      %1170 = vmatpush.bf16.msra.mxu0 %v1161
      %1171 = vmatpush.bf16.msra.mxu0 %v1160
      %1172 = vmatpush.bf16.msra.mxu0 %v1159
      %1173 = vmatpush.bf16.msra.mxu0 %v1158
      %1174 = vmatpush.bf16.msra.mxu0 %v1157
      %1175 = vmatpush.bf16.msra.mxu0 %v1156
      %1176 = vmatpush.bf16.msra.mxu0 %v1155
      %1177 = vmatpush.bf16.msra.mxu0 %v1154
      %1178 = vmatmul.bf16.gmra.mxu0 %v1102
      %v1179 = vpop.f32.mrf.mxu0
      %v1180 = vadd.f32 0.0, %v1179
      %v1181 = vpop.f32.mrf.mxu0
      %v1182 = vadd.f32 0.0, %v1181
      %1183 = vmatmul.bf16.gmra.mxu0 %v1103
      %v1184 = vpop.f32.mrf.mxu0
      %v1185 = vadd.f32 0.0, %v1184
      %v1186 = vpop.f32.mrf.mxu0
      %v1187 = vadd.f32 0.0, %v1186
      %1188 = vmatmul.bf16.gmra.mxu0 %v1104
      %v1189 = vpop.f32.mrf.mxu0
      %v1190 = vadd.f32 0.0, %v1189
      %v1191 = vpop.f32.mrf.mxu0
      %v1192 = vadd.f32 0.0, %v1191
      %1193 = vmatmul.bf16.gmra.mxu0 %v1105
      %v1194 = vpop.f32.mrf.mxu0
      %v1195 = vadd.f32 0.0, %v1194
      %v1196 = vpop.f32.mrf.mxu0
      %v1197 = vadd.f32 0.0, %v1196
      %1198 = vdwg.mxu0
      %v1199 = vadd.f32 %v1086, %v1180
      %v1200 = vadd.f32 %v1087, %v1182
      %v1201 = vadd.f32 %v1088, %v1185
      %v1202 = vadd.f32 %v1089, %v1187
      %v1203 = vadd.f32 %v1090, %v1190
      %v1204 = vadd.f32 %v1091, %v1192
      %v1205 = vadd.f32 %v1092, %v1195
      %v1206 = vadd.f32 %v1093, %v1197
      %v1207 = vld [vmem:[%s980 + $0x2] sm:$0xff]
      %v1208 = vld [vmem:[%s980 + $0x12] sm:$0xff]
      %v1209 = vld [vmem:[%s980 + $0x22] sm:$0xff]
      %v1210 = vld [vmem:[%s980 + $0x32] sm:$0xff]
      %v1211 = vld [vmem:[%s980 + $0x42] sm:$0xff]
      %v1212 = vld [vmem:[%s980 + $0x52] sm:$0xff]
      %v1213 = vld [vmem:[%s980 + $0x62] sm:$0xff]
      %v1214 = vld [vmem:[%s980 + $0x72] sm:$0xff]
      %v1215 = vpack.c.bf16 %v1208, %v1207
      %v1216 = vpack.c.bf16 %v1210, %v1209
      %v1217 = vpack.c.bf16 %v1212, %v1211
      %v1218 = vpack.c.bf16 %v1214, %v1213
      %v1219 = vld [vmem:[%s3 + $0x200] sm:$0xf]
      %v1220 = vld [vmem:[%s3 + $0x204] sm:$0xf]
      %v1221 = vld [vmem:[%s3 + $0x208] sm:$0xf]
      %v1222 = vld [vmem:[%s3 + $0x20c] sm:$0xf]
      %v1223 = vld [vmem:[%s3 + $0x210] sm:$0xf]
      %v1224 = vld [vmem:[%s3 + $0x214] sm:$0xf]
      %v1225 = vld [vmem:[%s3 + $0x218] sm:$0xf]
      %v1226 = vld [vmem:[%s3 + $0x21c] sm:$0xf]
      %v1227 = vld [vmem:[%s3 + $0x220] sm:$0xf]
      %v1228 = vld [vmem:[%s3 + $0x224] sm:$0xf]
      %v1229 = vld [vmem:[%s3 + $0x228] sm:$0xf]
      %v1230 = vld [vmem:[%s3 + $0x22c] sm:$0xf]
      %v1231 = vld [vmem:[%s3 + $0x230] sm:$0xf]
      %v1232 = vld [vmem:[%s3 + $0x234] sm:$0xf]
      %v1233 = vld [vmem:[%s3 + $0x238] sm:$0xf]
      %v1234 = vld [vmem:[%s3 + $0x23c] sm:$0xf]
      %v1251 = vunpack.c.l.b16 %v1219
      %v1252 = vunpack.c.l.b16 %v1220
      %v1253 = vunpack.c.l.b16 %v1221
      %v1254 = vunpack.c.l.b16 %v1222
      %v1255 = vunpack.c.l.b16 %v1223
      %v1256 = vunpack.c.l.b16 %v1224
      %v1257 = vunpack.c.l.b16 %v1225
      %v1258 = vunpack.c.l.b16 %v1226
      %v1259 = vunpack.c.l.b16 %v1227
      %v1260 = vunpack.c.l.b16 %v1228
      %v1261 = vunpack.c.l.b16 %v1229
      %v1262 = vunpack.c.l.b16 %v1230
      %v1263 = vunpack.c.l.b16 %v1231
      %v1264 = vunpack.c.l.b16 %v1232
      %v1265 = vunpack.c.l.b16 %v1233
      %v1266 = vunpack.c.l.b16 %v1234
      %v1267 = vpack.c.b16 %v1252, %v1251
      %v1268 = vpack.c.b16 %v1254, %v1253
      %v1269 = vpack.c.b16 %v1256, %v1255
      %v1270 = vpack.c.b16 %v1258, %v1257
      %v1271 = vpack.c.b16 %v1260, %v1259
      %v1272 = vpack.c.b16 %v1262, %v1261
      %v1273 = vpack.c.b16 %v1264, %v1263
      %v1274 = vpack.c.b16 %v1266, %v1265
      %1283 = vmatpush.bf16.msra.mxu0 %v1274
      %1284 = vmatpush.bf16.msra.mxu0 %v1273
      %1285 = vmatpush.bf16.msra.mxu0 %v1272
      %1286 = vmatpush.bf16.msra.mxu0 %v1271
      %1287 = vmatpush.bf16.msra.mxu0 %v1270
      %1288 = vmatpush.bf16.msra.mxu0 %v1269
      %1289 = vmatpush.bf16.msra.mxu0 %v1268
      %1290 = vmatpush.bf16.msra.mxu0 %v1267
      %1291 = vmatmul.bf16.gmra.mxu0 %v1215
      %v1292 = vpop.f32.mrf.mxu0
      %v1293 = vadd.f32 0.0, %v1292
      %v1294 = vpop.f32.mrf.mxu0
      %v1295 = vadd.f32 0.0, %v1294
      %1296 = vmatmul.bf16.gmra.mxu0 %v1216
      %v1297 = vpop.f32.mrf.mxu0
      %v1298 = vadd.f32 0.0, %v1297
      %v1299 = vpop.f32.mrf.mxu0
      %v1300 = vadd.f32 0.0, %v1299
      %1301 = vmatmul.bf16.gmra.mxu0 %v1217
      %v1302 = vpop.f32.mrf.mxu0
      %v1303 = vadd.f32 0.0, %v1302
      %v1304 = vpop.f32.mrf.mxu0
      %v1305 = vadd.f32 0.0, %v1304
      %1306 = vmatmul.bf16.gmra.mxu0 %v1218
      %v1307 = vpop.f32.mrf.mxu0
      %v1308 = vadd.f32 0.0, %v1307
      %v1309 = vpop.f32.mrf.mxu0
      %v1310 = vadd.f32 0.0, %v1309
      %1311 = vdwg.mxu0
      %v1312 = vadd.f32 %v1199, %v1293
      %v1313 = vadd.f32 %v1200, %v1295
      %v1314 = vadd.f32 %v1201, %v1298
      %v1315 = vadd.f32 %v1202, %v1300
      %v1316 = vadd.f32 %v1203, %v1303
      %v1317 = vadd.f32 %v1204, %v1305
      %v1318 = vadd.f32 %v1205, %v1308
      %v1319 = vadd.f32 %v1206, %v1310
      %v1320 = vpack.c.bf16 %v1312, %v1312
      %v1321 = vpack.c.bf16 %v1313, %v1313
      %v1322 = vpack.c.bf16 %v1314, %v1314
      %v1323 = vpack.c.bf16 %v1315, %v1315
      %v1324 = vpack.c.bf16 %v1316, %v1316
      %v1325 = vpack.c.bf16 %v1317, %v1317
      %v1326 = vpack.c.bf16 %v1318, %v1318
      %v1327 = vpack.c.bf16 %v1319, %v1319
      %1328 = vst [vmem:[%s231] sm:$0xf] %v1320
      %1329 = vst [vmem:[%s231 + $0x4] sm:$0xf] %v1321
      %1330 = vst [vmem:[%s231 + $0x8] sm:$0xf] %v1322
      %1331 = vst [vmem:[%s231 + $0xc] sm:$0xf] %v1323
      %1332 = vst [vmem:[%s231 + $0x10] sm:$0xf] %v1324
      %1333 = vst [vmem:[%s231 + $0x14] sm:$0xf] %v1325
      %1334 = vst [vmem:[%s231 + $0x18] sm:$0xf] %v1326
      %1335 = vst [vmem:[%s231 + $0x1c] sm:$0xf] %v1327
      %v1336 = vadd.f32 %v1312, %v1313
      %v1337 = vadd.f32 %v1336, %v1314
      %v1338 = vadd.f32 %v1337, %v1315
      %v1339 = vadd.f32 %v1338, %v1316
      %v1340 = vadd.f32 %v1339, %v1317
      %v1341 = vadd.f32 %v1340, %v1318
      %v1342 = vadd.f32 %v1341, %v1319
      %v1343 = vrot.slane %v1342, 4
      %v1344 = vadd.f32 %v1342, %v1343
      %v1345 = vrot.slane %v1344, 2
      %v1346 = vadd.f32 %v1344, %v1345
      %v1347 = vrot.slane %v1346, 1
      %v1348 = vadd.f32 %v1346, %v1347
      %1349 = vst [vmem:[%s235] sm:$0x1] %v1348
      %v1350 = vmul.f32 %v1312, %v1312
      %v1351 = vmul.f32 %v1313, %v1313
      %v1352 = vmul.f32 %v1314, %v1314
      %v1353 = vmul.f32 %v1315, %v1315
      %v1354 = vmul.f32 %v1316, %v1316
      %v1355 = vmul.f32 %v1317, %v1317
      %v1356 = vmul.f32 %v1318, %v1318
      %v1357 = vmul.f32 %v1319, %v1319
      %v1358 = vadd.f32 %v1350, %v1351
      %v1359 = vadd.f32 %v1358, %v1352
      %v1360 = vadd.f32 %v1359, %v1353
      %v1361 = vadd.f32 %v1360, %v1354
      %v1362 = vadd.f32 %v1361, %v1355
      %v1363 = vadd.f32 %v1362, %v1356
      %v1364 = vadd.f32 %v1363, %v1357
      %v1365 = vrot.slane %v1364, 4
      %v1366 = vadd.f32 %v1364, %v1365
      %v1367 = vrot.slane %v1366, 2
      %v1368 = vadd.f32 %v1366, %v1367
      %v1369 = vrot.slane %v1368, 1
      %v1370 = vadd.f32 %v1368, %v1369
      %1371 = vst [vmem:[%s235 + $0x1] sm:$0x1] %v1370
      %p1372 = scmp.lt.s32.totalorder %s17, 1
      %s1373 = scalar_select %p1372, %s17, 1
      %s1374 = smul.addr %s1373, 8
      %s1375 = smul.addr %s1374, 4
      %s1376 = scalar_lea.vmem %s4, %s1375
      %p1377 = scmp.lt.s32.totalorder %s17, 1
      %s1378 = scalar_select %p1377, %s17, 1
      %s1379 = smul.addr %s1378, 2
      %s1380 = scalar_lea.vmem %s5, %s1379
      // Predicated region
      $region37: #{basic_block_forward.4} parent=35 // pred_check
        %p1381 = pneg %p124
      $region38: #{basic_block_forward.4} parent=35 // pred_check_branch
        %1383 = sbr.rel (%p1381) target = $region40
      $region39: #{basic_block_forward.4} parent=35 // pred_region
        _
      $region40: #{basic_block_forward.4} parent=35 // pred_fallthru
        _
      // Predicated region
      $region41: #{basic_block_forward.4} parent=35 // pred_check
        %p1384 = pneg %p150
      $region42: #{basic_block_forward.4} parent=35 // pred_check_branch
        %1386 = sbr.rel (%p1384) target = $region44
      $region43: #{basic_block_forward.4} parent=35 // pred_region
        _
      $region44: #{basic_block_forward.4} parent=35 // pred_fallthru
        _
    $region36: #{basic_block_forward.4} parent=5 // pred_fallthru
      _
    %p1387 = scmp.le.s32.totalorder 2, %s12
    // Predicated region
    $region45: #{basic_block_forward.4} parent=5 // pred_check
      %p1388 = pneg %p1387
    $region46: #{basic_block_forward.4} parent=5 // pred_check_branch
      %1390 = sbr.rel (%p1388) target = $region48
    $region47: #{basic_block_forward.4} parent=5 // pred_region
      %s1391 = ssub.s32 %s12, 2
      // Predicated region
      $region49: #{basic_block_forward.4} parent=47 // pred_check
        %p1392 = pneg %p130
      $region50: #{basic_block_forward.4} parent=47 // pred_check_branch
        %1394 = sbr.rel (%p1392) target = $region52
      $region51: #{basic_block_forward.4} parent=47 // pred_region
        %p1395 = scmp.lt.s32.totalorder %s18, 1
        %s1396 = scalar_select %p1395, %s18, 1
        %s1397 = smul.addr %s1396, 8
        %s1398 = smul.addr %s1397, 4
        %s1399 = scalar_lea.vmem %s4, %s1398
      $region52: #{basic_block_forward.4} parent=47 // pred_fallthru
        _
      // Predicated region
      $region53: #{basic_block_forward.4} parent=47 // pred_check
        %p1400 = pneg %p156
      $region54: #{basic_block_forward.4} parent=47 // pred_check_branch
        %1402 = sbr.rel (%p1400) target = $region56
      $region55: #{basic_block_forward.4} parent=47 // pred_region
        %p1403 = scmp.lt.s32.totalorder %s18, 1
        %s1404 = scalar_select %p1403, %s18, 1
        %s1405 = smul.addr %s1404, 2
        %s1406 = scalar_lea.vmem %s5, %s1405
      $region56: #{basic_block_forward.4} parent=47 // pred_fallthru
        _
    $region48: #{basic_block_forward.4} parent=5 // pred_fallthru
      _
  $region6: #{basic_block_forward.4} parent=0 // loop_footer
    %s16 = sadd.s32 1, %s12
  $region7: #{basic_block_forward.4} parent=0 // loop_footer_branch
    %11 = sbr.rel target = $region3
  $region8: #{basic_block_forward.4} parent=0 // loop_exit
    _

// kernel: basic_block_forward.3
$region0: #{basic_block_forward.3}
  #allocation0 [shape = 'u32[]', space=smem, size = 0x4, offset = 0x4, fixed_abs, tag = 'smem constant byte address 0x4 - core index']
  #allocation1 [shape = 'u32[72,128]{1,0:T(1,128)}', space=vmem, size = 0x9000, scoped, tag = 'internal scratch']
  #allocation2 [shape = 'f32[18,18,128]{2,1,0:T(8,128)}', space=vmem, size = 0x36000, scoped, tag = 'scratch operand']
  %s0 = inlined_call_operand.vmem [shape: bf16[2,16,16,128], index: 0, kind: input, shape index: {}]
  %s1 = inlined_call_operand.vmem [shape: bf16[1152,128], index: 1, kind: input, shape index: {}]
  %s2 = inlined_call_operand.vmem [shape: bf16[128,128], index: 2, kind: input, shape index: {}]
  %s3 = inlined_call_operand.vmem [shape: bf16[2,8,8,128], index: 3, kind: output, shape index: {0}]
  %s4 = inlined_call_operand.vmem [shape: f32[2,2,128], index: 4, kind: output, shape index: {1}]
  %s5 = inlined_call_operand.vmem [shape: bf16[2,8,8,128], index: 5, kind: output, shape index: {2}]
  %s6 = inlined_call_operand.vmem [shape: f32[2,2,128], index: 6, kind: output, shape index: {3}]
  %7 = xla_tuple %s3, %s4, %s5, %s6
  %s8 = sld [smem:[#allocation0]]
  $region69: #{basic_block_forward.3} parent=0
    _
  %s10 = ssub.s32 1, %s8
  %s11 = scalar_select 0, %s10, %s8
  loop: start=0, step=1, limit=4
  $region2: #{basic_block_forward.3} parent=0 // loop_pre_header
    _
  $region3: #{basic_block_forward.3} parent=0 // loop_header
    %s13 = sphi 0, %s17
    %p14 = scmp.ge.s32.totalorder %s13, 4
    %s23 = sphi 0, %s25
    %s26 = sphi 0, %s23
    %s27 = sphi 0, %s26
    %s43 = sphi 0, %s27
    %s47 = sphi 0, %s47
    %s49 = sphi 0, %s47
    %s50 = sphi 0, %s49
    %s64 = sphi 0, %s50
    %s68 = sphi 0, %s68
    %s70 = sphi 0, %s68
    %s71 = sphi 0, %s70
    %s85 = sphi 0, %s71
    %s91 = sphi 0, %s93
    %s94 = sphi 0, %s91
    %s95 = sphi 0, %s94
    %s111 = sphi 0, %s95
    %s117 = sphi 0, %s119
    %s120 = sphi 0, %s117
    %s121 = sphi 0, %s120
    %s137 = sphi 0, %s121
    %s143 = sphi 0, %s145
    %s146 = sphi 0, %s143
    %s147 = sphi 0, %s146
    %s163 = sphi 0, %s147
    %s169 = sphi 0, %s171
    %s172 = sphi 0, %s169
    %s173 = sphi 0, %s172
    %s189 = sphi 0, %s173
  $region4: #{basic_block_forward.3} parent=0 // loop_header_branch
    %16 = sbr.rel (%p14) target = $region8
  $region5: #{basic_block_forward.3} parent=0 // loop_body
    %s18 = ssub.s32 %s13, 1
    %s19 = ssub.s32 %s13, 2
    %s20 = sadd.s32 %s13, 1
    %s21 = ssub.s32 %s13, %s20
    %p22 = scmp.eq.s32.totalorder %s21, 0
    %s24 = sadd.s32 %s23, 1
    %s25 = scalar_select %p22, %s23, %s24
    %p28 = pneg %p22
    %p29 = scmp.eq.s32.totalorder %s13, 1
    %p30 = por %p28, %p29
    %p31 = scmp.ne.s32.totalorder %s23, %s26
    %p32 = scmp.eq.s32.totalorder %s13, 0
    %p33 = por %p31, %p32
    %p34 = scmp.ne.s32.totalorder %s23, %s26
    %p35 = scmp.eq.s32.totalorder %s18, 1
    %p36 = por %p34, %p35
    %p37 = scmp.ne.s32.totalorder %s26, %s27
    %p38 = scmp.eq.s32.totalorder %s18, 0
    %p39 = por %p37, %p38
    %p40 = scmp.ne.s32.totalorder %s26, %s27
    %p41 = scmp.eq.s32.totalorder %s19, 1
    %p42 = por %p40, %p41
    %p44 = scmp.ne.s32.totalorder %s27, %s43
    %p45 = scmp.eq.s32.totalorder %s19, 0
    %p46 = por %p44, %p45
    %s48 = sadd.s32 %s47, 1
    %p51 = scmp.eq.s32.totalorder %s13, 1
    %p52 = scmp.ne.s32.totalorder %s47, %s49
    %p53 = scmp.eq.s32.totalorder %s13, 0
    %p54 = por %p52, %p53
    %p55 = scmp.ne.s32.totalorder %s47, %s49
    %p56 = scmp.eq.s32.totalorder %s18, 1
    %p57 = por %p55, %p56
    %p58 = scmp.ne.s32.totalorder %s49, %s50
    %p59 = scmp.eq.s32.totalorder %s18, 0
    %p60 = por %p58, %p59
    %p61 = scmp.ne.s32.totalorder %s49, %s50
    %p62 = scmp.eq.s32.totalorder %s19, 1
    %p63 = por %p61, %p62
    %p65 = scmp.ne.s32.totalorder %s50, %s64
    %p66 = scmp.eq.s32.totalorder %s19, 0
    %p67 = por %p65, %p66
    %s69 = sadd.s32 %s68, 1
    %p72 = scmp.eq.s32.totalorder %s13, 1
    %p73 = scmp.ne.s32.totalorder %s68, %s70
    %p74 = scmp.eq.s32.totalorder %s13, 0
    %p75 = por %p73, %p74
    %p76 = scmp.ne.s32.totalorder %s68, %s70
    %p77 = scmp.eq.s32.totalorder %s18, 1
    %p78 = por %p76, %p77
    %p79 = scmp.ne.s32.totalorder %s70, %s71
    %p80 = scmp.eq.s32.totalorder %s18, 0
    %p81 = por %p79, %p80
    %p82 = scmp.ne.s32.totalorder %s70, %s71
    %p83 = scmp.eq.s32.totalorder %s19, 1
    %p84 = por %p82, %p83
    %p86 = scmp.ne.s32.totalorder %s71, %s85
    %p87 = scmp.eq.s32.totalorder %s19, 0
    %p88 = por %p86, %p87
    %s89 = ssub.s32 %s13, %s20
    %p90 = scmp.eq.s32.totalorder %s89, 0
    %s92 = sadd.s32 %s91, 1
    %s93 = scalar_select %p90, %s91, %s92
    %p96 = pneg %p90
    %p97 = scmp.eq.s32.totalorder %s13, 1
    %p98 = por %p96, %p97
    %p99 = scmp.ne.s32.totalorder %s91, %s94
    %p100 = scmp.eq.s32.totalorder %s13, 0
    %p101 = por %p99, %p100
    %p102 = scmp.ne.s32.totalorder %s91, %s94
    %p103 = scmp.eq.s32.totalorder %s18, 1
    %p104 = por %p102, %p103
    %p105 = scmp.ne.s32.totalorder %s94, %s95
    %p106 = scmp.eq.s32.totalorder %s18, 0
    %p107 = por %p105, %p106
    %p108 = scmp.ne.s32.totalorder %s94, %s95
    %p109 = scmp.eq.s32.totalorder %s19, 1
    %p110 = por %p108, %p109
    %p112 = scmp.ne.s32.totalorder %s95, %s111
    %p113 = scmp.eq.s32.totalorder %s19, 0
    %p114 = por %p112, %p113
    %s115 = ssub.s32 %s13, %s20
    %p116 = scmp.eq.s32.totalorder %s115, 0
    %s118 = sadd.s32 %s117, 1
    %s119 = scalar_select %p116, %s117, %s118
    %p122 = pneg %p116
    %p123 = scmp.eq.s32.totalorder %s13, 1
    %p124 = por %p122, %p123
    %p125 = scmp.ne.s32.totalorder %s117, %s120
    %p126 = scmp.eq.s32.totalorder %s13, 0
    %p127 = por %p125, %p126
    %p128 = scmp.ne.s32.totalorder %s117, %s120
    %p129 = scmp.eq.s32.totalorder %s18, 1
    %p130 = por %p128, %p129
    %p131 = scmp.ne.s32.totalorder %s120, %s121
    %p132 = scmp.eq.s32.totalorder %s18, 0
    %p133 = por %p131, %p132
    %p134 = scmp.ne.s32.totalorder %s120, %s121
    %p135 = scmp.eq.s32.totalorder %s19, 1
    %p136 = por %p134, %p135
    %p138 = scmp.ne.s32.totalorder %s121, %s137
    %p139 = scmp.eq.s32.totalorder %s19, 0
    %p140 = por %p138, %p139
    %s141 = ssub.s32 %s13, %s20
    %p142 = scmp.eq.s32.totalorder %s141, 0
    %s144 = sadd.s32 %s143, 1
    %s145 = scalar_select %p142, %s143, %s144
    %p148 = pneg %p142
    %p149 = scmp.eq.s32.totalorder %s13, 1
    %p150 = por %p148, %p149
    %p151 = scmp.ne.s32.totalorder %s143, %s146
    %p152 = scmp.eq.s32.totalorder %s13, 0
    %p153 = por %p151, %p152
    %p154 = scmp.ne.s32.totalorder %s143, %s146
    %p155 = scmp.eq.s32.totalorder %s18, 1
    %p156 = por %p154, %p155
    %p157 = scmp.ne.s32.totalorder %s146, %s147
    %p158 = scmp.eq.s32.totalorder %s18, 0
    %p159 = por %p157, %p158
    %p160 = scmp.ne.s32.totalorder %s146, %s147
    %p161 = scmp.eq.s32.totalorder %s19, 1
    %p162 = por %p160, %p161
    %p164 = scmp.ne.s32.totalorder %s147, %s163
    %p165 = scmp.eq.s32.totalorder %s19, 0
    %p166 = por %p164, %p165
    %s167 = ssub.s32 %s13, %s20
    %p168 = scmp.eq.s32.totalorder %s167, 0
    %s170 = sadd.s32 %s169, 1
    %s171 = scalar_select %p168, %s169, %s170
    %p174 = pneg %p168
    %p175 = scmp.eq.s32.totalorder %s13, 1
    %p176 = por %p174, %p175
    %p177 = scmp.ne.s32.totalorder %s169, %s172
    %p178 = scmp.eq.s32.totalorder %s13, 0
    %p179 = por %p177, %p178
    %p180 = scmp.ne.s32.totalorder %s169, %s172
    %p181 = scmp.eq.s32.totalorder %s18, 1
    %p182 = por %p180, %p181
    %p183 = scmp.ne.s32.totalorder %s172, %s173
    %p184 = scmp.eq.s32.totalorder %s18, 0
    %p185 = por %p183, %p184
    %p186 = scmp.ne.s32.totalorder %s172, %s173
    %p187 = scmp.eq.s32.totalorder %s19, 1
    %p188 = por %p186, %p187
    %p190 = scmp.ne.s32.totalorder %s173, %s189
    %p191 = scmp.eq.s32.totalorder %s19, 0
    %p192 = por %p190, %p191
    %p193 = scmp.le.s32.totalorder 1, %s13
    %p194 = scmp.lt.s32.totalorder %s13, 3
    %p195 = pnand %p193, %p194
    %p196 = pneg %p195
    // Predicated region
    $region9: #{basic_block_forward.3} parent=5 // pred_check
      _
    $region10: #{basic_block_forward.3} parent=5 // pred_check_branch
      %198 = sbr.rel (%p195) target = $region12
    $region11: #{basic_block_forward.3} parent=5 // pred_region
      %s199 = ssub.s32 %s13, 1
      // Predicated region
      $region13: #{basic_block_forward.3} parent=11 // pred_check
        %p200 = pneg %p60
      $region14: #{basic_block_forward.3} parent=11 // pred_check_branch
        %202 = sbr.rel (%p200) target = $region16
      $region15: #{basic_block_forward.3} parent=11 // pred_region
        _
      $region16: #{basic_block_forward.3} parent=11 // pred_fallthru
        _
      // Predicated region
      $region17: #{basic_block_forward.3} parent=11 // pred_check
        %p203 = pneg %p81
      $region18: #{basic_block_forward.3} parent=11 // pred_check_branch
        %205 = sbr.rel (%p203) target = $region20
      $region19: #{basic_block_forward.3} parent=11 // pred_region
        _
      $region20: #{basic_block_forward.3} parent=11 // pred_fallthru
        _
    $region12: #{basic_block_forward.3} parent=5 // pred_fallthru
      _
    %p206 = scmp.lt.s32.totalorder %s13, 2
    // Predicated region
    $region21: #{basic_block_forward.3} parent=5 // pred_check
      %p207 = pneg %p206
    $region22: #{basic_block_forward.3} parent=5 // pred_check_branch
      %209 = sbr.rel (%p207) target = $region24
    $region23: #{basic_block_forward.3} parent=5 // pred_region
      // Predicated region
      $region25: #{basic_block_forward.3} parent=23 // pred_check
        %p210 = pneg %p33
      $region26: #{basic_block_forward.3} parent=23 // pred_check_branch
        %212 = sbr.rel (%p210) target = $region28
      $region27: #{basic_block_forward.3} parent=23 // pred_region
        %p213 = scmp.lt.s32.totalorder %s13, 1
        %s214 = scalar_select %p213, %s13, 1
        %s215 = smul.addr %s214, 32
        %s216 = smul.addr %s215, 4
        %s217 = scalar_lea.vmem %s0, %s216
      $region28: #{basic_block_forward.3} parent=23 // pred_fallthru
        _
    $region24: #{basic_block_forward.3} parent=5 // pred_fallthru
      _
    %p218 = scmp.le.s32.totalorder 1, %s13
    %p219 = scmp.lt.s32.totalorder %s13, 3
    %p220 = pnand %p218, %p219
    %p221 = pneg %p220
    // Predicated region
    $region29: #{basic_block_forward.3} parent=5 // pred_check
      _
    $region30: #{basic_block_forward.3} parent=5 // pred_check_branch
      %223 = sbr.rel (%p220) target = $region32
    $region31: #{basic_block_forward.3} parent=5 // pred_region
      %s224 = ssub.s32 %s13, 1
      %p225 = scmp.lt.s32.totalorder %s18, 1
      %s226 = scalar_select %p225, %s18, 1
      %s227 = smul.addr %s226, 32
      %s228 = smul.addr %s227, 4
      %s229 = scalar_lea.vmem %s0, %s228
      %p230 = pneg %p39
      %p231 = pneg %p36
      %p232 = pneg %p60
      %p233 = pneg %p57
      %p234 = pneg %p81
      %p235 = pneg %p78
      %p236 = pneg %p107
      %p237 = pneg %p104
      %p238 = scmp.lt.s32.totalorder %s18, 1
      %s239 = scalar_select %p238, %s18, 1
      %s240 = smul.addr %s239, 8
      %s241 = smul.addr %s240, 4
      %s242 = scalar_lea.vmem %s3, %s241
      %p243 = pneg %p133
      %p244 = pneg %p130
      %p245 = scmp.lt.s32.totalorder %s18, 1
      %s246 = scalar_select %p245, %s18, 1
      %s247 = smul.addr %s246, 2
      %s248 = scalar_lea.vmem %s4, %s247
      %p249 = pneg %p159
      %p250 = pneg %p156
      %p251 = scmp.lt.s32.totalorder %s18, 1
      %s252 = scalar_select %p251, %s18, 1
      %s253 = smul.addr %s252, 8
      %s254 = smul.addr %s253, 4
      %s255 = scalar_lea.vmem %s5, %s254
      %p256 = pneg %p185
      %p257 = pneg %p182
      %p258 = scmp.lt.s32.totalorder %s18, 1
      %s259 = scalar_select %p258, %s18, 1
      %s260 = smul.addr %s259, 2
      %s261 = scalar_lea.vmem %s6, %s260
      %p262 = scmp.lt.s32.totalorder %s18, 1
      %s263 = scalar_select %p262, %s18, 1
      %s264 = smul.addr %s263, 32
      %s265 = smul.addr %s264, 4
      %s266 = scalar_lea.vmem %s0, %s265
      %p267 = scmp.lt.s32.totalorder %s18, 1
      %s268 = scalar_select %p267, %s18, 1
      %s269 = smul.addr %s268, 8
      %s270 = smul.addr %s269, 4
      %s271 = scalar_lea.vmem %s3, %s270
      %p272 = scmp.lt.s32.totalorder %s18, 1
      %s273 = scalar_select %p272, %s18, 1
      %s274 = smul.addr %s273, 2
      %s275 = scalar_lea.vmem %s4, %s274
      %p276 = scmp.lt.s32.totalorder %s18, 1
      %s277 = scalar_select %p276, %s18, 1
      %s278 = smul.addr %s277, 8
      %s279 = smul.addr %s278, 4
      %s280 = scalar_lea.vmem %s5, %s279
      %p281 = scmp.lt.s32.totalorder %s18, 1
      %s282 = scalar_select %p281, %s18, 1
      %s283 = smul.addr %s282, 2
      %s284 = scalar_lea.vmem %s6, %s283
      %v285 = vld [vmem:[%s266] sm:$0xf]
      %v286 = vld [vmem:[%s266 + $0x4] sm:$0xf]
      %v287 = vld [vmem:[%s266 + $0x8] sm:$0xf]
      %v288 = vld [vmem:[%s266 + $0xc] sm:$0xf]
      %v289 = vld [vmem:[%s266 + $0x10] sm:$0xf]
      %v290 = vld [vmem:[%s266 + $0x14] sm:$0xf]
      %v291 = vld [vmem:[%s266 + $0x18] sm:$0xf]
      %v292 = vld [vmem:[%s266 + $0x1c] sm:$0xf]
      %v293 = vld [vmem:[%s266 + $0x20] sm:$0xf]
      %v294 = vld [vmem:[%s266 + $0x24] sm:$0xf]
      %v295 = vld [vmem:[%s266 + $0x28] sm:$0xf]
      %v296 = vld [vmem:[%s266 + $0x2c] sm:$0xf]
      %v297 = vld [vmem:[%s266 + $0x30] sm:$0xf]
      %v298 = vld [vmem:[%s266 + $0x34] sm:$0xf]
      %v299 = vld [vmem:[%s266 + $0x38] sm:$0xf]
      %v300 = vld [vmem:[%s266 + $0x3c] sm:$0xf]
      %v301 = vld [vmem:[%s266 + $0x40] sm:$0xf]
      %v302 = vld [vmem:[%s266 + $0x44] sm:$0xf]
      %v303 = vld [vmem:[%s266 + $0x48] sm:$0xf]
      %v304 = vld [vmem:[%s266 + $0x4c] sm:$0xf]
      %v305 = vld [vmem:[%s266 + $0x50] sm:$0xf]
      %v306 = vld [vmem:[%s266 + $0x54] sm:$0xf]
      %v307 = vld [vmem:[%s266 + $0x58] sm:$0xf]
      %v308 = vld [vmem:[%s266 + $0x5c] sm:$0xf]
      %v309 = vld [vmem:[%s266 + $0x60] sm:$0xf]
      %v310 = vld [vmem:[%s266 + $0x64] sm:$0xf]
      %v311 = vld [vmem:[%s266 + $0x68] sm:$0xf]
      %v312 = vld [vmem:[%s266 + $0x6c] sm:$0xf]
      %v313 = vld [vmem:[%s266 + $0x70] sm:$0xf]
      %v314 = vld [vmem:[%s266 + $0x74] sm:$0xf]
      %v315 = vld [vmem:[%s266 + $0x78] sm:$0xf]
      %v316 = vld [vmem:[%s266 + $0x7c] sm:$0xf]
      %v317 = vunpack.c.l.bf16 %v285
      %v318 = vunpack.c.l.bf16 %v286
      %v319 = vunpack.c.l.bf16 %v287
      %v320 = vunpack.c.l.bf16 %v288
      %v321 = vunpack.c.l.bf16 %v289
      %v322 = vunpack.c.l.bf16 %v290
      %v323 = vunpack.c.l.bf16 %v291
      %v324 = vunpack.c.l.bf16 %v292
      %v325 = vunpack.c.l.bf16 %v293
      %v326 = vunpack.c.l.bf16 %v294
      %v327 = vunpack.c.l.bf16 %v295
      %v328 = vunpack.c.l.bf16 %v296
      %v329 = vunpack.c.l.bf16 %v297
      %v330 = vunpack.c.l.bf16 %v298
      %v331 = vunpack.c.l.bf16 %v299
      %v332 = vunpack.c.l.bf16 %v300
      %v333 = vunpack.c.l.bf16 %v301
      %v334 = vunpack.c.l.bf16 %v302
      %v335 = vunpack.c.l.bf16 %v303
      %v336 = vunpack.c.l.bf16 %v304
      %v337 = vunpack.c.l.bf16 %v305
      %v338 = vunpack.c.l.bf16 %v306
      %v339 = vunpack.c.l.bf16 %v307
      %v340 = vunpack.c.l.bf16 %v308
      %v341 = vunpack.c.l.bf16 %v309
      %v342 = vunpack.c.l.bf16 %v310
      %v343 = vunpack.c.l.bf16 %v311
      %v344 = vunpack.c.l.bf16 %v312
      %v345 = vunpack.c.l.bf16 %v313
      %v346 = vunpack.c.l.bf16 %v314
      %v347 = vunpack.c.l.bf16 %v315
      %v348 = vunpack.c.l.bf16 %v316
      %349 = vst [vmem:[#allocation2] sm:$0xff] 0.0
      %350 = vst [vmem:[#allocation2 + $0x8] sm:$0xff] 0.0
      %351 = vst [vmem:[#allocation2 + $0x10] sm:$0x3] 0.0
      %s352 = scalar_lea.vmem [#allocation2], 408
      %353 = vst [vmem:[%s352] sm:$0xff] 0.0
      %354 = vst [vmem:[%s352 + $0x8] sm:$0xff] 0.0
      %355 = vst [vmem:[%s352 + $0x10] sm:$0x3] 0.0
      %356 = vst [vmem:[#allocation2] sm:$0x1] 0.0
      %357 = vst [vmem:[#allocation2 + $0x18] sm:$0x1] 0.0
      %358 = vst [vmem:[#allocation2 + $0x30] sm:$0x1] 0.0
      %359 = vst [vmem:[#allocation2 + $0x48] sm:$0x1] 0.0
      %360 = vst [vmem:[#allocation2 + $0x60] sm:$0x1] 0.0
      %361 = vst [vmem:[#allocation2 + $0x78] sm:$0x1] 0.0
      %362 = vst [vmem:[#allocation2 + $0x90] sm:$0x1] 0.0
      %363 = vst [vmem:[#allocation2 + $0xa8] sm:$0x1] 0.0
      %364 = vst [vmem:[#allocation2 + $0xc0] sm:$0x1] 0.0
      %365 = vst [vmem:[#allocation2 + $0xd8] sm:$0x1] 0.0
      %366 = vst [vmem:[#allocation2 + $0xf0] sm:$0x1] 0.0
      %367 = vst [vmem:[#allocation2 + $0x108] sm:$0x1] 0.0
      %368 = vst [vmem:[#allocation2 + $0x120] sm:$0x1] 0.0
      %369 = vst [vmem:[#allocation2 + $0x138] sm:$0x1] 0.0
      %370 = vst [vmem:[#allocation2 + $0x150] sm:$0x1] 0.0
      %371 = vst [vmem:[#allocation2 + $0x168] sm:$0x1] 0.0
      %372 = vst [vmem:[#allocation2 + $0x180] sm:$0x1] 0.0
      %373 = vst [vmem:[#allocation2 + $0x198] sm:$0x1] 0.0
      %374 = vst [vmem:[#allocation2 + $0x11] sm:$0x1] 0.0
      %375 = vst [vmem:[#allocation2 + $0x29] sm:$0x1] 0.0
      %376 = vst [vmem:[#allocation2 + $0x41] sm:$0x1] 0.0
      %377 = vst [vmem:[#allocation2 + $0x59] sm:$0x1] 0.0
      %378 = vst [vmem:[#allocation2 + $0x71] sm:$0x1] 0.0
      %379 = vst [vmem:[#allocation2 + $0x89] sm:$0x1] 0.0
      %380 = vst [vmem:[#allocation2 + $0xa1] sm:$0x1] 0.0
      %381 = vst [vmem:[#allocation2 + $0xb9] sm:$0x1] 0.0
      %382 = vst [vmem:[#allocation2 + $0xd1] sm:$0x1] 0.0
      %383 = vst [vmem:[#allocation2 + $0xe9] sm:$0x1] 0.0
      %384 = vst [vmem:[#allocation2 + $0x101] sm:$0x1] 0.0
      %385 = vst [vmem:[#allocation2 + $0x119] sm:$0x1] 0.0
      %386 = vst [vmem:[#allocation2 + $0x131] sm:$0x1] 0.0
      %387 = vst [vmem:[#allocation2 + $0x149] sm:$0x1] 0.0
      %388 = vst [vmem:[#allocation2 + $0x161] sm:$0x1] 0.0
      %389 = vst [vmem:[#allocation2 + $0x179] sm:$0x1] 0.0
      %390 = vst [vmem:[#allocation2 + $0x191] sm:$0x1] 0.0
      %391 = vst [vmem:[#allocation2 + $0x1a9] sm:$0x1] 0.0
      %s392 = scalar_lea.vmem [#allocation2], 24
      %393 = vst [vmem:[%s392 + $0x1] sm:$0xff] %v317
      %394 = vst [vmem:[%s392 + $0x9] sm:$0xff] %v318
      %395 = vst [vmem:[%s392 + $0x19] sm:$0xff] %v319
      %396 = vst [vmem:[%s392 + $0x21] sm:$0xff] %v320
      %397 = vst [vmem:[%s392 + $0x31] sm:$0xff] %v321
      %398 = vst [vmem:[%s392 + $0x39] sm:$0xff] %v322
      %399 = vst [vmem:[%s392 + $0x49] sm:$0xff] %v323
      %400 = vst [vmem:[%s392 + $0x51] sm:$0xff] %v324
      %401 = vst [vmem:[%s392 + $0x61] sm:$0xff] %v325
      %402 = vst [vmem:[%s392 + $0x69] sm:$0xff] %v326
      %403 = vst [vmem:[%s392 + $0x79] sm:$0xff] %v327
      %404 = vst [vmem:[%s392 + $0x81] sm:$0xff] %v328
      %405 = vst [vmem:[%s392 + $0x91] sm:$0xff] %v329
      %406 = vst [vmem:[%s392 + $0x99] sm:$0xff] %v330
      %407 = vst [vmem:[%s392 + $0xa9] sm:$0xff] %v331
      %408 = vst [vmem:[%s392 + $0xb1] sm:$0xff] %v332
      %409 = vst [vmem:[%s392 + $0xc1] sm:$0xff] %v333
      %410 = vst [vmem:[%s392 + $0xc9] sm:$0xff] %v334
      %411 = vst [vmem:[%s392 + $0xd9] sm:$0xff] %v335
      %412 = vst [vmem:[%s392 + $0xe1] sm:$0xff] %v336
      %413 = vst [vmem:[%s392 + $0xf1] sm:$0xff] %v337
      %414 = vst [vmem:[%s392 + $0xf9] sm:$0xff] %v338
      %415 = vst [vmem:[%s392 + $0x109] sm:$0xff] %v339
      %416 = vst [vmem:[%s392 + $0x111] sm:$0xff] %v340
      %417 = vst [vmem:[%s392 + $0x121] sm:$0xff] %v341
      %418 = vst [vmem:[%s392 + $0x129] sm:$0xff] %v342
      %419 = vst [vmem:[%s392 + $0x139] sm:$0xff] %v343
      %420 = vst [vmem:[%s392 + $0x141] sm:$0xff] %v344
      %421 = vst [vmem:[%s392 + $0x151] sm:$0xff] %v345
      %422 = vst [vmem:[%s392 + $0x159] sm:$0xff] %v346
      %423 = vst [vmem:[%s392 + $0x169] sm:$0xff] %v347
      %424 = vst [vmem:[%s392 + $0x171] sm:$0xff] %v348
      %v425 = vld [vmem:[#allocation2] ss:$2 sm:$0xff]
      %s426 = scalar_lea.vmem [#allocation2], 48
      %v427 = vld [vmem:[%s426] ss:$2 sm:$0xff]
      %s428 = scalar_lea.vmem [#allocation2], 96
      %v429 = vld [vmem:[%s428] ss:$2 sm:$0xff]
      %s430 = scalar_lea.vmem [#allocation2], 144
      %v431 = vld [vmem:[%s430] ss:$2 sm:$0xff]
      %s432 = scalar_lea.vmem [#allocation2], 192
      %v433 = vld [vmem:[%s432] ss:$2 sm:$0xff]
      %s434 = scalar_lea.vmem [#allocation2], 240
      %v435 = vld [vmem:[%s434] ss:$2 sm:$0xff]
      %s436 = scalar_lea.vmem [#allocation2], 288
      %v437 = vld [vmem:[%s436] ss:$2 sm:$0xff]
      %s438 = scalar_lea.vmem [#allocation2], 336
      %v439 = vld [vmem:[%s438] ss:$2 sm:$0xff]
      %v440 = vpack.c.bf16 %v427, %v425
      %v441 = vpack.c.bf16 %v431, %v429
      %v442 = vpack.c.bf16 %v435, %v433
      %v443 = vpack.c.bf16 %v439, %v437
      %v444 = vld [vmem:[%s1] sm:$0xf]
      %v445 = vld [vmem:[%s1 + $0x4] sm:$0xf]
      %v446 = vld [vmem:[%s1 + $0x8] sm:$0xf]
      %v447 = vld [vmem:[%s1 + $0xc] sm:$0xf]
      %v448 = vld [vmem:[%s1 + $0x10] sm:$0xf]
      %v449 = vld [vmem:[%s1 + $0x14] sm:$0xf]
      %v450 = vld [vmem:[%s1 + $0x18] sm:$0xf]
      %v451 = vld [vmem:[%s1 + $0x1c] sm:$0xf]
      %v452 = vld [vmem:[%s1 + $0x20] sm:$0xf]
      %v453 = vld [vmem:[%s1 + $0x24] sm:$0xf]
      %v454 = vld [vmem:[%s1 + $0x28] sm:$0xf]
      %v455 = vld [vmem:[%s1 + $0x2c] sm:$0xf]
      %v456 = vld [vmem:[%s1 + $0x30] sm:$0xf]
      %v457 = vld [vmem:[%s1 + $0x34] sm:$0xf]
      %v458 = vld [vmem:[%s1 + $0x38] sm:$0xf]
      %v459 = vld [vmem:[%s1 + $0x3c] sm:$0xf]
      %s460 = scalar_lea.vmem [#allocation2], 1
      %v461 = vld [vmem:[%s460] ss:$2 sm:$0xff]
      %s462 = scalar_lea.vmem [#allocation2], 49
      %v463 = vld [vmem:[%s462] ss:$2 sm:$0xff]
      %s464 = scalar_lea.vmem [#allocation2], 97
      %v465 = vld [vmem:[%s464] ss:$2 sm:$0xff]
      %s466 = scalar_lea.vmem [#allocation2], 145
      %v467 = vld [vmem:[%s466] ss:$2 sm:$0xff]
      %s468 = scalar_lea.vmem [#allocation2], 193
      %v469 = vld [vmem:[%s468] ss:$2 sm:$0xff]
      %s470 = scalar_lea.vmem [#allocation2], 241
      %v471 = vld [vmem:[%s470] ss:$2 sm:$0xff]
      %s472 = scalar_lea.vmem [#allocation2], 289
      %v473 = vld [vmem:[%s472] ss:$2 sm:$0xff]
      %s474 = scalar_lea.vmem [#allocation2], 337
      %v475 = vld [vmem:[%s474] ss:$2 sm:$0xff]
      %v476 = vpack.c.bf16 %v463, %v461
      %v477 = vpack.c.bf16 %v467, %v465
      %v478 = vpack.c.bf16 %v471, %v469
      %v479 = vpack.c.bf16 %v475, %v473
      %v480 = vld [vmem:[%s1 + $0x40] sm:$0xf]
      %v481 = vld [vmem:[%s1 + $0x44] sm:$0xf]
      %v482 = vld [vmem:[%s1 + $0x48] sm:$0xf]
      %v483 = vld [vmem:[%s1 + $0x4c] sm:$0xf]
      %v484 = vld [vmem:[%s1 + $0x50] sm:$0xf]
      %v485 = vld [vmem:[%s1 + $0x54] sm:$0xf]
      %v486 = vld [vmem:[%s1 + $0x58] sm:$0xf]
      %v487 = vld [vmem:[%s1 + $0x5c] sm:$0xf]
      %v488 = vld [vmem:[%s1 + $0x60] sm:$0xf]
      %v489 = vld [vmem:[%s1 + $0x64] sm:$0xf]
      %v490 = vld [vmem:[%s1 + $0x68] sm:$0xf]
      %v491 = vld [vmem:[%s1 + $0x6c] sm:$0xf]
      %v492 = vld [vmem:[%s1 + $0x70] sm:$0xf]
      %v493 = vld [vmem:[%s1 + $0x74] sm:$0xf]
      %v494 = vld [vmem:[%s1 + $0x78] sm:$0xf]
      %v495 = vld [vmem:[%s1 + $0x7c] sm:$0xf]
      %v512 = vunpack.c.l.b16 %v480
      %v513 = vunpack.c.l.b16 %v481
      %v514 = vunpack.c.l.b16 %v482
      %v515 = vunpack.c.l.b16 %v483
      %v516 = vunpack.c.l.b16 %v484
      %v517 = vunpack.c.l.b16 %v485
      %v518 = vunpack.c.l.b16 %v486
      %v519 = vunpack.c.l.b16 %v487
      %v520 = vunpack.c.l.b16 %v488
      %v521 = vunpack.c.l.b16 %v489
      %v522 = vunpack.c.l.b16 %v490
      %v523 = vunpack.c.l.b16 %v491
      %v524 = vunpack.c.l.b16 %v492
      %v525 = vunpack.c.l.b16 %v493
      %v526 = vunpack.c.l.b16 %v494
      %v527 = vunpack.c.l.b16 %v495
      %v528 = vpack.c.b16 %v513, %v512
      %v529 = vpack.c.b16 %v515, %v514
      %v530 = vpack.c.b16 %v517, %v516
      %v531 = vpack.c.b16 %v519, %v518
      %v532 = vpack.c.b16 %v521, %v520
      %v533 = vpack.c.b16 %v523, %v522
      %v534 = vpack.c.b16 %v525, %v524
      %v535 = vpack.c.b16 %v527, %v526
      %544 = vmatpush.bf16.msra.mxu0 %v535
      %545 = vmatpush.bf16.msra.mxu0 %v534
      %546 = vmatpush.bf16.msra.mxu0 %v533
      %547 = vmatpush.bf16.msra.mxu0 %v532
      %548 = vmatpush.bf16.msra.mxu0 %v531
      %549 = vmatpush.bf16.msra.mxu0 %v530
      %550 = vmatpush.bf16.msra.mxu0 %v529
      %551 = vmatpush.bf16.msra.mxu0 %v528
      %552 = vmatmul.bf16.gmra.mxu0 %v476
      %v553 = vpop.f32.mrf.mxu0
      %v554 = vadd.f32 0.0, %v553
      %v555 = vpop.f32.mrf.mxu0
      %v556 = vadd.f32 0.0, %v555
      %557 = vmatmul.bf16.gmra.mxu0 %v477
      %v558 = vpop.f32.mrf.mxu0
      %v559 = vadd.f32 0.0, %v558
      %v560 = vpop.f32.mrf.mxu0
      %v561 = vadd.f32 0.0, %v560
      %562 = vmatmul.bf16.gmra.mxu0 %v478
      %v563 = vpop.f32.mrf.mxu0
      %v564 = vadd.f32 0.0, %v563
      %v565 = vpop.f32.mrf.mxu0
      %v566 = vadd.f32 0.0, %v565
      %567 = vmatmul.bf16.gmra.mxu0 %v479
      %v568 = vpop.f32.mrf.mxu0
      %v569 = vadd.f32 0.0, %v568
      %v570 = vpop.f32.mrf.mxu0
      %v571 = vadd.f32 0.0, %v570
      %572 = vdwg.mxu0
      %v589 = vunpack.c.l.b16 %v444
      %v590 = vunpack.c.l.b16 %v445
      %v591 = vunpack.c.l.b16 %v446
      %v592 = vunpack.c.l.b16 %v447
      %v593 = vunpack.c.l.b16 %v448
      %v594 = vunpack.c.l.b16 %v449
      %v595 = vunpack.c.l.b16 %v450
      %v596 = vunpack.c.l.b16 %v451
      %v597 = vunpack.c.l.b16 %v452
      %v598 = vunpack.c.l.b16 %v453
      %v599 = vunpack.c.l.b16 %v454
      %v600 = vunpack.c.l.b16 %v455
      %v601 = vunpack.c.l.b16 %v456
      %v602 = vunpack.c.l.b16 %v457
      %v603 = vunpack.c.l.b16 %v458
      %v604 = vunpack.c.l.b16 %v459
      %v605 = vpack.c.b16 %v590, %v589
      %v606 = vpack.c.b16 %v592, %v591
      %v607 = vpack.c.b16 %v594, %v593
      %v608 = vpack.c.b16 %v596, %v595
      %v609 = vpack.c.b16 %v598, %v597
      %v610 = vpack.c.b16 %v600, %v599
      %v611 = vpack.c.b16 %v602, %v601
      %v612 = vpack.c.b16 %v604, %v603
      %621 = vmatpush.bf16.msra.mxu0 %v612
      %622 = vmatpush.bf16.msra.mxu0 %v611
      %623 = vmatpush.bf16.msra.mxu0 %v610
      %624 = vmatpush.bf16.msra.mxu0 %v609
      %625 = vmatpush.bf16.msra.mxu0 %v608
      %626 = vmatpush.bf16.msra.mxu0 %v607
      %627 = vmatpush.bf16.msra.mxu0 %v606
      %628 = vmatpush.bf16.msra.mxu0 %v605
      %629 = vmatmul.bf16.gmra.mxu0 %v440
      %v630 = vpop.f32.mrf.mxu0
      %v631 = vadd.f32 %v554, %v630
      %v632 = vpop.f32.mrf.mxu0
      %v633 = vadd.f32 %v556, %v632
      %634 = vmatmul.bf16.gmra.mxu0 %v441
      %v635 = vpop.f32.mrf.mxu0
      %v636 = vadd.f32 %v559, %v635
      %v637 = vpop.f32.mrf.mxu0
      %v638 = vadd.f32 %v561, %v637
      %639 = vmatmul.bf16.gmra.mxu0 %v442
      %v640 = vpop.f32.mrf.mxu0
      %v641 = vadd.f32 %v564, %v640
      %v642 = vpop.f32.mrf.mxu0
      %v643 = vadd.f32 %v566, %v642
      %644 = vmatmul.bf16.gmra.mxu0 %v443
      %v645 = vpop.f32.mrf.mxu0
      %v646 = vadd.f32 %v569, %v645
      %v647 = vpop.f32.mrf.mxu0
      %v648 = vadd.f32 %v571, %v647
      %649 = vdwg.mxu0
      %s650 = scalar_lea.vmem [#allocation2], 2
      %v651 = vld [vmem:[%s650] ss:$2 sm:$0xff]
      %s652 = scalar_lea.vmem [#allocation2], 50
      %v653 = vld [vmem:[%s652] ss:$2 sm:$0xff]
      %s654 = scalar_lea.vmem [#allocation2], 98
      %v655 = vld [vmem:[%s654] ss:$2 sm:$0xff]
      %s656 = scalar_lea.vmem [#allocation2], 146
      %v657 = vld [vmem:[%s656] ss:$2 sm:$0xff]
      %s658 = scalar_lea.vmem [#allocation2], 194
      %v659 = vld [vmem:[%s658] ss:$2 sm:$0xff]
      %s660 = scalar_lea.vmem [#allocation2], 242
      %v661 = vld [vmem:[%s660] ss:$2 sm:$0xff]
      %s662 = scalar_lea.vmem [#allocation2], 290
      %v663 = vld [vmem:[%s662] ss:$2 sm:$0xff]
      %s664 = scalar_lea.vmem [#allocation2], 338
      %v665 = vld [vmem:[%s664] ss:$2 sm:$0xff]
      %v666 = vpack.c.bf16 %v653, %v651
      %v667 = vpack.c.bf16 %v657, %v655
      %v668 = vpack.c.bf16 %v661, %v659
      %v669 = vpack.c.bf16 %v665, %v663
      %v670 = vld [vmem:[%s1 + $0x80] sm:$0xf]
      %v671 = vld [vmem:[%s1 + $0x84] sm:$0xf]
      %v672 = vld [vmem:[%s1 + $0x88] sm:$0xf]
      %v673 = vld [vmem:[%s1 + $0x8c] sm:$0xf]
      %v674 = vld [vmem:[%s1 + $0x90] sm:$0xf]
      %v675 = vld [vmem:[%s1 + $0x94] sm:$0xf]
      %v676 = vld [vmem:[%s1 + $0x98] sm:$0xf]
      %v677 = vld [vmem:[%s1 + $0x9c] sm:$0xf]
      %v678 = vld [vmem:[%s1 + $0xa0] sm:$0xf]
      %v679 = vld [vmem:[%s1 + $0xa4] sm:$0xf]
      %v680 = vld [vmem:[%s1 + $0xa8] sm:$0xf]
      %v681 = vld [vmem:[%s1 + $0xac] sm:$0xf]
      %v682 = vld [vmem:[%s1 + $0xb0] sm:$0xf]
      %v683 = vld [vmem:[%s1 + $0xb4] sm:$0xf]
      %v684 = vld [vmem:[%s1 + $0xb8] sm:$0xf]
      %v685 = vld [vmem:[%s1 + $0xbc] sm:$0xf]
      %v702 = vunpack.c.l.b16 %v670
      %v703 = vunpack.c.l.b16 %v671
      %v704 = vunpack.c.l.b16 %v672
      %v705 = vunpack.c.l.b16 %v673
      %v706 = vunpack.c.l.b16 %v674
      %v707 = vunpack.c.l.b16 %v675
      %v708 = vunpack.c.l.b16 %v676
      %v709 = vunpack.c.l.b16 %v677
      %v710 = vunpack.c.l.b16 %v678
      %v711 = vunpack.c.l.b16 %v679
      %v712 = vunpack.c.l.b16 %v680
      %v713 = vunpack.c.l.b16 %v681
      %v714 = vunpack.c.l.b16 %v682
      %v715 = vunpack.c.l.b16 %v683
      %v716 = vunpack.c.l.b16 %v684
      %v717 = vunpack.c.l.b16 %v685
      %v718 = vpack.c.b16 %v703, %v702
      %v719 = vpack.c.b16 %v705, %v704
      %v720 = vpack.c.b16 %v707, %v706
      %v721 = vpack.c.b16 %v709, %v708
      %v722 = vpack.c.b16 %v711, %v710
      %v723 = vpack.c.b16 %v713, %v712
      %v724 = vpack.c.b16 %v715, %v714
      %v725 = vpack.c.b16 %v717, %v716
      %734 = vmatpush.bf16.msra.mxu0 %v725
      %735 = vmatpush.bf16.msra.mxu0 %v724
      %736 = vmatpush.bf16.msra.mxu0 %v723
      %737 = vmatpush.bf16.msra.mxu0 %v722
      %738 = vmatpush.bf16.msra.mxu0 %v721
      %739 = vmatpush.bf16.msra.mxu0 %v720
      %740 = vmatpush.bf16.msra.mxu0 %v719
      %741 = vmatpush.bf16.msra.mxu0 %v718
      %742 = vmatmul.bf16.gmra.mxu0 %v666
      %v743 = vpop.f32.mrf.mxu0
      %v744 = vadd.f32 0.0, %v743
      %v745 = vpop.f32.mrf.mxu0
      %v746 = vadd.f32 0.0, %v745
      %747 = vmatmul.bf16.gmra.mxu0 %v667
      %v748 = vpop.f32.mrf.mxu0
      %v749 = vadd.f32 0.0, %v748
      %v750 = vpop.f32.mrf.mxu0
      %v751 = vadd.f32 0.0, %v750
      %752 = vmatmul.bf16.gmra.mxu0 %v668
      %v753 = vpop.f32.mrf.mxu0
      %v754 = vadd.f32 0.0, %v753
      %v755 = vpop.f32.mrf.mxu0
      %v756 = vadd.f32 0.0, %v755
      %757 = vmatmul.bf16.gmra.mxu0 %v669
      %v758 = vpop.f32.mrf.mxu0
      %v759 = vadd.f32 0.0, %v758
      %v760 = vpop.f32.mrf.mxu0
      %v761 = vadd.f32 0.0, %v760
      %762 = vdwg.mxu0
      %v763 = vadd.f32 %v631, %v744
      %v764 = vadd.f32 %v633, %v746
      %v765 = vadd.f32 %v636, %v749
      %v766 = vadd.f32 %v638, %v751
      %v767 = vadd.f32 %v641, %v754
      %v768 = vadd.f32 %v643, %v756
      %v769 = vadd.f32 %v646, %v759
      %v770 = vadd.f32 %v648, %v761
      %v771 = vld [vmem:[%s392] ss:$2 sm:$0xff]
      %s772 = scalar_lea.vmem %s392, 48 [#allocation2]
      %v773 = vld [vmem:[%s772] ss:$2 sm:$0xff]
      %s774 = scalar_lea.vmem %s392, 96 [#allocation2]
      %v775 = vld [vmem:[%s774] ss:$2 sm:$0xff]
      %s776 = scalar_lea.vmem %s392, 144 [#allocation2]
      %v777 = vld [vmem:[%s776] ss:$2 sm:$0xff]
      %s778 = scalar_lea.vmem %s392, 192 [#allocation2]
      %v779 = vld [vmem:[%s778] ss:$2 sm:$0xff]
      %s780 = scalar_lea.vmem %s392, 240 [#allocation2]
      %v781 = vld [vmem:[%s780] ss:$2 sm:$0xff]
      %s782 = scalar_lea.vmem %s392, 288 [#allocation2]
      %v783 = vld [vmem:[%s782] ss:$2 sm:$0xff]
      %s784 = scalar_lea.vmem %s392, 336 [#allocation2]
      %v785 = vld [vmem:[%s784] ss:$2 sm:$0xff]
      %v786 = vpack.c.bf16 %v773, %v771
      %v787 = vpack.c.bf16 %v777, %v775
      %v788 = vpack.c.bf16 %v781, %v779
      %v789 = vpack.c.bf16 %v785, %v783
      %v790 = vld [vmem:[%s1 + $0xc0] sm:$0xf]
      %v791 = vld [vmem:[%s1 + $0xc4] sm:$0xf]
      %v792 = vld [vmem:[%s1 + $0xc8] sm:$0xf]
      %v793 = vld [vmem:[%s1 + $0xcc] sm:$0xf]
      %v794 = vld [vmem:[%s1 + $0xd0] sm:$0xf]
      %v795 = vld [vmem:[%s1 + $0xd4] sm:$0xf]
      %v796 = vld [vmem:[%s1 + $0xd8] sm:$0xf]
      %v797 = vld [vmem:[%s1 + $0xdc] sm:$0xf]
      %v798 = vld [vmem:[%s1 + $0xe0] sm:$0xf]
      %v799 = vld [vmem:[%s1 + $0xe4] sm:$0xf]
      %v800 = vld [vmem:[%s1 + $0xe8] sm:$0xf]
      %v801 = vld [vmem:[%s1 + $0xec] sm:$0xf]
      %v802 = vld [vmem:[%s1 + $0xf0] sm:$0xf]
      %v803 = vld [vmem:[%s1 + $0xf4] sm:$0xf]
      %v804 = vld [vmem:[%s1 + $0xf8] sm:$0xf]
      %v805 = vld [vmem:[%s1 + $0xfc] sm:$0xf]
      %v822 = vunpack.c.l.b16 %v790
      %v823 = vunpack.c.l.b16 %v791
      %v824 = vunpack.c.l.b16 %v792
      %v825 = vunpack.c.l.b16 %v793
      %v826 = vunpack.c.l.b16 %v794
      %v827 = vunpack.c.l.b16 %v795
      %v828 = vunpack.c.l.b16 %v796
      %v829 = vunpack.c.l.b16 %v797
      %v830 = vunpack.c.l.b16 %v798
      %v831 = vunpack.c.l.b16 %v799
      %v832 = vunpack.c.l.b16 %v800
      %v833 = vunpack.c.l.b16 %v801
      %v834 = vunpack.c.l.b16 %v802
      %v835 = vunpack.c.l.b16 %v803
      %v836 = vunpack.c.l.b16 %v804
      %v837 = vunpack.c.l.b16 %v805
      %v838 = vpack.c.b16 %v823, %v822
      %v839 = vpack.c.b16 %v825, %v824
      %v840 = vpack.c.b16 %v827, %v826
      %v841 = vpack.c.b16 %v829, %v828
      %v842 = vpack.c.b16 %v831, %v830
      %v843 = vpack.c.b16 %v833, %v832
      %v844 = vpack.c.b16 %v835, %v834
      %v845 = vpack.c.b16 %v837, %v836
      %854 = vmatpush.bf16.msra.mxu0 %v845
      %855 = vmatpush.bf16.msra.mxu0 %v844
      %856 = vmatpush.bf16.msra.mxu0 %v843
      %857 = vmatpush.bf16.msra.mxu0 %v842
      %858 = vmatpush.bf16.msra.mxu0 %v841
      %859 = vmatpush.bf16.msra.mxu0 %v840
      %860 = vmatpush.bf16.msra.mxu0 %v839
      %861 = vmatpush.bf16.msra.mxu0 %v838
      %862 = vmatmul.bf16.gmra.mxu0 %v786
      %v863 = vpop.f32.mrf.mxu0
      %v864 = vadd.f32 0.0, %v863
      %v865 = vpop.f32.mrf.mxu0
      %v866 = vadd.f32 0.0, %v865
      %867 = vmatmul.bf16.gmra.mxu0 %v787
      %v868 = vpop.f32.mrf.mxu0
      %v869 = vadd.f32 0.0, %v868
      %v870 = vpop.f32.mrf.mxu0
      %v871 = vadd.f32 0.0, %v870
      %872 = vmatmul.bf16.gmra.mxu0 %v788
      %v873 = vpop.f32.mrf.mxu0
      %v874 = vadd.f32 0.0, %v873
      %v875 = vpop.f32.mrf.mxu0
      %v876 = vadd.f32 0.0, %v875
      %877 = vmatmul.bf16.gmra.mxu0 %v789
      %v878 = vpop.f32.mrf.mxu0
      %v879 = vadd.f32 0.0, %v878
      %v880 = vpop.f32.mrf.mxu0
      %v881 = vadd.f32 0.0, %v880
      %882 = vdwg.mxu0
      %v883 = vadd.f32 %v763, %v864
      %v884 = vadd.f32 %v764, %v866
      %v885 = vadd.f32 %v765, %v869
      %v886 = vadd.f32 %v766, %v871
      %v887 = vadd.f32 %v767, %v874
      %v888 = vadd.f32 %v768, %v876
      %v889 = vadd.f32 %v769, %v879
      %v890 = vadd.f32 %v770, %v881
      %s891 = scalar_lea.vmem %s392, 1 [#allocation2]
      %v892 = vld [vmem:[%s891] ss:$2 sm:$0xff]
      %s893 = scalar_lea.vmem %s392, 49 [#allocation2]
      %v894 = vld [vmem:[%s893] ss:$2 sm:$0xff]
      %s895 = scalar_lea.vmem %s392, 97 [#allocation2]
      %v896 = vld [vmem:[%s895] ss:$2 sm:$0xff]
      %s897 = scalar_lea.vmem %s392, 145 [#allocation2]
      %v898 = vld [vmem:[%s897] ss:$2 sm:$0xff]
      %s899 = scalar_lea.vmem %s392, 193 [#allocation2]
      %v900 = vld [vmem:[%s899] ss:$2 sm:$0xff]
      %s901 = scalar_lea.vmem %s392, 241 [#allocation2]
      %v902 = vld [vmem:[%s901] ss:$2 sm:$0xff]
      %s903 = scalar_lea.vmem %s392, 289 [#allocation2]
      %v904 = vld [vmem:[%s903] ss:$2 sm:$0xff]
      %s905 = scalar_lea.vmem %s392, 337 [#allocation2]
      %v906 = vld [vmem:[%s905] ss:$2 sm:$0xff]
      %v907 = vpack.c.bf16 %v894, %v892
      %v908 = vpack.c.bf16 %v898, %v896
      %v909 = vpack.c.bf16 %v902, %v900
      %v910 = vpack.c.bf16 %v906, %v904
      %v911 = vld [vmem:[%s1 + $0x100] sm:$0xf]
      %v912 = vld [vmem:[%s1 + $0x104] sm:$0xf]
      %v913 = vld [vmem:[%s1 + $0x108] sm:$0xf]
      %v914 = vld [vmem:[%s1 + $0x10c] sm:$0xf]
      %v915 = vld [vmem:[%s1 + $0x110] sm:$0xf]
      %v916 = vld [vmem:[%s1 + $0x114] sm:$0xf]
      %v917 = vld [vmem:[%s1 + $0x118] sm:$0xf]
      %v918 = vld [vmem:[%s1 + $0x11c] sm:$0xf]
      %v919 = vld [vmem:[%s1 + $0x120] sm:$0xf]
      %v920 = vld [vmem:[%s1 + $0x124] sm:$0xf]
      %v921 = vld [vmem:[%s1 + $0x128] sm:$0xf]
      %v922 = vld [vmem:[%s1 + $0x12c] sm:$0xf]
      %v923 = vld [vmem:[%s1 + $0x130] sm:$0xf]
      %v924 = vld [vmem:[%s1 + $0x134] sm:$0xf]
      %v925 = vld [vmem:[%s1 + $0x138] sm:$0xf]
      %v926 = vld [vmem:[%s1 + $0x13c] sm:$0xf]
      %v943 = vunpack.c.l.b16 %v911
      %v944 = vunpack.c.l.b16 %v912
      %v945 = vunpack.c.l.b16 %v913
      %v946 = vunpack.c.l.b16 %v914
      %v947 = vunpack.c.l.b16 %v915
      %v948 = vunpack.c.l.b16 %v916
      %v949 = vunpack.c.l.b16 %v917
      %v950 = vunpack.c.l.b16 %v918
      %v951 = vunpack.c.l.b16 %v919
      %v952 = vunpack.c.l.b16 %v920
      %v953 = vunpack.c.l.b16 %v921
      %v954 = vunpack.c.l.b16 %v922
      %v955 = vunpack.c.l.b16 %v923
      %v956 = vunpack.c.l.b16 %v924
      %v957 = vunpack.c.l.b16 %v925
      %v958 = vunpack.c.l.b16 %v926
      %v959 = vpack.c.b16 %v944, %v943
      %v960 = vpack.c.b16 %v946, %v945
      %v961 = vpack.c.b16 %v948, %v947
      %v962 = vpack.c.b16 %v950, %v949
      %v963 = vpack.c.b16 %v952, %v951
      %v964 = vpack.c.b16 %v954, %v953
      %v965 = vpack.c.b16 %v956, %v955
      %v966 = vpack.c.b16 %v958, %v957
      %975 = vmatpush.bf16.msra.mxu0 %v966
      %976 = vmatpush.bf16.msra.mxu0 %v965
      %977 = vmatpush.bf16.msra.mxu0 %v964
      %978 = vmatpush.bf16.msra.mxu0 %v963
      %979 = vmatpush.bf16.msra.mxu0 %v962
      %980 = vmatpush.bf16.msra.mxu0 %v961
      %981 = vmatpush.bf16.msra.mxu0 %v960
      %982 = vmatpush.bf16.msra.mxu0 %v959
      %983 = vmatmul.bf16.gmra.mxu0 %v907
      %v984 = vpop.f32.mrf.mxu0
      %v985 = vadd.f32 0.0, %v984
      %v986 = vpop.f32.mrf.mxu0
      %v987 = vadd.f32 0.0, %v986
      %988 = vmatmul.bf16.gmra.mxu0 %v908
      %v989 = vpop.f32.mrf.mxu0
      %v990 = vadd.f32 0.0, %v989
      %v991 = vpop.f32.mrf.mxu0
      %v992 = vadd.f32 0.0, %v991
      %993 = vmatmul.bf16.gmra.mxu0 %v909
      %v994 = vpop.f32.mrf.mxu0
      %v995 = vadd.f32 0.0, %v994
      %v996 = vpop.f32.mrf.mxu0
      %v997 = vadd.f32 0.0, %v996
      %998 = vmatmul.bf16.gmra.mxu0 %v910
      %v999 = vpop.f32.mrf.mxu0
      %v1000 = vadd.f32 0.0, %v999
      %v1001 = vpop.f32.mrf.mxu0
      %v1002 = vadd.f32 0.0, %v1001
      %1003 = vdwg.mxu0
      %v1004 = vadd.f32 %v883, %v985
      %v1005 = vadd.f32 %v884, %v987
      %v1006 = vadd.f32 %v885, %v990
      %v1007 = vadd.f32 %v886, %v992
      %v1008 = vadd.f32 %v887, %v995
      %v1009 = vadd.f32 %v888, %v997
      %v1010 = vadd.f32 %v889, %v1000
      %v1011 = vadd.f32 %v890, %v1002
      %s1012 = scalar_lea.vmem %s392, 2 [#allocation2]
      %v1013 = vld [vmem:[%s1012] ss:$2 sm:$0xff]
      %s1014 = scalar_lea.vmem %s392, 50 [#allocation2]
      %v1015 = vld [vmem:[%s1014] ss:$2 sm:$0xff]
      %s1016 = scalar_lea.vmem %s392, 98 [#allocation2]
      %v1017 = vld [vmem:[%s1016] ss:$2 sm:$0xff]
      %s1018 = scalar_lea.vmem %s392, 146 [#allocation2]
      %v1019 = vld [vmem:[%s1018] ss:$2 sm:$0xff]
      %s1020 = scalar_lea.vmem %s392, 194 [#allocation2]
      %v1021 = vld [vmem:[%s1020] ss:$2 sm:$0xff]
      %s1022 = scalar_lea.vmem %s392, 242 [#allocation2]
      %v1023 = vld [vmem:[%s1022] ss:$2 sm:$0xff]
      %s1024 = scalar_lea.vmem %s392, 290 [#allocation2]
      %v1025 = vld [vmem:[%s1024] ss:$2 sm:$0xff]
      %s1026 = scalar_lea.vmem %s392, 338 [#allocation2]
      %v1027 = vld [vmem:[%s1026] ss:$2 sm:$0xff]
      %v1028 = vpack.c.bf16 %v1015, %v1013
      %v1029 = vpack.c.bf16 %v1019, %v1017
      %v1030 = vpack.c.bf16 %v1023, %v1021
      %v1031 = vpack.c.bf16 %v1027, %v1025
      %v1032 = vld [vmem:[%s1 + $0x140] sm:$0xf]
      %v1033 = vld [vmem:[%s1 + $0x144] sm:$0xf]
      %v1034 = vld [vmem:[%s1 + $0x148] sm:$0xf]
      %v1035 = vld [vmem:[%s1 + $0x14c] sm:$0xf]
      %v1036 = vld [vmem:[%s1 + $0x150] sm:$0xf]
      %v1037 = vld [vmem:[%s1 + $0x154] sm:$0xf]
      %v1038 = vld [vmem:[%s1 + $0x158] sm:$0xf]
      %v1039 = vld [vmem:[%s1 + $0x15c] sm:$0xf]
      %v1040 = vld [vmem:[%s1 + $0x160] sm:$0xf]
      %v1041 = vld [vmem:[%s1 + $0x164] sm:$0xf]
      %v1042 = vld [vmem:[%s1 + $0x168] sm:$0xf]
      %v1043 = vld [vmem:[%s1 + $0x16c] sm:$0xf]
      %v1044 = vld [vmem:[%s1 + $0x170] sm:$0xf]
      %v1045 = vld [vmem:[%s1 + $0x174] sm:$0xf]
      %v1046 = vld [vmem:[%s1 + $0x178] sm:$0xf]
      %v1047 = vld [vmem:[%s1 + $0x17c] sm:$0xf]
      %v1064 = vunpack.c.l.b16 %v1032
      %v1065 = vunpack.c.l.b16 %v1033
      %v1066 = vunpack.c.l.b16 %v1034
      %v1067 = vunpack.c.l.b16 %v1035
      %v1068 = vunpack.c.l.b16 %v1036
      %v1069 = vunpack.c.l.b16 %v1037
      %v1070 = vunpack.c.l.b16 %v1038
      %v1071 = vunpack.c.l.b16 %v1039
      %v1072 = vunpack.c.l.b16 %v1040
      %v1073 = vunpack.c.l.b16 %v1041
      %v1074 = vunpack.c.l.b16 %v1042
      %v1075 = vunpack.c.l.b16 %v1043
      %v1076 = vunpack.c.l.b16 %v1044
      %v1077 = vunpack.c.l.b16 %v1045
      %v1078 = vunpack.c.l.b16 %v1046
      %v1079 = vunpack.c.l.b16 %v1047
      %v1080 = vpack.c.b16 %v1065, %v1064
      %v1081 = vpack.c.b16 %v1067, %v1066
      %v1082 = vpack.c.b16 %v1069, %v1068
      %v1083 = vpack.c.b16 %v1071, %v1070
      %v1084 = vpack.c.b16 %v1073, %v1072
      %v1085 = vpack.c.b16 %v1075, %v1074
      %v1086 = vpack.c.b16 %v1077, %v1076
      %v1087 = vpack.c.b16 %v1079, %v1078
      %1096 = vmatpush.bf16.msra.mxu0 %v1087
      %1097 = vmatpush.bf16.msra.mxu0 %v1086
      %1098 = vmatpush.bf16.msra.mxu0 %v1085
      %1099 = vmatpush.bf16.msra.mxu0 %v1084
      %1100 = vmatpush.bf16.msra.mxu0 %v1083
      %1101 = vmatpush.bf16.msra.mxu0 %v1082
      %1102 = vmatpush.bf16.msra.mxu0 %v1081
      %1103 = vmatpush.bf16.msra.mxu0 %v1080
      %1104 = vmatmul.bf16.gmra.mxu0 %v1028
      %v1105 = vpop.f32.mrf.mxu0
      %v1106 = vadd.f32 0.0, %v1105
      %v1107 = vpop.f32.mrf.mxu0
      %v1108 = vadd.f32 0.0, %v1107
      %1109 = vmatmul.bf16.gmra.mxu0 %v1029
      %v1110 = vpop.f32.mrf.mxu0
      %v1111 = vadd.f32 0.0, %v1110
      %v1112 = vpop.f32.mrf.mxu0
      %v1113 = vadd.f32 0.0, %v1112
      %1114 = vmatmul.bf16.gmra.mxu0 %v1030
      %v1115 = vpop.f32.mrf.mxu0
      %v1116 = vadd.f32 0.0, %v1115
      %v1117 = vpop.f32.mrf.mxu0
      %v1118 = vadd.f32 0.0, %v1117
      %1119 = vmatmul.bf16.gmra.mxu0 %v1031
      %v1120 = vpop.f32.mrf.mxu0
      %v1121 = vadd.f32 0.0, %v1120
      %v1122 = vpop.f32.mrf.mxu0
      %v1123 = vadd.f32 0.0, %v1122
      %1124 = vdwg.mxu0
      %v1125 = vadd.f32 %v1004, %v1106
      %v1126 = vadd.f32 %v1005, %v1108
      %v1127 = vadd.f32 %v1006, %v1111
      %v1128 = vadd.f32 %v1007, %v1113
      %v1129 = vadd.f32 %v1008, %v1116
      %v1130 = vadd.f32 %v1009, %v1118
      %v1131 = vadd.f32 %v1010, %v1121
      %v1132 = vadd.f32 %v1011, %v1123
      %s1133 = scalar_lea.vmem [#allocation2], 48
      %v1134 = vld [vmem:[%s1133] ss:$2 sm:$0xff]
      %s1135 = scalar_lea.vmem %s1133, 48 [#allocation2]
      %v1136 = vld [vmem:[%s1135] ss:$2 sm:$0xff]
      %s1137 = scalar_lea.vmem %s1133, 96 [#allocation2]
      %v1138 = vld [vmem:[%s1137] ss:$2 sm:$0xff]
      %s1139 = scalar_lea.vmem %s1133, 144 [#allocation2]
      %v1140 = vld [vmem:[%s1139] ss:$2 sm:$0xff]
      %s1141 = scalar_lea.vmem %s1133, 192 [#allocation2]
      %v1142 = vld [vmem:[%s1141] ss:$2 sm:$0xff]
      %s1143 = scalar_lea.vmem %s1133, 240 [#allocation2]
      %v1144 = vld [vmem:[%s1143] ss:$2 sm:$0xff]
      %s1145 = scalar_lea.vmem %s1133, 288 [#allocation2]
      %v1146 = vld [vmem:[%s1145] ss:$2 sm:$0xff]
      %s1147 = scalar_lea.vmem %s1133, 336 [#allocation2]
      %v1148 = vld [vmem:[%s1147] ss:$2 sm:$0xff]
      %v1149 = vpack.c.bf16 %v1136, %v1134
      %v1150 = vpack.c.bf16 %v1140, %v1138
      %v1151 = vpack.c.bf16 %v1144, %v1142
      %v1152 = vpack.c.bf16 %v1148, %v1146
      %v1153 = vld [vmem:[%s1 + $0x180] sm:$0xf]
      %v1154 = vld [vmem:[%s1 + $0x184] sm:$0xf]
      %v1155 = vld [vmem:[%s1 + $0x188] sm:$0xf]
      %v1156 = vld [vmem:[%s1 + $0x18c] sm:$0xf]
      %v1157 = vld [vmem:[%s1 + $0x190] sm:$0xf]
      %v1158 = vld [vmem:[%s1 + $0x194] sm:$0xf]
      %v1159 = vld [vmem:[%s1 + $0x198] sm:$0xf]
      %v1160 = vld [vmem:[%s1 + $0x19c] sm:$0xf]
      %v1161 = vld [vmem:[%s1 + $0x1a0] sm:$0xf]
      %v1162 = vld [vmem:[%s1 + $0x1a4] sm:$0xf]
      %v1163 = vld [vmem:[%s1 + $0x1a8] sm:$0xf]
      %v1164 = vld [vmem:[%s1 + $0x1ac] sm:$0xf]
      %v1165 = vld [vmem:[%s1 + $0x1b0] sm:$0xf]
      %v1166 = vld [vmem:[%s1 + $0x1b4] sm:$0xf]
      %v1167 = vld [vmem:[%s1 + $0x1b8] sm:$0xf]
      %v1168 = vld [vmem:[%s1 + $0x1bc] sm:$0xf]
      %v1185 = vunpack.c.l.b16 %v1153
      %v1186 = vunpack.c.l.b16 %v1154
      %v1187 = vunpack.c.l.b16 %v1155
      %v1188 = vunpack.c.l.b16 %v1156
      %v1189 = vunpack.c.l.b16 %v1157
      %v1190 = vunpack.c.l.b16 %v1158
      %v1191 = vunpack.c.l.b16 %v1159
      %v1192 = vunpack.c.l.b16 %v1160
      %v1193 = vunpack.c.l.b16 %v1161
      %v1194 = vunpack.c.l.b16 %v1162
      %v1195 = vunpack.c.l.b16 %v1163
      %v1196 = vunpack.c.l.b16 %v1164
      %v1197 = vunpack.c.l.b16 %v1165
      %v1198 = vunpack.c.l.b16 %v1166
      %v1199 = vunpack.c.l.b16 %v1167
      %v1200 = vunpack.c.l.b16 %v1168
      %v1201 = vpack.c.b16 %v1186, %v1185
      %v1202 = vpack.c.b16 %v1188, %v1187
      %v1203 = vpack.c.b16 %v1190, %v1189
      %v1204 = vpack.c.b16 %v1192, %v1191
      %v1205 = vpack.c.b16 %v1194, %v1193
      %v1206 = vpack.c.b16 %v1196, %v1195
      %v1207 = vpack.c.b16 %v1198, %v1197
      %v1208 = vpack.c.b16 %v1200, %v1199
      %1217 = vmatpush.bf16.msra.mxu0 %v1208
      %1218 = vmatpush.bf16.msra.mxu0 %v1207
      %1219 = vmatpush.bf16.msra.mxu0 %v1206
      %1220 = vmatpush.bf16.msra.mxu0 %v1205
      %1221 = vmatpush.bf16.msra.mxu0 %v1204
      %1222 = vmatpush.bf16.msra.mxu0 %v1203
      %1223 = vmatpush.bf16.msra.mxu0 %v1202
      %1224 = vmatpush.bf16.msra.mxu0 %v1201
      %1225 = vmatmul.bf16.gmra.mxu0 %v1149
      %v1226 = vpop.f32.mrf.mxu0
      %v1227 = vadd.f32 0.0, %v1226
      %v1228 = vpop.f32.mrf.mxu0
      %v1229 = vadd.f32 0.0, %v1228
      %1230 = vmatmul.bf16.gmra.mxu0 %v1150
      %v1231 = vpop.f32.mrf.mxu0
      %v1232 = vadd.f32 0.0, %v1231
      %v1233 = vpop.f32.mrf.mxu0
      %v1234 = vadd.f32 0.0, %v1233
      %1235 = vmatmul.bf16.gmra.mxu0 %v1151
      %v1236 = vpop.f32.mrf.mxu0
      %v1237 = vadd.f32 0.0, %v1236
      %v1238 = vpop.f32.mrf.mxu0
      %v1239 = vadd.f32 0.0, %v1238
      %1240 = vmatmul.bf16.gmra.mxu0 %v1152
      %v1241 = vpop.f32.mrf.mxu0
      %v1242 = vadd.f32 0.0, %v1241
      %v1243 = vpop.f32.mrf.mxu0
      %v1244 = vadd.f32 0.0, %v1243
      %1245 = vdwg.mxu0
      %v1246 = vadd.f32 %v1125, %v1227
      %v1247 = vadd.f32 %v1126, %v1229
      %v1248 = vadd.f32 %v1127, %v1232
      %v1249 = vadd.f32 %v1128, %v1234
      %v1250 = vadd.f32 %v1129, %v1237
      %v1251 = vadd.f32 %v1130, %v1239
      %v1252 = vadd.f32 %v1131, %v1242
      %v1253 = vadd.f32 %v1132, %v1244
      %s1254 = scalar_lea.vmem %s1133, 1 [#allocation2]
      %v1255 = vld [vmem:[%s1254] ss:$2 sm:$0xff]
      %s1256 = scalar_lea.vmem %s1133, 49 [#allocation2]
      %v1257 = vld [vmem:[%s1256] ss:$2 sm:$0xff]
      %s1258 = scalar_lea.vmem %s1133, 97 [#allocation2]
      %v1259 = vld [vmem:[%s1258] ss:$2 sm:$0xff]
      %s1260 = scalar_lea.vmem %s1133, 145 [#allocation2]
      %v1261 = vld [vmem:[%s1260] ss:$2 sm:$0xff]
      %s1262 = scalar_lea.vmem %s1133, 193 [#allocation2]
      %v1263 = vld [vmem:[%s1262] ss:$2 sm:$0xff]
      %s1264 = scalar_lea.vmem %s1133, 241 [#allocation2]
      %v1265 = vld [vmem:[%s1264] ss:$2 sm:$0xff]
      %s1266 = scalar_lea.vmem %s1133, 289 [#allocation2]
      %v1267 = vld [vmem:[%s1266] ss:$2 sm:$0xff]
      %s1268 = scalar_lea.vmem %s1133, 337 [#allocation2]
      %v1269 = vld [vmem:[%s1268] ss:$2 sm:$0xff]
      %v1270 = vpack.c.bf16 %v1257, %v1255
      %v1271 = vpack.c.bf16 %v1261, %v1259
      %v1272 = vpack.c.bf16 %v1265, %v1263
      %v1273 = vpack.c.bf16 %v1269, %v1267
      %v1274 = vld [vmem:[%s1 + $0x1c0] sm:$0xf]
      %v1275 = vld [vmem:[%s1 + $0x1c4] sm:$0xf]
      %v1276 = vld [vmem:[%s1 + $0x1c8] sm:$0xf]
      %v1277 = vld [vmem:[%s1 + $0x1cc] sm:$0xf]
      %v1278 = vld [vmem:[%s1 + $0x1d0] sm:$0xf]
      %v1279 = vld [vmem:[%s1 + $0x1d4] sm:$0xf]
      %v1280 = vld [vmem:[%s1 + $0x1d8] sm:$0xf]
      %v1281 = vld [vmem:[%s1 + $0x1dc] sm:$0xf]
      %v1282 = vld [vmem:[%s1 + $0x1e0] sm:$0xf]
      %v1283 = vld [vmem:[%s1 + $0x1e4] sm:$0xf]
      %v1284 = vld [vmem:[%s1 + $0x1e8] sm:$0xf]
      %v1285 = vld [vmem:[%s1 + $0x1ec] sm:$0xf]
      %v1286 = vld [vmem:[%s1 + $0x1f0] sm:$0xf]
      %v1287 = vld [vmem:[%s1 + $0x1f4] sm:$0xf]
      %v1288 = vld [vmem:[%s1 + $0x1f8] sm:$0xf]
      %v1289 = vld [vmem:[%s1 + $0x1fc] sm:$0xf]
      %v1306 = vunpack.c.l.b16 %v1274
      %v1307 = vunpack.c.l.b16 %v1275
      %v1308 = vunpack.c.l.b16 %v1276
      %v1309 = vunpack.c.l.b16 %v1277
      %v1310 = vunpack.c.l.b16 %v1278
      %v1311 = vunpack.c.l.b16 %v1279
      %v1312 = vunpack.c.l.b16 %v1280
      %v1313 = vunpack.c.l.b16 %v1281
      %v1314 = vunpack.c.l.b16 %v1282
      %v1315 = vunpack.c.l.b16 %v1283
      %v1316 = vunpack.c.l.b16 %v1284
      %v1317 = vunpack.c.l.b16 %v1285
      %v1318 = vunpack.c.l.b16 %v1286
      %v1319 = vunpack.c.l.b16 %v1287
      %v1320 = vunpack.c.l.b16 %v1288
      %v1321 = vunpack.c.l.b16 %v1289
      %v1322 = vpack.c.b16 %v1307, %v1306
      %v1323 = vpack.c.b16 %v1309, %v1308
      %v1324 = vpack.c.b16 %v1311, %v1310
      %v1325 = vpack.c.b16 %v1313, %v1312
      %v1326 = vpack.c.b16 %v1315, %v1314
      %v1327 = vpack.c.b16 %v1317, %v1316
      %v1328 = vpack.c.b16 %v1319, %v1318
      %v1329 = vpack.c.b16 %v1321, %v1320
      %1338 = vmatpush.bf16.msra.mxu0 %v1329
      %1339 = vmatpush.bf16.msra.mxu0 %v1328
      %1340 = vmatpush.bf16.msra.mxu0 %v1327
      %1341 = vmatpush.bf16.msra.mxu0 %v1326
      %1342 = vmatpush.bf16.msra.mxu0 %v1325
      %1343 = vmatpush.bf16.msra.mxu0 %v1324
      %1344 = vmatpush.bf16.msra.mxu0 %v1323
      %1345 = vmatpush.bf16.msra.mxu0 %v1322
      %1346 = vmatmul.bf16.gmra.mxu0 %v1270
      %v1347 = vpop.f32.mrf.mxu0
      %v1348 = vadd.f32 0.0, %v1347
      %v1349 = vpop.f32.mrf.mxu0
      %v1350 = vadd.f32 0.0, %v1349
      %1351 = vmatmul.bf16.gmra.mxu0 %v1271
      %v1352 = vpop.f32.mrf.mxu0
      %v1353 = vadd.f32 0.0, %v1352
      %v1354 = vpop.f32.mrf.mxu0
      %v1355 = vadd.f32 0.0, %v1354
      %1356 = vmatmul.bf16.gmra.mxu0 %v1272
      %v1357 = vpop.f32.mrf.mxu0
      %v1358 = vadd.f32 0.0, %v1357
      %v1359 = vpop.f32.mrf.mxu0
      %v1360 = vadd.f32 0.0, %v1359
      %1361 = vmatmul.bf16.gmra.mxu0 %v1273
      %v1362 = vpop.f32.mrf.mxu0
      %v1363 = vadd.f32 0.0, %v1362
      %v1364 = vpop.f32.mrf.mxu0
      %v1365 = vadd.f32 0.0, %v1364
      %1366 = vdwg.mxu0
      %v1367 = vadd.f32 %v1246, %v1348
      %v1368 = vadd.f32 %v1247, %v1350
      %v1369 = vadd.f32 %v1248, %v1353
      %v1370 = vadd.f32 %v1249, %v1355
      %v1371 = vadd.f32 %v1250, %v1358
      %v1372 = vadd.f32 %v1251, %v1360
      %v1373 = vadd.f32 %v1252, %v1363
      %v1374 = vadd.f32 %v1253, %v1365
      %s1375 = scalar_lea.vmem %s1133, 2 [#allocation2]
      %v1376 = vld [vmem:[%s1375] ss:$2 sm:$0xff]
      %s1377 = scalar_lea.vmem %s1133, 50 [#allocation2]
      %v1378 = vld [vmem:[%s1377] ss:$2 sm:$0xff]
      %s1379 = scalar_lea.vmem %s1133, 98 [#allocation2]
      %v1380 = vld [vmem:[%s1379] ss:$2 sm:$0xff]
      %s1381 = scalar_lea.vmem %s1133, 146 [#allocation2]
      %v1382 = vld [vmem:[%s1381] ss:$2 sm:$0xff]
      %s1383 = scalar_lea.vmem %s1133, 194 [#allocation2]
      %v1384 = vld [vmem:[%s1383] ss:$2 sm:$0xff]
      %s1385 = scalar_lea.vmem %s1133, 242 [#allocation2]
      %v1386 = vld [vmem:[%s1385] ss:$2 sm:$0xff]
      %s1387 = scalar_lea.vmem %s1133, 290 [#allocation2]
      %v1388 = vld [vmem:[%s1387] ss:$2 sm:$0xff]
      %s1389 = scalar_lea.vmem %s1133, 338 [#allocation2]
      %v1390 = vld [vmem:[%s1389] ss:$2 sm:$0xff]
      %v1391 = vpack.c.bf16 %v1378, %v1376
      %v1392 = vpack.c.bf16 %v1382, %v1380
      %v1393 = vpack.c.bf16 %v1386, %v1384
      %v1394 = vpack.c.bf16 %v1390, %v1388
      %v1395 = vld [vmem:[%s1 + $0x200] sm:$0xf]
      %v1396 = vld [vmem:[%s1 + $0x204] sm:$0xf]
      %v1397 = vld [vmem:[%s1 + $0x208] sm:$0xf]
      %v1398 = vld [vmem:[%s1 + $0x20c] sm:$0xf]
      %v1399 = vld [vmem:[%s1 + $0x210] sm:$0xf]
      %v1400 = vld [vmem:[%s1 + $0x214] sm:$0xf]
      %v1401 = vld [vmem:[%s1 + $0x218] sm:$0xf]
      %v1402 = vld [vmem:[%s1 + $0x21c] sm:$0xf]
      %v1403 = vld [vmem:[%s1 + $0x220] sm:$0xf]
      %v1404 = vld [vmem:[%s1 + $0x224] sm:$0xf]
      %v1405 = vld [vmem:[%s1 + $0x228] sm:$0xf]
      %v1406 = vld [vmem:[%s1 + $0x22c] sm:$0xf]
      %v1407 = vld [vmem:[%s1 + $0x230] sm:$0xf]
      %v1408 = vld [vmem:[%s1 + $0x234] sm:$0xf]
      %v1409 = vld [vmem:[%s1 + $0x238] sm:$0xf]
      %v1410 = vld [vmem:[%s1 + $0x23c] sm:$0xf]
      %v1427 = vunpack.c.l.b16 %v1395
      %v1428 = vunpack.c.l.b16 %v1396
      %v1429 = vunpack.c.l.b16 %v1397
      %v1430 = vunpack.c.l.b16 %v1398
      %v1431 = vunpack.c.l.b16 %v1399
      %v1432 = vunpack.c.l.b16 %v1400
      %v1433 = vunpack.c.l.b16 %v1401
      %v1434 = vunpack.c.l.b16 %v1402
      %v1435 = vunpack.c.l.b16 %v1403
      %v1436 = vunpack.c.l.b16 %v1404
      %v1437 = vunpack.c.l.b16 %v1405
      %v1438 = vunpack.c.l.b16 %v1406
      %v1439 = vunpack.c.l.b16 %v1407
      %v1440 = vunpack.c.l.b16 %v1408
      %v1441 = vunpack.c.l.b16 %v1409
      %v1442 = vunpack.c.l.b16 %v1410
      %v1443 = vpack.c.b16 %v1428, %v1427
      %v1444 = vpack.c.b16 %v1430, %v1429
      %v1445 = vpack.c.b16 %v1432, %v1431
      %v1446 = vpack.c.b16 %v1434, %v1433
      %v1447 = vpack.c.b16 %v1436, %v1435
      %v1448 = vpack.c.b16 %v1438, %v1437
      %v1449 = vpack.c.b16 %v1440, %v1439
      %v1450 = vpack.c.b16 %v1442, %v1441
      %1459 = vmatpush.bf16.msra.mxu0 %v1450
      %1460 = vmatpush.bf16.msra.mxu0 %v1449
      %1461 = vmatpush.bf16.msra.mxu0 %v1448
      %1462 = vmatpush.bf16.msra.mxu0 %v1447
      %1463 = vmatpush.bf16.msra.mxu0 %v1446
      %1464 = vmatpush.bf16.msra.mxu0 %v1445
      %1465 = vmatpush.bf16.msra.mxu0 %v1444
      %1466 = vmatpush.bf16.msra.mxu0 %v1443
      %1467 = vmatmul.bf16.gmra.mxu0 %v1391
      %v1468 = vpop.f32.mrf.mxu0
      %v1469 = vadd.f32 0.0, %v1468
      %v1470 = vpop.f32.mrf.mxu0
      %v1471 = vadd.f32 0.0, %v1470
      %1472 = vmatmul.bf16.gmra.mxu0 %v1392
      %v1473 = vpop.f32.mrf.mxu0
      %v1474 = vadd.f32 0.0, %v1473
      %v1475 = vpop.f32.mrf.mxu0
      %v1476 = vadd.f32 0.0, %v1475
      %1477 = vmatmul.bf16.gmra.mxu0 %v1393
      %v1478 = vpop.f32.mrf.mxu0
      %v1479 = vadd.f32 0.0, %v1478
      %v1480 = vpop.f32.mrf.mxu0
      %v1481 = vadd.f32 0.0, %v1480
      %1482 = vmatmul.bf16.gmra.mxu0 %v1394
      %v1483 = vpop.f32.mrf.mxu0
      %v1484 = vadd.f32 0.0, %v1483
      %v1485 = vpop.f32.mrf.mxu0
      %v1486 = vadd.f32 0.0, %v1485
      %1487 = vdwg.mxu0
      %v1488 = vadd.f32 %v1367, %v1469
      %v1489 = vadd.f32 %v1368, %v1471
      %v1490 = vadd.f32 %v1369, %v1474
      %v1491 = vadd.f32 %v1370, %v1476
      %v1492 = vadd.f32 %v1371, %v1479
      %v1493 = vadd.f32 %v1372, %v1481
      %v1494 = vadd.f32 %v1373, %v1484
      %v1495 = vadd.f32 %v1374, %v1486
      %v1496 = vpack.c.bf16 %v1488, %v1488
      %v1497 = vpack.c.bf16 %v1489, %v1489
      %v1498 = vpack.c.bf16 %v1490, %v1490
      %v1499 = vpack.c.bf16 %v1491, %v1491
      %v1500 = vpack.c.bf16 %v1492, %v1492
      %v1501 = vpack.c.bf16 %v1493, %v1493
      %v1502 = vpack.c.bf16 %v1494, %v1494
      %v1503 = vpack.c.bf16 %v1495, %v1495
      %1504 = vst [vmem:[%s271] sm:$0xf] %v1496
      %1505 = vst [vmem:[%s271 + $0x4] sm:$0xf] %v1497
      %1506 = vst [vmem:[%s271 + $0x8] sm:$0xf] %v1498
      %1507 = vst [vmem:[%s271 + $0xc] sm:$0xf] %v1499
      %1508 = vst [vmem:[%s271 + $0x10] sm:$0xf] %v1500
      %1509 = vst [vmem:[%s271 + $0x14] sm:$0xf] %v1501
      %1510 = vst [vmem:[%s271 + $0x18] sm:$0xf] %v1502
      %1511 = vst [vmem:[%s271 + $0x1c] sm:$0xf] %v1503
      %v1512 = vadd.f32 %v1488, %v1489
      %v1513 = vadd.f32 %v1512, %v1490
      %v1514 = vadd.f32 %v1513, %v1491
      %v1515 = vadd.f32 %v1514, %v1492
      %v1516 = vadd.f32 %v1515, %v1493
      %v1517 = vadd.f32 %v1516, %v1494
      %v1518 = vadd.f32 %v1517, %v1495
      %v1519 = vrot.slane %v1518, 4
      %v1520 = vadd.f32 %v1518, %v1519
      %v1521 = vrot.slane %v1520, 2
      %v1522 = vadd.f32 %v1520, %v1521
      %v1523 = vrot.slane %v1522, 1
      %v1524 = vadd.f32 %v1522, %v1523
      %1525 = vst [vmem:[%s275] sm:$0x1] %v1524
      %v1526 = vmul.f32 %v1488, %v1488
      %v1527 = vmul.f32 %v1489, %v1489
      %v1528 = vmul.f32 %v1490, %v1490
      %v1529 = vmul.f32 %v1491, %v1491
      %v1530 = vmul.f32 %v1492, %v1492
      %v1531 = vmul.f32 %v1493, %v1493
      %v1532 = vmul.f32 %v1494, %v1494
      %v1533 = vmul.f32 %v1495, %v1495
      %v1534 = vadd.f32 %v1526, %v1527
      %v1535 = vadd.f32 %v1534, %v1528
      %v1536 = vadd.f32 %v1535, %v1529
      %v1537 = vadd.f32 %v1536, %v1530
      %v1538 = vadd.f32 %v1537, %v1531
      %v1539 = vadd.f32 %v1538, %v1532
      %v1540 = vadd.f32 %v1539, %v1533
      %v1541 = vrot.slane %v1540, 4
      %v1542 = vadd.f32 %v1540, %v1541
      %v1543 = vrot.slane %v1542, 2
      %v1544 = vadd.f32 %v1542, %v1543
      %v1545 = vrot.slane %v1544, 1
      %v1546 = vadd.f32 %v1544, %v1545
      %1547 = vst [vmem:[%s275 + $0x1] sm:$0x1] %v1546
      %v1548 = vld [vmem:[%s2] sm:$0xf]
      %v1549 = vld [vmem:[%s2 + $0x4] sm:$0xf]
      %v1550 = vld [vmem:[%s2 + $0x8] sm:$0xf]
      %v1551 = vld [vmem:[%s2 + $0xc] sm:$0xf]
      %v1552 = vld [vmem:[%s2 + $0x10] sm:$0xf]
      %v1553 = vld [vmem:[%s2 + $0x14] sm:$0xf]
      %v1554 = vld [vmem:[%s2 + $0x18] sm:$0xf]
      %v1555 = vld [vmem:[%s2 + $0x1c] sm:$0xf]
      %v1556 = vld [vmem:[%s2 + $0x20] sm:$0xf]
      %v1557 = vld [vmem:[%s2 + $0x24] sm:$0xf]
      %v1558 = vld [vmem:[%s2 + $0x28] sm:$0xf]
      %v1559 = vld [vmem:[%s2 + $0x2c] sm:$0xf]
      %v1560 = vld [vmem:[%s2 + $0x30] sm:$0xf]
      %v1561 = vld [vmem:[%s2 + $0x34] sm:$0xf]
      %v1562 = vld [vmem:[%s2 + $0x38] sm:$0xf]
      %v1563 = vld [vmem:[%s2 + $0x3c] sm:$0xf]
      %v1580 = vunpack.c.l.b16 %v1548
      %v1581 = vunpack.c.l.b16 %v1549
      %v1582 = vunpack.c.l.b16 %v1550
      %v1583 = vunpack.c.l.b16 %v1551
      %v1584 = vunpack.c.l.b16 %v1552
      %v1585 = vunpack.c.l.b16 %v1553
      %v1586 = vunpack.c.l.b16 %v1554
      %v1587 = vunpack.c.l.b16 %v1555
      %v1588 = vunpack.c.l.b16 %v1556
      %v1589 = vunpack.c.l.b16 %v1557
      %v1590 = vunpack.c.l.b16 %v1558
      %v1591 = vunpack.c.l.b16 %v1559
      %v1592 = vunpack.c.l.b16 %v1560
      %v1593 = vunpack.c.l.b16 %v1561
      %v1594 = vunpack.c.l.b16 %v1562
      %v1595 = vunpack.c.l.b16 %v1563
      %v1596 = vpack.c.b16 %v1581, %v1580
      %v1597 = vpack.c.b16 %v1583, %v1582
      %v1598 = vpack.c.b16 %v1585, %v1584
      %v1599 = vpack.c.b16 %v1587, %v1586
      %v1600 = vpack.c.b16 %v1589, %v1588
      %v1601 = vpack.c.b16 %v1591, %v1590
      %v1602 = vpack.c.b16 %v1593, %v1592
      %v1603 = vpack.c.b16 %v1595, %v1594
      %1612 = vmatpush.bf16.msra.mxu0 %v1603
      %1613 = vmatpush.bf16.msra.mxu0 %v1602
      %1614 = vmatpush.bf16.msra.mxu0 %v1601
      %1615 = vmatpush.bf16.msra.mxu0 %v1600
      %1616 = vmatpush.bf16.msra.mxu0 %v1599
      %1617 = vmatpush.bf16.msra.mxu0 %v1598
      %1618 = vmatpush.bf16.msra.mxu0 %v1597
      %1619 = vmatpush.bf16.msra.mxu0 %v1596
      %1620 = vmatmul.bf16.gmra.mxu0 %v907
      %v1621 = vpop.f32.mrf.mxu0
      %v1622 = vadd.f32 0.0, %v1621
      %v1623 = vpop.f32.mrf.mxu0
      %v1624 = vadd.f32 0.0, %v1623
      %1625 = vmatmul.bf16.gmra.mxu0 %v908
      %v1626 = vpop.f32.mrf.mxu0
      %v1627 = vadd.f32 0.0, %v1626
      %v1628 = vpop.f32.mrf.mxu0
      %v1629 = vadd.f32 0.0, %v1628
      %1630 = vmatmul.bf16.gmra.mxu0 %v909
      %v1631 = vpop.f32.mrf.mxu0
      %v1632 = vadd.f32 0.0, %v1631
      %v1633 = vpop.f32.mrf.mxu0
      %v1634 = vadd.f32 0.0, %v1633
      %1635 = vmatmul.bf16.gmra.mxu0 %v910
      %v1636 = vpop.f32.mrf.mxu0
      %v1637 = vadd.f32 0.0, %v1636
      %v1638 = vpop.f32.mrf.mxu0
      %v1639 = vadd.f32 0.0, %v1638
      %1640 = vdwg.mxu0
      %v1641 = vpack.c.bf16 %v1622, %v1622
      %v1642 = vpack.c.bf16 %v1624, %v1624
      %v1643 = vpack.c.bf16 %v1627, %v1627
      %v1644 = vpack.c.bf16 %v1629, %v1629
      %v1645 = vpack.c.bf16 %v1632, %v1632
      %v1646 = vpack.c.bf16 %v1634, %v1634
      %v1647 = vpack.c.bf16 %v1637, %v1637
      %v1648 = vpack.c.bf16 %v1639, %v1639
      %1649 = vst [vmem:[%s280] sm:$0xf] %v1641
      %1650 = vst [vmem:[%s280 + $0x4] sm:$0xf] %v1642
      %1651 = vst [vmem:[%s280 + $0x8] sm:$0xf] %v1643
      %1652 = vst [vmem:[%s280 + $0xc] sm:$0xf] %v1644
      %1653 = vst [vmem:[%s280 + $0x10] sm:$0xf] %v1645
      %1654 = vst [vmem:[%s280 + $0x14] sm:$0xf] %v1646
      %1655 = vst [vmem:[%s280 + $0x18] sm:$0xf] %v1647
      %1656 = vst [vmem:[%s280 + $0x1c] sm:$0xf] %v1648
      %v1657 = vadd.f32 %v1622, %v1624
      %v1658 = vadd.f32 %v1657, %v1627
      %v1659 = vadd.f32 %v1658, %v1629
      %v1660 = vadd.f32 %v1659, %v1632
      %v1661 = vadd.f32 %v1660, %v1634
      %v1662 = vadd.f32 %v1661, %v1637
      %v1663 = vadd.f32 %v1662, %v1639
      %v1664 = vrot.slane %v1663, 4
      %v1665 = vadd.f32 %v1663, %v1664
      %v1666 = vrot.slane %v1665, 2
      %v1667 = vadd.f32 %v1665, %v1666
      %v1668 = vrot.slane %v1667, 1
      %v1669 = vadd.f32 %v1667, %v1668
      %1670 = vst [vmem:[%s284] sm:$0x1] %v1669
      %v1671 = vmul.f32 %v1622, %v1622
      %v1672 = vmul.f32 %v1624, %v1624
      %v1673 = vmul.f32 %v1627, %v1627
      %v1674 = vmul.f32 %v1629, %v1629
      %v1675 = vmul.f32 %v1632, %v1632
      %v1676 = vmul.f32 %v1634, %v1634
      %v1677 = vmul.f32 %v1637, %v1637
      %v1678 = vmul.f32 %v1639, %v1639
      %v1679 = vadd.f32 %v1671, %v1672
      %v1680 = vadd.f32 %v1679, %v1673
      %v1681 = vadd.f32 %v1680, %v1674
      %v1682 = vadd.f32 %v1681, %v1675
      %v1683 = vadd.f32 %v1682, %v1676
      %v1684 = vadd.f32 %v1683, %v1677
      %v1685 = vadd.f32 %v1684, %v1678
      %v1686 = vrot.slane %v1685, 4
      %v1687 = vadd.f32 %v1685, %v1686
      %v1688 = vrot.slane %v1687, 2
      %v1689 = vadd.f32 %v1687, %v1688
      %v1690 = vrot.slane %v1689, 1
      %v1691 = vadd.f32 %v1689, %v1690
      %1692 = vst [vmem:[%s284 + $0x1] sm:$0x1] %v1691
      %p1693 = scmp.lt.s32.totalorder %s18, 1
      %s1694 = scalar_select %p1693, %s18, 1
      %s1695 = smul.addr %s1694, 8
      %s1696 = smul.addr %s1695, 4
      %s1697 = scalar_lea.vmem %s3, %s1696
      %p1698 = scmp.lt.s32.totalorder %s18, 1
      %s1699 = scalar_select %p1698, %s18, 1
      %s1700 = smul.addr %s1699, 2
      %s1701 = scalar_lea.vmem %s4, %s1700
      %p1702 = scmp.lt.s32.totalorder %s18, 1
      %s1703 = scalar_select %p1702, %s18, 1
      %s1704 = smul.addr %s1703, 8
      %s1705 = smul.addr %s1704, 4
      %s1706 = scalar_lea.vmem %s5, %s1705
      %p1707 = scmp.lt.s32.totalorder %s18, 1
      %s1708 = scalar_select %p1707, %s18, 1
      %s1709 = smul.addr %s1708, 2
      %s1710 = scalar_lea.vmem %s6, %s1709
      // Predicated region
      $region33: #{basic_block_forward.3} parent=31 // pred_check
        %p1711 = pneg %p104
      $region34: #{basic_block_forward.3} parent=31 // pred_check_branch
        %1713 = sbr.rel (%p1711) target = $region36
      $region35: #{basic_block_forward.3} parent=31 // pred_region
        _
      $region36: #{basic_block_forward.3} parent=31 // pred_fallthru
        _
      // Predicated region
      $region37: #{basic_block_forward.3} parent=31 // pred_check
        %p1714 = pneg %p130
      $region38: #{basic_block_forward.3} parent=31 // pred_check_branch
        %1716 = sbr.rel (%p1714) target = $region40
      $region39: #{basic_block_forward.3} parent=31 // pred_region
        _
      $region40: #{basic_block_forward.3} parent=31 // pred_fallthru
        _
      // Predicated region
      $region41: #{basic_block_forward.3} parent=31 // pred_check
        %p1717 = pneg %p156
      $region42: #{basic_block_forward.3} parent=31 // pred_check_branch
        %1719 = sbr.rel (%p1717) target = $region44
      $region43: #{basic_block_forward.3} parent=31 // pred_region
        _
      $region44: #{basic_block_forward.3} parent=31 // pred_fallthru
        _
      // Predicated region
      $region45: #{basic_block_forward.3} parent=31 // pred_check
        %p1720 = pneg %p182
      $region46: #{basic_block_forward.3} parent=31 // pred_check_branch
        %1722 = sbr.rel (%p1720) target = $region48
      $region47: #{basic_block_forward.3} parent=31 // pred_region
        _
      $region48: #{basic_block_forward.3} parent=31 // pred_fallthru
        _
    $region32: #{basic_block_forward.3} parent=5 // pred_fallthru
      _
    %p1723 = scmp.le.s32.totalorder 2, %s13
    // Predicated region
    $region49: #{basic_block_forward.3} parent=5 // pred_check
      %p1724 = pneg %p1723
    $region50: #{basic_block_forward.3} parent=5 // pred_check_branch
      %1726 = sbr.rel (%p1724) target = $region52
    $region51: #{basic_block_forward.3} parent=5 // pred_region
      %s1727 = ssub.s32 %s13, 2
      // Predicated region
      $region53: #{basic_block_forward.3} parent=51 // pred_check
        %p1728 = pneg %p110
      $region54: #{basic_block_forward.3} parent=51 // pred_check_branch
        %1730 = sbr.rel (%p1728) target = $region56
      $region55: #{basic_block_forward.3} parent=51 // pred_region
        %p1731 = scmp.lt.s32.totalorder %s19, 1
        %s1732 = scalar_select %p1731, %s19, 1
        %s1733 = smul.addr %s1732, 8
        %s1734 = smul.addr %s1733, 4
        %s1735 = scalar_lea.vmem %s3, %s1734
      $region56: #{basic_block_forward.3} parent=51 // pred_fallthru
        _
      // Predicated region
      $region57: #{basic_block_forward.3} parent=51 // pred_check
        %p1736 = pneg %p136
      $region58: #{basic_block_forward.3} parent=51 // pred_check_branch
        %1738 = sbr.rel (%p1736) target = $region60
      $region59: #{basic_block_forward.3} parent=51 // pred_region
        %p1739 = scmp.lt.s32.totalorder %s19, 1
        %s1740 = scalar_select %p1739, %s19, 1
        %s1741 = smul.addr %s1740, 2
        %s1742 = scalar_lea.vmem %s4, %s1741
      $region60: #{basic_block_forward.3} parent=51 // pred_fallthru
        _
      // Predicated region
      $region61: #{basic_block_forward.3} parent=51 // pred_check
        %p1743 = pneg %p162
      $region62: #{basic_block_forward.3} parent=51 // pred_check_branch
        %1745 = sbr.rel (%p1743) target = $region64
      $region63: #{basic_block_forward.3} parent=51 // pred_region
        %p1746 = scmp.lt.s32.totalorder %s19, 1
        %s1747 = scalar_select %p1746, %s19, 1
        %s1748 = smul.addr %s1747, 8
        %s1749 = smul.addr %s1748, 4
        %s1750 = scalar_lea.vmem %s5, %s1749
      $region64: #{basic_block_forward.3} parent=51 // pred_fallthru
        _
      // Predicated region
      $region65: #{basic_block_forward.3} parent=51 // pred_check
        %p1751 = pneg %p188
      $region66: #{basic_block_forward.3} parent=51 // pred_check_branch
        %1753 = sbr.rel (%p1751) target = $region68
      $region67: #{basic_block_forward.3} parent=51 // pred_region
        %p1754 = scmp.lt.s32.totalorder %s19, 1
        %s1755 = scalar_select %p1754, %s19, 1
        %s1756 = smul.addr %s1755, 2
        %s1757 = scalar_lea.vmem %s6, %s1756
      $region68: #{basic_block_forward.3} parent=51 // pred_fallthru
        _
    $region52: #{basic_block_forward.3} parent=5 // pred_fallthru
      _
  $region6: #{basic_block_forward.3} parent=0 // loop_footer
    %s17 = sadd.s32 1, %s13
  $region7: #{basic_block_forward.3} parent=0 // loop_footer_branch
    %12 = sbr.rel target = $region3
  $region8: #{basic_block_forward.3} parent=0 // loop_exit
    _

</llo_original>
